<compile_context>
chip_gen: v7x
topology: tpu7x:2x2x1
jax: 0.10.0
libtpu: 0.0.40
codegen_flags: <defaults>
</compile_context>

<pallas_src>
import math
from functools import partial

import jax
import jax.numpy as jnp
from jax.experimental import pallas as pl
from jax.experimental.pallas import tpu as pltpu

# ---------------- model config ----------------
D_MODEL = 32
NHEAD = 4
DIM_FF = 64
LN_EPS = 1e-5
# Additive mask value: safe in f32/bf16 score math; revisit (bool mask + where) if the
# score path is ever moved to fp16/fp8.
_NEG_INF = -1e30


# ---------------- in-kernel helpers ----------------
def _layer_norm(x, g, b):
    mu = jnp.mean(x, axis=-1, keepdims=True)
    var = jnp.mean((x - mu) ** 2, axis=-1, keepdims=True)
    return (x - mu) * jax.lax.rsqrt(var + LN_EPS) * g + b


def _batch_bias(rows, cols, batch):
    """Additive (rows, cols) mask: row i may attend to col j iff i % B == j % B.

    Built in-kernel from iota (VPU compare/select), not passed as an O(rows*cols)
    input array. For power-of-two batch the modulo is a bitwise AND.
    """
    r = jax.lax.broadcasted_iota(jnp.int32, (rows, cols), 0)
    c = jax.lax.broadcasted_iota(jnp.int32, (rows, cols), 1)
    diff = r - c
    if (batch & (batch - 1)) == 0:          # power-of-two batch (common case)
        same = (diff & (batch - 1)) == 0
    else:
        same = (diff % batch) == 0
    return jnp.where(same, 0.0, _NEG_INF)


def _attend(q, k, v, bias, wo_t, bo, nhead):
    """Multi-head attention on pre-projected q/k/v (scale already folded into q).

    Per-head scores / probs / P@V run in a short static loop (static lane slices at
    Dh = D/nhead); the head outputs are concatenated once along the lane axis so the
    output projection is a single K=D matmul. NOTE: the per-head q/k/v lane slices are
    kept (sub-vreg selects) — batching heads via reshape/transpose or per-head weight
    splits would shrink the projection matmuls' MXU shapes at D=32.
    """
    M, D = q.shape
    Dh = D // nhead
    heads = []
    for h in range(nhead):
        sl = slice(h * Dh, (h + 1) * Dh)
        # q_h @ k_h.T without materializing a transposed operand.
        s = jax.lax.dot_general(q[:, sl], k[:, sl], (((1,), (1,)), ((), ())),
                                preferred_element_type=jnp.float32) + bias
        s = s - jnp.max(s, axis=-1, keepdims=True)
        e = jnp.exp(s)
        p = e / jnp.sum(e, axis=-1, keepdims=True)   # exact softmax (no approx recip)
        heads.append(jnp.dot(p, v[:, sl], preferred_element_type=jnp.float32))
    o = jnp.concatenate(heads, axis=-1)              # single lane-axis concat
    return jnp.dot(o, wo_t, preferred_element_type=jnp.float32) + bo


# ---------------- Pallas kernel (single invocation, whole batch) ----------------
def decoder_layer_kernel(
    tgt_ref, mem_ref, qpos_ref, pos_ref,
    sa_wqk_ref, sa_bqk_ref, sa_wv_ref, sa_bv_ref, sa_wo_ref, sa_bo_ref,
    ca_wq_ref, ca_bq_ref, ca_wk_ref, ca_bk_ref, ca_wv_ref, ca_bv_ref,
    ca_wo_ref, ca_bo_ref,
    ln1_g_ref, ln1_b_ref, ln2_g_ref, ln2_b_ref, ln3_g_ref, ln3_b_ref,
    lin1_w_ref, lin1_b_ref, lin2_w_ref, lin2_b_ref,
    out_ref,
    *, nhead, batch,
):
    tgt = tgt_ref[...].astype(jnp.float32)      # (M, D), M = Lq*B (batch-interleaved)
    mem = mem_ref[...].astype(jnp.float32)      # (S, D), S = Lm*B
    qpos = qpos_ref[...].astype(jnp.float32)
    pos = pos_ref[...].astype(jnp.float32)
    M, D = tgt.shape
    S = mem.shape[0]

    self_bias = _batch_bias(M, M, batch)        # computed in-kernel, never DMA'd
    cross_bias = _batch_bias(M, S, batch)

    # ---- self-attention block (pre-norm) ----
    tgt2 = _layer_norm(tgt, ln1_g_ref[...], ln1_b_ref[...])
    qk_in = tgt2 + qpos
    qk = jnp.dot(qk_in, sa_wqk_ref[...],
                 preferred_element_type=jnp.float32) + sa_bqk_ref[...]   # fused Q+K
    v = jnp.dot(tgt2, sa_wv_ref[...],
                preferred_element_type=jnp.float32) + sa_bv_ref[...]
    tgt = tgt + _attend(qk[:, :D], qk[:, D:], v, self_bias,
                        sa_wo_ref[...], sa_bo_ref[...], nhead)

    # ---- cross-attention block (pre-norm) ----
    tgt2 = _layer_norm(tgt, ln2_g_ref[...], ln2_b_ref[...])
    q = jnp.dot(tgt2 + qpos, ca_wq_ref[...],
                preferred_element_type=jnp.float32) + ca_bq_ref[...]
    k = jnp.dot(mem + pos, ca_wk_ref[...],
                preferred_element_type=jnp.float32) + ca_bk_ref[...]
    v = jnp.dot(mem, ca_wv_ref[...],
                preferred_element_type=jnp.float32) + ca_bv_ref[...]
    tgt = tgt + _attend(q, k, v, cross_bias, ca_wo_ref[...], ca_bo_ref[...], nhead)

    # ---- feed-forward block (pre-norm) ----
    tgt2 = _layer_norm(tgt, ln3_g_ref[...], ln3_b_ref[...])
    h = jnp.dot(tgt2, lin1_w_ref[...],
                preferred_element_type=jnp.float32) + lin1_b_ref[...]
    h = jnp.maximum(h, 0.0)   # relu
    ff = jnp.dot(h, lin2_w_ref[...],
                 preferred_element_type=jnp.float32) + lin2_b_ref[...]
    out_ref[...] = (tgt + ff).astype(out_ref.dtype)


# ---------------- one-time parameter preparation (NOT in the hot path) ----------------
def prepare_params(params, nhead=NHEAD):
    """One-time prep: transpose/split weights into natural (K, N) layout, fuse the
    self-attention Q+K projection, and fold the 1/sqrt(Dh) attention scale into the
    Q-side weights and biases. Call once at model-load time."""
    D = params["sa_out_w"].shape[0]
    scale = 1.0 / math.sqrt(D // nhead)

    sa_w, sa_b = params["sa_in_w"], params["sa_in_b"]
    ca_w, ca_b = params["ca_in_w"], params["ca_in_b"]

    prepped = dict(
        sa_wqk=jnp.concatenate([sa_w[:D].T * scale, sa_w[D:2 * D].T], axis=1),  # (D,2D)
        sa_bqk=jnp.concatenate([sa_b[:, :D] * scale, sa_b[:, D:2 * D]], axis=1),
        sa_wv=sa_w[2 * D:].T, sa_bv=sa_b[:, 2 * D:],
        sa_wo=params["sa_out_w"].T, sa_bo=params["sa_out_b"],
        ca_wq=ca_w[:D].T * scale, ca_bq=ca_b[:, :D] * scale,
        ca_wk=ca_w[D:2 * D].T, ca_bk=ca_b[:, D:2 * D],
        ca_wv=ca_w[2 * D:].T, ca_bv=ca_b[:, 2 * D:],
        ca_wo=params["ca_out_w"].T, ca_bo=params["ca_out_b"],
        ln1_g=params["ln1_g"], ln1_b=params["ln1_b"],
        ln2_g=params["ln2_g"], ln2_b=params["ln2_b"],
        ln3_g=params["ln3_g"], ln3_b=params["ln3_b"],
        lin1_w=params["lin1_w"].T, lin1_b=params["lin1_b"],
        lin2_w=params["lin2_w"].T, lin2_b=params["lin2_b"],
    )
    return jax.tree.map(jnp.asarray, prepped)


# ---------------- hot-path wrapper ----------------
@partial(jax.jit, static_argnames=("nhead",))
def transformer_decoder_layer(tgt, memory, query_pos, pos, prepped, nhead=NHEAD):
    """tgt/query_pos: (Lq, B, D); memory/pos: (Lm, B, D). Returns (Lq, B, D)."""
    Lq, B, D = tgt.shape
    Lm = memory.shape[0]
    p = prepped

    # Free (metadata-only) flatten: (L, B, D) -> (L*B, D), rows batch-interleaved.
    inputs = (
        tgt.reshape(Lq * B, D), memory.reshape(Lm * B, D),
        query_pos.reshape(Lq * B, D), pos.reshape(Lm * B, D),
        p["sa_wqk"], p["sa_bqk"], p["sa_wv"], p["sa_bv"], p["sa_wo"], p["sa_bo"],
        p["ca_wq"], p["ca_bq"], p["ca_wk"], p["ca_bk"], p["ca_wv"], p["ca_bv"],
        p["ca_wo"], p["ca_bo"],
        p["ln1_g"], p["ln1_b"], p["ln2_g"], p["ln2_b"], p["ln3_g"], p["ln3_b"],
        p["lin1_w"], p["lin1_b"], p["lin2_w"], p["lin2_b"],
    )

    # TODO(synk): for large Lq*B / Lm*B, switch to a flash-style grid (q-tile parallel,
    # kv-tile arbitrary) so the design scales past v7x's 64 MiB VMEM and can use both
    # v7x TensorCores; at the current tiny sizes a single invocation is fastest.
    out = pl.pallas_call(
        partial(decoder_layer_kernel, nhead=nhead, batch=B),
        out_shape=jax.ShapeDtypeStruct((Lq * B, D), tgt.dtype),
        in_specs=[pl.BlockSpec(memory_space=pltpu.MemorySpace.VMEM)] * len(inputs),
        out_specs=pl.BlockSpec(memory_space=pltpu.MemorySpace.VMEM),
        compiler_params=pltpu.CompilerParams(vmem_limit_bytes=32 * 1024 * 1024),
    )(*inputs)
    return out.reshape(Lq, B, D)


# ---------------- pure-JAX reference (for correctness check) ----------------
def _ref_ln(x, g, b):
    mu = x.mean(-1, keepdims=True)
    var = ((x - mu) ** 2).mean(-1, keepdims=True)
    return (x - mu) / jnp.sqrt(var + LN_EPS) * g[0] + b[0]


def _ref_mha(q_in, k_in, v_in, in_w, in_b, out_w, out_b, nhead):
    L, B, D = q_in.shape
    S = k_in.shape[0]
    Dh = D // nhead
    q = q_in @ in_w[:D].T + in_b[0, :D]
    k = k_in @ in_w[D:2 * D].T + in_b[0, D:2 * D]
    v = v_in @ in_w[2 * D:].T + in_b[0, 2 * D:]
    q = q.reshape(L, B, nhead, Dh).transpose(1, 2, 0, 3) / math.sqrt(Dh)
    k = k.reshape(S, B, nhead, Dh).transpose(1, 2, 0, 3)
    v = v.reshape(S, B, nhead, Dh).transpose(1, 2, 0, 3)
    s = jnp.einsum("bhld,bhsd->bhls", q, k)
    p = jax.nn.softmax(s, axis=-1)
    o = jnp.einsum("bhls,bhsd->bhld", p, v)
    o = o.transpose(2, 0, 1, 3).reshape(L, B, D)
    return o @ out_w.T + out_b[0]


def reference_layer(tgt, memory, query_pos, pos, p):
    t2 = _ref_ln(tgt, p["ln1_g"], p["ln1_b"])
    qk = t2 + query_pos
    tgt = tgt + _ref_mha(qk, qk, t2, p["sa_in_w"], p["sa_in_b"],
                         p["sa_out_w"], p["sa_out_b"], NHEAD)
    t2 = _ref_ln(tgt, p["ln2_g"], p["ln2_b"])
    tgt = tgt + _ref_mha(t2 + query_pos, memory + pos, memory,
                         p["ca_in_w"], p["ca_in_b"], p["ca_out_w"], p["ca_out_b"], NHEAD)
    t2 = _ref_ln(tgt, p["ln3_g"], p["ln3_b"])
    h = jnp.maximum(t2 @ p["lin1_w"].T + p["lin1_b"][0], 0.0)
    return tgt + (h @ p["lin2_w"].T + p["lin2_b"][0])


# ---------------- main ----------------
if __name__ == "__main__":
    key = jax.random.PRNGKey(0)
    ks = jax.random.split(key, 20)

    Lq, Lm, B, D, Dff = 8, 16, 2, D_MODEL, DIM_FF

    tgt = jax.random.normal(ks[0], (Lq, B, D), jnp.float32)
    memory = jax.random.normal(ks[1], (Lm, B, D), jnp.float32)
    query_pos = jax.random.normal(ks[2], (Lq, B, D), jnp.float32)
    pos = jax.random.normal(ks[3], (Lm, B, D), jnp.float32)

    s = 0.05
    params = {
        "sa_in_w": jax.random.normal(ks[4], (3 * D, D), jnp.float32) * s,
        "sa_in_b": jax.random.normal(ks[5], (1, 3 * D), jnp.float32) * s,
        "sa_out_w": jax.random.normal(ks[6], (D, D), jnp.float32) * s,
        "sa_out_b": jax.random.normal(ks[7], (1, D), jnp.float32) * s,
        "ca_in_w": jax.random.normal(ks[8], (3 * D, D), jnp.float32) * s,
        "ca_in_b": jax.random.normal(ks[9], (1, 3 * D), jnp.float32) * s,
        "ca_out_w": jax.random.normal(ks[10], (D, D), jnp.float32) * s,
        "ca_out_b": jax.random.normal(ks[11], (1, D), jnp.float32) * s,
        "ln1_g": jnp.ones((1, D), jnp.float32),
        "ln1_b": jnp.zeros((1, D), jnp.float32),
        "ln2_g": jnp.ones((1, D), jnp.float32),
        "ln2_b": jnp.zeros((1, D), jnp.float32),
        "ln3_g": jnp.ones((1, D), jnp.float32),
        "ln3_b": jnp.zeros((1, D), jnp.float32),
        "lin1_w": jax.random.normal(ks[12], (Dff, D), jnp.float32) * s,
        "lin1_b": jax.random.normal(ks[13], (1, Dff), jnp.float32) * s,
        "lin2_w": jax.random.normal(ks[14], (D, Dff), jnp.float32) * s,
        "lin2_b": jax.random.normal(ks[15], (1, D), jnp.float32) * s,
    }

    # One-time parameter prep (hoisted out of the per-call hot path).
    prepped = jax.block_until_ready(prepare_params(params))

    out = transformer_decoder_layer(tgt, memory, query_pos, pos, prepped)
    out = jax.block_until_ready(out)

    ref = reference_layer(tgt, memory, query_pos, pos, params)
    assert out.shape == (Lq, B, D)
    assert jnp.allclose(out, ref, rtol=1e-4, atol=1e-4), (
        f"max abs err = {jnp.max(jnp.abs(out - ref))}")

    print("KERNEL_OK")
</pallas_src>

<mosaic_0001>
module attributes {stable_mosaic.version = 11 : i64} {
  func.func @decoder_layer_kernel(%arg0: memref<16x32xf32, #tpu.memory_space<vmem>>, %arg1: memref<32x32xf32, #tpu.memory_space<vmem>>, %arg2: memref<16x32xf32, #tpu.memory_space<vmem>>, %arg3: memref<32x32xf32, #tpu.memory_space<vmem>>, %arg4: memref<32x64xf32, #tpu.memory_space<vmem>>, %arg5: memref<1x64xf32, #tpu.memory_space<vmem>>, %arg6: memref<32x32xf32, #tpu.memory_space<vmem>>, %arg7: memref<1x32xf32, #tpu.memory_space<vmem>>, %arg8: memref<32x32xf32, #tpu.memory_space<vmem>>, %arg9: memref<1x32xf32, #tpu.memory_space<vmem>>, %arg10: memref<32x32xf32, #tpu.memory_space<vmem>>, %arg11: memref<1x32xf32, #tpu.memory_space<vmem>>, %arg12: memref<32x32xf32, #tpu.memory_space<vmem>>, %arg13: memref<1x32xf32, #tpu.memory_space<vmem>>, %arg14: memref<32x32xf32, #tpu.memory_space<vmem>>, %arg15: memref<1x32xf32, #tpu.memory_space<vmem>>, %arg16: memref<32x32xf32, #tpu.memory_space<vmem>>, %arg17: memref<1x32xf32, #tpu.memory_space<vmem>>, %arg18: memref<1x32xf32, #tpu.memory_space<vmem>>, %arg19: memref<1x32xf32, #tpu.memory_space<vmem>>, %arg20: memref<1x32xf32, #tpu.memory_space<vmem>>, %arg21: memref<1x32xf32, #tpu.memory_space<vmem>>, %arg22: memref<1x32xf32, #tpu.memory_space<vmem>>, %arg23: memref<1x32xf32, #tpu.memory_space<vmem>>, %arg24: memref<32x64xf32, #tpu.memory_space<vmem>>, %arg25: memref<1x64xf32, #tpu.memory_space<vmem>>, %arg26: memref<64x32xf32, #tpu.memory_space<vmem>>, %arg27: memref<1x32xf32, #tpu.memory_space<vmem>>, %arg28: memref<16x32xf32, #tpu.memory_space<vmem>>) attributes {dimension_semantics = [], scalar_prefetch = 0 : i64, scratch_operands = 0 : i64, tpu.core_type = #tpu.core_type<tc>} {
    %c0 = arith.constant 0 : index
    %c0_0 = arith.constant 0 : index
    %0 = vector.load %arg0[%c0, %c0_0] : memref<16x32xf32, #tpu.memory_space<vmem>>, vector<16x32xf32>
    %c0_1 = arith.constant 0 : index
    %c0_2 = arith.constant 0 : index
    %1 = vector.load %arg1[%c0_1, %c0_2] : memref<32x32xf32, #tpu.memory_space<vmem>>, vector<32x32xf32>
    %c0_3 = arith.constant 0 : index
    %c0_4 = arith.constant 0 : index
    %2 = vector.load %arg2[%c0_3, %c0_4] : memref<16x32xf32, #tpu.memory_space<vmem>>, vector<16x32xf32>
    %c0_5 = arith.constant 0 : index
    %c0_6 = arith.constant 0 : index
    %3 = vector.load %arg3[%c0_5, %c0_6] : memref<32x32xf32, #tpu.memory_space<vmem>>, vector<32x32xf32>
    %4 = tpu.iota {dimensions = array<i32: 0>} : vector<16x16xi32>
    %5 = tpu.iota {dimensions = array<i32: 1>} : vector<16x16xi32>
    %6 = arith.subi %4, %5 : vector<16x16xi32>
    %c1_i32 = arith.constant 1 : i32
    %7 = vector.broadcast %c1_i32 : i32 to vector<16x16xi32>
    %8 = arith.andi %6, %7 : vector<16x16xi32>
    %c0_i32 = arith.constant 0 : i32
    %9 = vector.broadcast %c0_i32 : i32 to vector<16x16xi32>
    %10 = arith.cmpi eq, %8, %9 : vector<16x16xi32>
    %cst = arith.constant 0.000000e+00 : f32
    %cst_7 = arith.constant -1.000000e+30 : f32
    %11 = vector.broadcast %cst : f32 to vector<16x16xf32>
    %12 = vector.broadcast %cst_7 : f32 to vector<16x16xf32>
    %13 = arith.select %10, %11, %12 : vector<16x16xi1>, vector<16x16xf32>
    %14 = tpu.iota {dimensions = array<i32: 0>} : vector<16x32xi32>
    %15 = tpu.iota {dimensions = array<i32: 1>} : vector<16x32xi32>
    %16 = arith.subi %14, %15 : vector<16x32xi32>
    %c1_i32_8 = arith.constant 1 : i32
    %17 = vector.broadcast %c1_i32_8 : i32 to vector<16x32xi32>
    %18 = arith.andi %16, %17 : vector<16x32xi32>
    %c0_i32_9 = arith.constant 0 : i32
    %19 = vector.broadcast %c0_i32_9 : i32 to vector<16x32xi32>
    %20 = arith.cmpi eq, %18, %19 : vector<16x32xi32>
    %cst_10 = arith.constant 0.000000e+00 : f32
    %cst_11 = arith.constant -1.000000e+30 : f32
    %21 = vector.broadcast %cst_10 : f32 to vector<16x32xf32>
    %22 = vector.broadcast %cst_11 : f32 to vector<16x32xf32>
    %23 = arith.select %20, %21, %22 : vector<16x32xi1>, vector<16x32xf32>
    %c0_12 = arith.constant 0 : index
    %c0_13 = arith.constant 0 : index
    %24 = vector.load %arg18[%c0_12, %c0_13] : memref<1x32xf32, #tpu.memory_space<vmem>>, vector<1x32xf32>
    %c0_14 = arith.constant 0 : index
    %c0_15 = arith.constant 0 : index
    %25 = vector.load %arg19[%c0_14, %c0_15] : memref<1x32xf32, #tpu.memory_space<vmem>>, vector<1x32xf32>
    %cst_16 = arith.constant dense<0.000000e+00> : vector<16xf32>
    %26 = vector.multi_reduction <add>, %0, %cst_16 [1] : vector<16x32xf32> to vector<16xf32>
    %27 = vector.shape_cast %26 : vector<16xf32> to vector<16x1xf32>
    %cst_17 = arith.constant 3.200000e+01 : f32
    %28 = vector.broadcast %cst_17 : f32 to vector<16x1xf32>
    %29 = arith.divf %27, %28 : vector<16x1xf32>
    %30 = vector.broadcast %29 : vector<16x1xf32> to vector<16x32xf32>
    %31 = arith.subf %0, %30 : vector<16x32xf32>
    %32 = arith.mulf %31, %31 : vector<16x32xf32>
    %cst_18 = arith.constant dense<0.000000e+00> : vector<16xf32>
    %33 = vector.multi_reduction <add>, %32, %cst_18 [1] : vector<16x32xf32> to vector<16xf32>
    %34 = vector.shape_cast %33 : vector<16xf32> to vector<16x1xf32>
    %cst_19 = arith.constant 3.200000e+01 : f32
    %35 = vector.broadcast %cst_19 : f32 to vector<16x1xf32>
    %36 = arith.divf %34, %35 : vector<16x1xf32>
    %37 = vector.broadcast %29 : vector<16x1xf32> to vector<16x32xf32>
    %38 = arith.subf %0, %37 : vector<16x32xf32>
    %cst_20 = arith.constant 9.99999974E-6 : f32
    %39 = vector.broadcast %cst_20 : f32 to vector<16x1xf32>
    %40 = arith.addf %36, %39 : vector<16x1xf32>
    %41 = math.rsqrt %40 : vector<16x1xf32>
    %42 = vector.broadcast %41 : vector<16x1xf32> to vector<16x32xf32>
    %43 = arith.mulf %38, %42 : vector<16x32xf32>
    %44 = vector.broadcast %24 : vector<1x32xf32> to vector<16x32xf32>
    %45 = arith.mulf %43, %44 : vector<16x32xf32>
    %46 = vector.broadcast %25 : vector<1x32xf32> to vector<16x32xf32>
    %47 = arith.addf %45, %46 : vector<16x32xf32>
    %48 = arith.addf %47, %2 : vector<16x32xf32>
    %c0_21 = arith.constant 0 : index
    %c0_22 = arith.constant 0 : index
    %49 = vector.load %arg4[%c0_21, %c0_22] : memref<32x64xf32, #tpu.memory_space<vmem>>, vector<32x64xf32>
    %cst_23 = arith.constant dense<0.000000e+00> : vector<16x64xf32>
    %50 = tpu.matmul %48, %49, %cst_23 {dimension_numbers = #tpu.dot_dimension_numbers<[1], [0], [0], [1], [0, 0, 1, 1], [], []>} : vector<16x32xf32>, vector<32x64xf32>, vector<16x64xf32> -> vector<16x64xf32>
    %c0_24 = arith.constant 0 : index
    %c0_25 = arith.constant 0 : index
    %51 = vector.load %arg5[%c0_24, %c0_25] : memref<1x64xf32, #tpu.memory_space<vmem>>, vector<1x64xf32>
    %52 = vector.broadcast %51 : vector<1x64xf32> to vector<16x64xf32>
    %53 = arith.addf %50, %52 : vector<16x64xf32>
    %c0_26 = arith.constant 0 : index
    %c0_27 = arith.constant 0 : index
    %54 = vector.load %arg6[%c0_26, %c0_27] : memref<32x32xf32, #tpu.memory_space<vmem>>, vector<32x32xf32>
    %cst_28 = arith.constant dense<0.000000e+00> : vector<16x32xf32>
    %55 = tpu.matmul %47, %54, %cst_28 {dimension_numbers = #tpu.dot_dimension_numbers<[1], [0], [0], [1], [0, 0, 1, 1], [], []>} : vector<16x32xf32>, vector<32x32xf32>, vector<16x32xf32> -> vector<16x32xf32>
    %c0_29 = arith.constant 0 : index
    %c0_30 = arith.constant 0 : index
    %56 = vector.load %arg7[%c0_29, %c0_30] : memref<1x32xf32, #tpu.memory_space<vmem>>, vector<1x32xf32>
    %57 = vector.broadcast %56 : vector<1x32xf32> to vector<16x32xf32>
    %58 = arith.addf %55, %57 : vector<16x32xf32>
    %59 = vector.extract_strided_slice %53 {offsets = [0, 0], sizes = [16, 32], strides = [1, 1]} : vector<16x64xf32> to vector<16x32xf32>
    %60 = vector.extract_strided_slice %53 {offsets = [0, 32], sizes = [16, 32], strides = [1, 1]} : vector<16x64xf32> to vector<16x32xf32>
    %c0_31 = arith.constant 0 : index
    %c0_32 = arith.constant 0 : index
    %61 = vector.load %arg8[%c0_31, %c0_32] : memref<32x32xf32, #tpu.memory_space<vmem>>, vector<32x32xf32>
    %c0_33 = arith.constant 0 : index
    %c0_34 = arith.constant 0 : index
    %62 = vector.load %arg9[%c0_33, %c0_34] : memref<1x32xf32, #tpu.memory_space<vmem>>, vector<1x32xf32>
    %63 = vector.extract_strided_slice %59 {offsets = [0, 0], sizes = [16, 8], strides = [1, 1]} : vector<16x32xf32> to vector<16x8xf32>
    %64 = vector.extract_strided_slice %60 {offsets = [0, 0], sizes = [16, 8], strides = [1, 1]} : vector<16x32xf32> to vector<16x8xf32>
    %cst_35 = arith.constant dense<0.000000e+00> : vector<16x16xf32>
    %65 = tpu.matmul %63, %64, %cst_35 {dimension_numbers = #tpu.dot_dimension_numbers<[1], [1], [0], [0], [0, 0, 1, 0], [], []>} : vector<16x8xf32>, vector<16x8xf32>, vector<16x16xf32> -> vector<16x16xf32>
    %66 = arith.addf %65, %13 : vector<16x16xf32>
    %cst_36 = arith.constant dense<0xFF800000> : vector<16xf32>
    %67 = vector.multi_reduction <maximumf>, %66, %cst_36 [1] : vector<16x16xf32> to vector<16xf32>
    %68 = vector.shape_cast %67 : vector<16xf32> to vector<16x1xf32>
    %69 = vector.broadcast %68 : vector<16x1xf32> to vector<16x16xf32>
    %70 = arith.subf %66, %69 : vector<16x16xf32>
    %71 = math.exp %70 : vector<16x16xf32>
    %cst_37 = arith.constant dense<0.000000e+00> : vector<16xf32>
    %72 = vector.multi_reduction <add>, %71, %cst_37 [1] : vector<16x16xf32> to vector<16xf32>
    %73 = vector.shape_cast %72 : vector<16xf32> to vector<16x1xf32>
    %74 = vector.broadcast %73 : vector<16x1xf32> to vector<16x16xf32>
    %75 = arith.divf %71, %74 : vector<16x16xf32>
    %76 = vector.extract_strided_slice %58 {offsets = [0, 0], sizes = [16, 8], strides = [1, 1]} : vector<16x32xf32> to vector<16x8xf32>
    %cst_38 = arith.constant dense<0.000000e+00> : vector<16x8xf32>
    %77 = tpu.matmul %75, %76, %cst_38 {dimension_numbers = #tpu.dot_dimension_numbers<[1], [0], [0], [1], [0, 0, 1, 1], [], []>} : vector<16x16xf32>, vector<16x8xf32>, vector<16x8xf32> -> vector<16x8xf32>
    %78 = vector.extract_strided_slice %59 {offsets = [0, 8], sizes = [16, 8], strides = [1, 1]} : vector<16x32xf32> to vector<16x8xf32>
    %79 = vector.extract_strided_slice %60 {offsets = [0, 8], sizes = [16, 8], strides = [1, 1]} : vector<16x32xf32> to vector<16x8xf32>
    %cst_39 = arith.constant dense<0.000000e+00> : vector<16x16xf32>
    %80 = tpu.matmul %78, %79, %cst_39 {dimension_numbers = #tpu.dot_dimension_numbers<[1], [1], [0], [0], [0, 0, 1, 0], [], []>} : vector<16x8xf32>, vector<16x8xf32>, vector<16x16xf32> -> vector<16x16xf32>
    %81 = arith.addf %80, %13 : vector<16x16xf32>
    %cst_40 = arith.constant dense<0xFF800000> : vector<16xf32>
    %82 = vector.multi_reduction <maximumf>, %81, %cst_40 [1] : vector<16x16xf32> to vector<16xf32>
    %83 = vector.shape_cast %82 : vector<16xf32> to vector<16x1xf32>
    %84 = vector.broadcast %83 : vector<16x1xf32> to vector<16x16xf32>
    %85 = arith.subf %81, %84 : vector<16x16xf32>
    %86 = math.exp %85 : vector<16x16xf32>
    %cst_41 = arith.constant dense<0.000000e+00> : vector<16xf32>
    %87 = vector.multi_reduction <add>, %86, %cst_41 [1] : vector<16x16xf32> to vector<16xf32>
    %88 = vector.shape_cast %87 : vector<16xf32> to vector<16x1xf32>
    %89 = vector.broadcast %88 : vector<16x1xf32> to vector<16x16xf32>
    %90 = arith.divf %86, %89 : vector<16x16xf32>
    %91 = vector.extract_strided_slice %58 {offsets = [0, 8], sizes = [16, 8], strides = [1, 1]} : vector<16x32xf32> to vector<16x8xf32>
    %cst_42 = arith.constant dense<0.000000e+00> : vector<16x8xf32>
    %92 = tpu.matmul %90, %91, %cst_42 {dimension_numbers = #tpu.dot_dimension_numbers<[1], [0], [0], [1], [0, 0, 1, 1], [], []>} : vector<16x16xf32>, vector<16x8xf32>, vector<16x8xf32> -> vector<16x8xf32>
    %93 = vector.extract_strided_slice %59 {offsets = [0, 16], sizes = [16, 8], strides = [1, 1]} : vector<16x32xf32> to vector<16x8xf32>
    %94 = vector.extract_strided_slice %60 {offsets = [0, 16], sizes = [16, 8], strides = [1, 1]} : vector<16x32xf32> to vector<16x8xf32>
    %cst_43 = arith.constant dense<0.000000e+00> : vector<16x16xf32>
    %95 = tpu.matmul %93, %94, %cst_43 {dimension_numbers = #tpu.dot_dimension_numbers<[1], [1], [0], [0], [0, 0, 1, 0], [], []>} : vector<16x8xf32>, vector<16x8xf32>, vector<16x16xf32> -> vector<16x16xf32>
    %96 = arith.addf %95, %13 : vector<16x16xf32>
    %cst_44 = arith.constant dense<0xFF800000> : vector<16xf32>
    %97 = vector.multi_reduction <maximumf>, %96, %cst_44 [1] : vector<16x16xf32> to vector<16xf32>
    %98 = vector.shape_cast %97 : vector<16xf32> to vector<16x1xf32>
    %99 = vector.broadcast %98 : vector<16x1xf32> to vector<16x16xf32>
    %100 = arith.subf %96, %99 : vector<16x16xf32>
    %101 = math.exp %100 : vector<16x16xf32>
    %cst_45 = arith.constant dense<0.000000e+00> : vector<16xf32>
    %102 = vector.multi_reduction <add>, %101, %cst_45 [1] : vector<16x16xf32> to vector<16xf32>
    %103 = vector.shape_cast %102 : vector<16xf32> to vector<16x1xf32>
    %104 = vector.broadcast %103 : vector<16x1xf32> to vector<16x16xf32>
    %105 = arith.divf %101, %104 : vector<16x16xf32>
    %106 = vector.extract_strided_slice %58 {offsets = [0, 16], sizes = [16, 8], strides = [1, 1]} : vector<16x32xf32> to vector<16x8xf32>
    %cst_46 = arith.constant dense<0.000000e+00> : vector<16x8xf32>
    %107 = tpu.matmul %105, %106, %cst_46 {dimension_numbers = #tpu.dot_dimension_numbers<[1], [0], [0], [1], [0, 0, 1, 1], [], []>} : vector<16x16xf32>, vector<16x8xf32>, vector<16x8xf32> -> vector<16x8xf32>
    %108 = vector.extract_strided_slice %59 {offsets = [0, 24], sizes = [16, 8], strides = [1, 1]} : vector<16x32xf32> to vector<16x8xf32>
    %109 = vector.extract_strided_slice %60 {offsets = [0, 24], sizes = [16, 8], strides = [1, 1]} : vector<16x32xf32> to vector<16x8xf32>
    %cst_47 = arith.constant dense<0.000000e+00> : vector<16x16xf32>
    %110 = tpu.matmul %108, %109, %cst_47 {dimension_numbers = #tpu.dot_dimension_numbers<[1], [1], [0], [0], [0, 0, 1, 0], [], []>} : vector<16x8xf32>, vector<16x8xf32>, vector<16x16xf32> -> vector<16x16xf32>
    %111 = arith.addf %110, %13 : vector<16x16xf32>
    %cst_48 = arith.constant dense<0xFF800000> : vector<16xf32>
    %112 = vector.multi_reduction <maximumf>, %111, %cst_48 [1] : vector<16x16xf32> to vector<16xf32>
    %113 = vector.shape_cast %112 : vector<16xf32> to vector<16x1xf32>
    %114 = vector.broadcast %113 : vector<16x1xf32> to vector<16x16xf32>
    %115 = arith.subf %111, %114 : vector<16x16xf32>
    %116 = math.exp %115 : vector<16x16xf32>
    %cst_49 = arith.constant dense<0.000000e+00> : vector<16xf32>
    %117 = vector.multi_reduction <add>, %116, %cst_49 [1] : vector<16x16xf32> to vector<16xf32>
    %118 = vector.shape_cast %117 : vector<16xf32> to vector<16x1xf32>
    %119 = vector.broadcast %118 : vector<16x1xf32> to vector<16x16xf32>
    %120 = arith.divf %116, %119 : vector<16x16xf32>
    %121 = vector.extract_strided_slice %58 {offsets = [0, 24], sizes = [16, 8], strides = [1, 1]} : vector<16x32xf32> to vector<16x8xf32>
    %cst_50 = arith.constant dense<0.000000e+00> : vector<16x8xf32>
    %122 = tpu.matmul %120, %121, %cst_50 {dimension_numbers = #tpu.dot_dimension_numbers<[1], [0], [0], [1], [0, 0, 1, 1], [], []>} : vector<16x16xf32>, vector<16x8xf32>, vector<16x8xf32> -> vector<16x8xf32>
    %123 = tpu.concatenate %77, %92, %107, %122 in 1 : vector<16x8xf32>, vector<16x8xf32>, vector<16x8xf32>, vector<16x8xf32> -> vector<16x32xf32>
    %cst_51 = arith.constant dense<0.000000e+00> : vector<16x32xf32>
    %124 = tpu.matmul %123, %61, %cst_51 {dimension_numbers = #tpu.dot_dimension_numbers<[1], [0], [0], [1], [0, 0, 1, 1], [], []>} : vector<16x32xf32>, vector<32x32xf32>, vector<16x32xf32> -> vector<16x32xf32>
    %125 = vector.broadcast %62 : vector<1x32xf32> to vector<16x32xf32>
    %126 = arith.addf %124, %125 : vector<16x32xf32>
    %127 = arith.addf %0, %126 : vector<16x32xf32>
    %c0_52 = arith.constant 0 : index
    %c0_53 = arith.constant 0 : index
    %128 = vector.load %arg20[%c0_52, %c0_53] : memref<1x32xf32, #tpu.memory_space<vmem>>, vector<1x32xf32>
    %c0_54 = arith.constant 0 : index
    %c0_55 = arith.constant 0 : index
    %129 = vector.load %arg21[%c0_54, %c0_55] : memref<1x32xf32, #tpu.memory_space<vmem>>, vector<1x32xf32>
    %cst_56 = arith.constant dense<0.000000e+00> : vector<16xf32>
    %130 = vector.multi_reduction <add>, %127, %cst_56 [1] : vector<16x32xf32> to vector<16xf32>
    %131 = vector.shape_cast %130 : vector<16xf32> to vector<16x1xf32>
    %cst_57 = arith.constant 3.200000e+01 : f32
    %132 = vector.broadcast %cst_57 : f32 to vector<16x1xf32>
    %133 = arith.divf %131, %132 : vector<16x1xf32>
    %134 = vector.broadcast %133 : vector<16x1xf32> to vector<16x32xf32>
    %135 = arith.subf %127, %134 : vector<16x32xf32>
    %136 = arith.mulf %135, %135 : vector<16x32xf32>
    %cst_58 = arith.constant dense<0.000000e+00> : vector<16xf32>
    %137 = vector.multi_reduction <add>, %136, %cst_58 [1] : vector<16x32xf32> to vector<16xf32>
    %138 = vector.shape_cast %137 : vector<16xf32> to vector<16x1xf32>
    %cst_59 = arith.constant 3.200000e+01 : f32
    %139 = vector.broadcast %cst_59 : f32 to vector<16x1xf32>
    %140 = arith.divf %138, %139 : vector<16x1xf32>
    %141 = vector.broadcast %133 : vector<16x1xf32> to vector<16x32xf32>
    %142 = arith.subf %127, %141 : vector<16x32xf32>
    %cst_60 = arith.constant 9.99999974E-6 : f32
    %143 = vector.broadcast %cst_60 : f32 to vector<16x1xf32>
    %144 = arith.addf %140, %143 : vector<16x1xf32>
    %145 = math.rsqrt %144 : vector<16x1xf32>
    %146 = vector.broadcast %145 : vector<16x1xf32> to vector<16x32xf32>
    %147 = arith.mulf %142, %146 : vector<16x32xf32>
    %148 = vector.broadcast %128 : vector<1x32xf32> to vector<16x32xf32>
    %149 = arith.mulf %147, %148 : vector<16x32xf32>
    %150 = vector.broadcast %129 : vector<1x32xf32> to vector<16x32xf32>
    %151 = arith.addf %149, %150 : vector<16x32xf32>
    %152 = arith.addf %151, %2 : vector<16x32xf32>
    %c0_61 = arith.constant 0 : index
    %c0_62 = arith.constant 0 : index
    %153 = vector.load %arg10[%c0_61, %c0_62] : memref<32x32xf32, #tpu.memory_space<vmem>>, vector<32x32xf32>
    %cst_63 = arith.constant dense<0.000000e+00> : vector<16x32xf32>
    %154 = tpu.matmul %152, %153, %cst_63 {dimension_numbers = #tpu.dot_dimension_numbers<[1], [0], [0], [1], [0, 0, 1, 1], [], []>} : vector<16x32xf32>, vector<32x32xf32>, vector<16x32xf32> -> vector<16x32xf32>
    %c0_64 = arith.constant 0 : index
    %c0_65 = arith.constant 0 : index
    %155 = vector.load %arg11[%c0_64, %c0_65] : memref<1x32xf32, #tpu.memory_space<vmem>>, vector<1x32xf32>
    %156 = vector.broadcast %155 : vector<1x32xf32> to vector<16x32xf32>
    %157 = arith.addf %154, %156 : vector<16x32xf32>
    %158 = arith.addf %1, %3 : vector<32x32xf32>
    %c0_66 = arith.constant 0 : index
    %c0_67 = arith.constant 0 : index
    %159 = vector.load %arg12[%c0_66, %c0_67] : memref<32x32xf32, #tpu.memory_space<vmem>>, vector<32x32xf32>
    %cst_68 = arith.constant dense<0.000000e+00> : vector<32x32xf32>
    %160 = tpu.matmul %158, %159, %cst_68 {dimension_numbers = #tpu.dot_dimension_numbers<[1], [0], [0], [1], [0, 0, 1, 1], [], []>} : vector<32x32xf32>, vector<32x32xf32>, vector<32x32xf32> -> vector<32x32xf32>
    %c0_69 = arith.constant 0 : index
    %c0_70 = arith.constant 0 : index
    %161 = vector.load %arg13[%c0_69, %c0_70] : memref<1x32xf32, #tpu.memory_space<vmem>>, vector<1x32xf32>
    %162 = vector.broadcast %161 : vector<1x32xf32> to vector<32x32xf32>
    %163 = arith.addf %160, %162 : vector<32x32xf32>
    %c0_71 = arith.constant 0 : index
    %c0_72 = arith.constant 0 : index
    %164 = vector.load %arg14[%c0_71, %c0_72] : memref<32x32xf32, #tpu.memory_space<vmem>>, vector<32x32xf32>
    %cst_73 = arith.constant dense<0.000000e+00> : vector<32x32xf32>
    %165 = tpu.matmul %1, %164, %cst_73 {dimension_numbers = #tpu.dot_dimension_numbers<[1], [0], [0], [1], [0, 0, 1, 1], [], []>} : vector<32x32xf32>, vector<32x32xf32>, vector<32x32xf32> -> vector<32x32xf32>
    %c0_74 = arith.constant 0 : index
    %c0_75 = arith.constant 0 : index
    %166 = vector.load %arg15[%c0_74, %c0_75] : memref<1x32xf32, #tpu.memory_space<vmem>>, vector<1x32xf32>
    %167 = vector.broadcast %166 : vector<1x32xf32> to vector<32x32xf32>
    %168 = arith.addf %165, %167 : vector<32x32xf32>
    %c0_76 = arith.constant 0 : index
    %c0_77 = arith.constant 0 : index
    %169 = vector.load %arg16[%c0_76, %c0_77] : memref<32x32xf32, #tpu.memory_space<vmem>>, vector<32x32xf32>
    %c0_78 = arith.constant 0 : index
    %c0_79 = arith.constant 0 : index
    %170 = vector.load %arg17[%c0_78, %c0_79] : memref<1x32xf32, #tpu.memory_space<vmem>>, vector<1x32xf32>
    %171 = vector.extract_strided_slice %157 {offsets = [0, 0], sizes = [16, 8], strides = [1, 1]} : vector<16x32xf32> to vector<16x8xf32>
    %172 = vector.extract_strided_slice %163 {offsets = [0, 0], sizes = [32, 8], strides = [1, 1]} : vector<32x32xf32> to vector<32x8xf32>
    %cst_80 = arith.constant dense<0.000000e+00> : vector<16x32xf32>
    %173 = tpu.matmul %171, %172, %cst_80 {dimension_numbers = #tpu.dot_dimension_numbers<[1], [1], [0], [0], [0, 0, 1, 0], [], []>} : vector<16x8xf32>, vector<32x8xf32>, vector<16x32xf32> -> vector<16x32xf32>
    %174 = arith.addf %173, %23 : vector<16x32xf32>
    %cst_81 = arith.constant dense<0xFF800000> : vector<16xf32>
    %175 = vector.multi_reduction <maximumf>, %174, %cst_81 [1] : vector<16x32xf32> to vector<16xf32>
    %176 = vector.shape_cast %175 : vector<16xf32> to vector<16x1xf32>
    %177 = vector.broadcast %176 : vector<16x1xf32> to vector<16x32xf32>
    %178 = arith.subf %174, %177 : vector<16x32xf32>
    %179 = math.exp %178 : vector<16x32xf32>
    %cst_82 = arith.constant dense<0.000000e+00> : vector<16xf32>
    %180 = vector.multi_reduction <add>, %179, %cst_82 [1] : vector<16x32xf32> to vector<16xf32>
    %181 = vector.shape_cast %180 : vector<16xf32> to vector<16x1xf32>
    %182 = vector.broadcast %181 : vector<16x1xf32> to vector<16x32xf32>
    %183 = arith.divf %179, %182 : vector<16x32xf32>
    %184 = vector.extract_strided_slice %168 {offsets = [0, 0], sizes = [32, 8], strides = [1, 1]} : vector<32x32xf32> to vector<32x8xf32>
    %cst_83 = arith.constant dense<0.000000e+00> : vector<16x8xf32>
    %185 = tpu.matmul %183, %184, %cst_83 {dimension_numbers = #tpu.dot_dimension_numbers<[1], [0], [0], [1], [0, 0, 1, 1], [], []>} : vector<16x32xf32>, vector<32x8xf32>, vector<16x8xf32> -> vector<16x8xf32>
    %186 = vector.extract_strided_slice %157 {offsets = [0, 8], sizes = [16, 8], strides = [1, 1]} : vector<16x32xf32> to vector<16x8xf32>
    %187 = vector.extract_strided_slice %163 {offsets = [0, 8], sizes = [32, 8], strides = [1, 1]} : vector<32x32xf32> to vector<32x8xf32>
    %cst_84 = arith.constant dense<0.000000e+00> : vector<16x32xf32>
    %188 = tpu.matmul %186, %187, %cst_84 {dimension_numbers = #tpu.dot_dimension_numbers<[1], [1], [0], [0], [0, 0, 1, 0], [], []>} : vector<16x8xf32>, vector<32x8xf32>, vector<16x32xf32> -> vector<16x32xf32>
    %189 = arith.addf %188, %23 : vector<16x32xf32>
    %cst_85 = arith.constant dense<0xFF800000> : vector<16xf32>
    %190 = vector.multi_reduction <maximumf>, %189, %cst_85 [1] : vector<16x32xf32> to vector<16xf32>
    %191 = vector.shape_cast %190 : vector<16xf32> to vector<16x1xf32>
    %192 = vector.broadcast %191 : vector<16x1xf32> to vector<16x32xf32>
    %193 = arith.subf %189, %192 : vector<16x32xf32>
    %194 = math.exp %193 : vector<16x32xf32>
    %cst_86 = arith.constant dense<0.000000e+00> : vector<16xf32>
    %195 = vector.multi_reduction <add>, %194, %cst_86 [1] : vector<16x32xf32> to vector<16xf32>
    %196 = vector.shape_cast %195 : vector<16xf32> to vector<16x1xf32>
    %197 = vector.broadcast %196 : vector<16x1xf32> to vector<16x32xf32>
    %198 = arith.divf %194, %197 : vector<16x32xf32>
    %199 = vector.extract_strided_slice %168 {offsets = [0, 8], sizes = [32, 8], strides = [1, 1]} : vector<32x32xf32> to vector<32x8xf32>
    %cst_87 = arith.constant dense<0.000000e+00> : vector<16x8xf32>
    %200 = tpu.matmul %198, %199, %cst_87 {dimension_numbers = #tpu.dot_dimension_numbers<[1], [0], [0], [1], [0, 0, 1, 1], [], []>} : vector<16x32xf32>, vector<32x8xf32>, vector<16x8xf32> -> vector<16x8xf32>
    %201 = vector.extract_strided_slice %157 {offsets = [0, 16], sizes = [16, 8], strides = [1, 1]} : vector<16x32xf32> to vector<16x8xf32>
    %202 = vector.extract_strided_slice %163 {offsets = [0, 16], sizes = [32, 8], strides = [1, 1]} : vector<32x32xf32> to vector<32x8xf32>
    %cst_88 = arith.constant dense<0.000000e+00> : vector<16x32xf32>
    %203 = tpu.matmul %201, %202, %cst_88 {dimension_numbers = #tpu.dot_dimension_numbers<[1], [1], [0], [0], [0, 0, 1, 0], [], []>} : vector<16x8xf32>, vector<32x8xf32>, vector<16x32xf32> -> vector<16x32xf32>
    %204 = arith.addf %203, %23 : vector<16x32xf32>
    %cst_89 = arith.constant dense<0xFF800000> : vector<16xf32>
    %205 = vector.multi_reduction <maximumf>, %204, %cst_89 [1] : vector<16x32xf32> to vector<16xf32>
    %206 = vector.shape_cast %205 : vector<16xf32> to vector<16x1xf32>
    %207 = vector.broadcast %206 : vector<16x1xf32> to vector<16x32xf32>
    %208 = arith.subf %204, %207 : vector<16x32xf32>
    %209 = math.exp %208 : vector<16x32xf32>
    %cst_90 = arith.constant dense<0.000000e+00> : vector<16xf32>
    %210 = vector.multi_reduction <add>, %209, %cst_90 [1] : vector<16x32xf32> to vector<16xf32>
    %211 = vector.shape_cast %210 : vector<16xf32> to vector<16x1xf32>
    %212 = vector.broadcast %211 : vector<16x1xf32> to vector<16x32xf32>
    %213 = arith.divf %209, %212 : vector<16x32xf32>
    %214 = vector.extract_strided_slice %168 {offsets = [0, 16], sizes = [32, 8], strides = [1, 1]} : vector<32x32xf32> to vector<32x8xf32>
    %cst_91 = arith.constant dense<0.000000e+00> : vector<16x8xf32>
    %215 = tpu.matmul %213, %214, %cst_91 {dimension_numbers = #tpu.dot_dimension_numbers<[1], [0], [0], [1], [0, 0, 1, 1], [], []>} : vector<16x32xf32>, vector<32x8xf32>, vector<16x8xf32> -> vector<16x8xf32>
    %216 = vector.extract_strided_slice %157 {offsets = [0, 24], sizes = [16, 8], strides = [1, 1]} : vector<16x32xf32> to vector<16x8xf32>
    %217 = vector.extract_strided_slice %163 {offsets = [0, 24], sizes = [32, 8], strides = [1, 1]} : vector<32x32xf32> to vector<32x8xf32>
    %cst_92 = arith.constant dense<0.000000e+00> : vector<16x32xf32>
    %218 = tpu.matmul %216, %217, %cst_92 {dimension_numbers = #tpu.dot_dimension_numbers<[1], [1], [0], [0], [0, 0, 1, 0], [], []>} : vector<16x8xf32>, vector<32x8xf32>, vector<16x32xf32> -> vector<16x32xf32>
    %219 = arith.addf %218, %23 : vector<16x32xf32>
    %cst_93 = arith.constant dense<0xFF800000> : vector<16xf32>
    %220 = vector.multi_reduction <maximumf>, %219, %cst_93 [1] : vector<16x32xf32> to vector<16xf32>
    %221 = vector.shape_cast %220 : vector<16xf32> to vector<16x1xf32>
    %222 = vector.broadcast %221 : vector<16x1xf32> to vector<16x32xf32>
    %223 = arith.subf %219, %222 : vector<16x32xf32>
    %224 = math.exp %223 : vector<16x32xf32>
    %cst_94 = arith.constant dense<0.000000e+00> : vector<16xf32>
    %225 = vector.multi_reduction <add>, %224, %cst_94 [1] : vector<16x32xf32> to vector<16xf32>
    %226 = vector.shape_cast %225 : vector<16xf32> to vector<16x1xf32>
    %227 = vector.broadcast %226 : vector<16x1xf32> to vector<16x32xf32>
    %228 = arith.divf %224, %227 : vector<16x32xf32>
    %229 = vector.extract_strided_slice %168 {offsets = [0, 24], sizes = [32, 8], strides = [1, 1]} : vector<32x32xf32> to vector<32x8xf32>
    %cst_95 = arith.constant dense<0.000000e+00> : vector<16x8xf32>
    %230 = tpu.matmul %228, %229, %cst_95 {dimension_numbers = #tpu.dot_dimension_numbers<[1], [0], [0], [1], [0, 0, 1, 1], [], []>} : vector<16x32xf32>, vector<32x8xf32>, vector<16x8xf32> -> vector<16x8xf32>
    %231 = tpu.concatenate %185, %200, %215, %230 in 1 : vector<16x8xf32>, vector<16x8xf32>, vector<16x8xf32>, vector<16x8xf32> -> vector<16x32xf32>
    %cst_96 = arith.constant dense<0.000000e+00> : vector<16x32xf32>
    %232 = tpu.matmul %231, %169, %cst_96 {dimension_numbers = #tpu.dot_dimension_numbers<[1], [0], [0], [1], [0, 0, 1, 1], [], []>} : vector<16x32xf32>, vector<32x32xf32>, vector<16x32xf32> -> vector<16x32xf32>
    %233 = vector.broadcast %170 : vector<1x32xf32> to vector<16x32xf32>
    %234 = arith.addf %232, %233 : vector<16x32xf32>
    %235 = arith.addf %127, %234 : vector<16x32xf32>
    %c0_97 = arith.constant 0 : index
    %c0_98 = arith.constant 0 : index
    %236 = vector.load %arg22[%c0_97, %c0_98] : memref<1x32xf32, #tpu.memory_space<vmem>>, vector<1x32xf32>
    %c0_99 = arith.constant 0 : index
    %c0_100 = arith.constant 0 : index
    %237 = vector.load %arg23[%c0_99, %c0_100] : memref<1x32xf32, #tpu.memory_space<vmem>>, vector<1x32xf32>
    %cst_101 = arith.constant dense<0.000000e+00> : vector<16xf32>
    %238 = vector.multi_reduction <add>, %235, %cst_101 [1] : vector<16x32xf32> to vector<16xf32>
    %239 = vector.shape_cast %238 : vector<16xf32> to vector<16x1xf32>
    %cst_102 = arith.constant 3.200000e+01 : f32
    %240 = vector.broadcast %cst_102 : f32 to vector<16x1xf32>
    %241 = arith.divf %239, %240 : vector<16x1xf32>
    %242 = vector.broadcast %241 : vector<16x1xf32> to vector<16x32xf32>
    %243 = arith.subf %235, %242 : vector<16x32xf32>
    %244 = arith.mulf %243, %243 : vector<16x32xf32>
    %cst_103 = arith.constant dense<0.000000e+00> : vector<16xf32>
    %245 = vector.multi_reduction <add>, %244, %cst_103 [1] : vector<16x32xf32> to vector<16xf32>
    %246 = vector.shape_cast %245 : vector<16xf32> to vector<16x1xf32>
    %cst_104 = arith.constant 3.200000e+01 : f32
    %247 = vector.broadcast %cst_104 : f32 to vector<16x1xf32>
    %248 = arith.divf %246, %247 : vector<16x1xf32>
    %249 = vector.broadcast %241 : vector<16x1xf32> to vector<16x32xf32>
    %250 = arith.subf %235, %249 : vector<16x32xf32>
    %cst_105 = arith.constant 9.99999974E-6 : f32
    %251 = vector.broadcast %cst_105 : f32 to vector<16x1xf32>
    %252 = arith.addf %248, %251 : vector<16x1xf32>
    %253 = math.rsqrt %252 : vector<16x1xf32>
    %254 = vector.broadcast %253 : vector<16x1xf32> to vector<16x32xf32>
    %255 = arith.mulf %250, %254 : vector<16x32xf32>
    %256 = vector.broadcast %236 : vector<1x32xf32> to vector<16x32xf32>
    %257 = arith.mulf %255, %256 : vector<16x32xf32>
    %258 = vector.broadcast %237 : vector<1x32xf32> to vector<16x32xf32>
    %259 = arith.addf %257, %258 : vector<16x32xf32>
    %c0_106 = arith.constant 0 : index
    %c0_107 = arith.constant 0 : index
    %260 = vector.load %arg24[%c0_106, %c0_107] : memref<32x64xf32, #tpu.memory_space<vmem>>, vector<32x64xf32>
    %cst_108 = arith.constant dense<0.000000e+00> : vector<16x64xf32>
    %261 = tpu.matmul %259, %260, %cst_108 {dimension_numbers = #tpu.dot_dimension_numbers<[1], [0], [0], [1], [0, 0, 1, 1], [], []>} : vector<16x32xf32>, vector<32x64xf32>, vector<16x64xf32> -> vector<16x64xf32>
    %c0_109 = arith.constant 0 : index
    %c0_110 = arith.constant 0 : index
    %262 = vector.load %arg25[%c0_109, %c0_110] : memref<1x64xf32, #tpu.memory_space<vmem>>, vector<1x64xf32>
    %263 = vector.broadcast %262 : vector<1x64xf32> to vector<16x64xf32>
    %264 = arith.addf %261, %263 : vector<16x64xf32>
    %cst_111 = arith.constant 0.000000e+00 : f32
    %265 = vector.broadcast %cst_111 : f32 to vector<16x64xf32>
    %266 = arith.maximumf %264, %265 : vector<16x64xf32>
    %c0_112 = arith.constant 0 : index
    %c0_113 = arith.constant 0 : index
    %267 = vector.load %arg26[%c0_112, %c0_113] : memref<64x32xf32, #tpu.memory_space<vmem>>, vector<64x32xf32>
    %cst_114 = arith.constant dense<0.000000e+00> : vector<16x32xf32>
    %268 = tpu.matmul %266, %267, %cst_114 {dimension_numbers = #tpu.dot_dimension_numbers<[1], [0], [0], [1], [0, 0, 1, 1], [], []>} : vector<16x64xf32>, vector<64x32xf32>, vector<16x32xf32> -> vector<16x32xf32>
    %c0_115 = arith.constant 0 : index
    %c0_116 = arith.constant 0 : index
    %269 = vector.load %arg27[%c0_115, %c0_116] : memref<1x32xf32, #tpu.memory_space<vmem>>, vector<1x32xf32>
    %270 = vector.broadcast %269 : vector<1x32xf32> to vector<16x32xf32>
    %271 = arith.addf %268, %270 : vector<16x32xf32>
    %272 = arith.addf %235, %271 : vector<16x32xf32>
    %c0_117 = arith.constant 0 : index
    %c0_118 = arith.constant 0 : index
    %273 = vector.load %arg28[%c0_117, %c0_118] : memref<16x32xf32, #tpu.memory_space<vmem>>, vector<16x32xf32>
    tpu.vector_store %arg28[%c0_117, %c0_118], %272 {strides = array<i32>} : memref<16x32xf32, #tpu.memory_space<vmem>>, vector<16x32xf32>,
    return
  }
}

</mosaic_0001>

<llo_original>
// kernel: transformer_decoder_layer.1
$region0: #{transformer_decoder_layer.1}
  #allocation0 [shape = 'u32[]', space=smem, size = 0x4, offset = 0x4, fixed_abs, tag = 'smem constant byte address 0x4 - core index']
  #allocation1 [shape = 'u32[144,128]{1,0:T(1,128)}', space=vmem, size = 0x12000, scoped, tag = 'internal scratch']
  %s0 = inlined_call_operand.hbm [shape: f32[16,32], index: 0, kind: input, shape index: {}]
  %s1 = inlined_call_operand.vmem [shape: f32[32,32], index: 1, kind: input, shape index: {}]
  %s2 = inlined_call_operand.hbm [shape: f32[16,32], index: 2, kind: input, shape index: {}]
  %s3 = inlined_call_operand.vmem [shape: f32[32,32], index: 3, kind: input, shape index: {}]
  %s4 = inlined_call_operand.vmem [shape: f32[32,64], index: 4, kind: input, shape index: {}]
  %s5 = inlined_call_operand.vmem [shape: f32[1,64], index: 5, kind: input, shape index: {}]
  %s6 = inlined_call_operand.vmem [shape: f32[32,32], index: 6, kind: input, shape index: {}]
  %s7 = inlined_call_operand.vmem [shape: f32[1,32], index: 7, kind: input, shape index: {}]
  %s8 = inlined_call_operand.vmem [shape: f32[32,32], index: 8, kind: input, shape index: {}]
  %s9 = inlined_call_operand.hbm [shape: f32[1,32], index: 9, kind: input, shape index: {}]
  %s10 = inlined_call_operand.hbm [shape: f32[32,32], index: 10, kind: input, shape index: {}]
  %s11 = inlined_call_operand.hbm [shape: f32[1,32], index: 11, kind: input, shape index: {}]
  %s12 = inlined_call_operand.hbm [shape: f32[32,32], index: 12, kind: input, shape index: {}]
  %s13 = inlined_call_operand.hbm [shape: f32[1,32], index: 13, kind: input, shape index: {}]
  %s14 = inlined_call_operand.hbm [shape: f32[32,32], index: 14, kind: input, shape index: {}]
  %s15 = inlined_call_operand.hbm [shape: f32[1,32], index: 15, kind: input, shape index: {}]
  %s16 = inlined_call_operand.hbm [shape: f32[32,32], index: 16, kind: input, shape index: {}]
  %s17 = inlined_call_operand.hbm [shape: f32[1,32], index: 17, kind: input, shape index: {}]
  %s18 = inlined_call_operand.hbm [shape: f32[1,32], index: 18, kind: input, shape index: {}]
  %s19 = inlined_call_operand.hbm [shape: f32[1,32], index: 19, kind: input, shape index: {}]
  %s20 = inlined_call_operand.hbm [shape: f32[1,32], index: 20, kind: input, shape index: {}]
  %s21 = inlined_call_operand.hbm [shape: f32[1,32], index: 21, kind: input, shape index: {}]
  %s22 = inlined_call_operand.hbm [shape: f32[1,32], index: 22, kind: input, shape index: {}]
  %s23 = inlined_call_operand.hbm [shape: f32[1,32], index: 23, kind: input, shape index: {}]
  %s24 = inlined_call_operand.hbm [shape: f32[32,64], index: 24, kind: input, shape index: {}]
  %s25 = inlined_call_operand.hbm [shape: f32[1,64], index: 25, kind: input, shape index: {}]
  %s26 = inlined_call_operand.vmem [shape: f32[64,32], index: 26, kind: input, shape index: {}]
  %s27 = inlined_call_operand.hbm [shape: f32[1,32], index: 27, kind: input, shape index: {}]
  %s28 = inlined_call_operand.hbm [shape: f32[16,32], index: 28, kind: output, shape index: {}]
  %s29 = sld [smem:[#allocation0]]
  $region202: #{transformer_decoder_layer.1} parent=0
    _
  %s31 = ssub.s32 1, %s29
  %s32 = scalar_select 0, %s31, %s29
  $region1: #{transformer_decoder_layer.1} parent=0
    #allocation2 [shape = 'u8[8192]{0}', space=vmem, size = 0x2000, scoped, tag = 'input window, operand 0, single buffered']
    #allocation3 [shape = 's32[1]{0}', space=sflag, size = 0x4, scoped, tag = 'scoped memory for transformer_decoder_layer.1']
    #allocation4 [shape = 's32[1]{0}', space=sflag, size = 0x4, scoped, tag = 'scoped memory for transformer_decoder_layer.1']
    #allocation5 [shape = 'u8[8192]{0}', space=vmem, size = 0x2000, scoped, tag = 'input window, operand 2, single buffered']
    #allocation6 [shape = 's32[1]{0}', space=sflag, size = 0x4, scoped, tag = 'scoped memory for transformer_decoder_layer.1']
    #allocation7 [shape = 'u8[512]{0}', space=vmem, size = 0x400, scoped, tag = 'input window, operand 9, single buffered']
    #allocation8 [shape = 'u8[16384]{0}', space=vmem, size = 0x4000, scoped, tag = 'input window, operand 10, single buffered']
    #allocation9 [shape = 's32[1]{0}', space=sflag, size = 0x4, scoped, tag = 'scoped memory for transformer_decoder_layer.1']
    #allocation10 [shape = 'u8[512]{0}', space=vmem, size = 0x400, scoped, tag = 'input window, operand 11, single buffered']
    #allocation11 [shape = 'u8[16384]{0}', space=vmem, size = 0x4000, scoped, tag = 'input window, operand 12, single buffered']
    #allocation12 [shape = 's32[1]{0}', space=sflag, size = 0x4, scoped, tag = 'scoped memory for transformer_decoder_layer.1']
    #allocation13 [shape = 'u8[512]{0}', space=vmem, size = 0x400, scoped, tag = 'input window, operand 13, single buffered']
    #allocation14 [shape = 'u8[16384]{0}', space=vmem, size = 0x4000, scoped, tag = 'input window, operand 14, single buffered']
    #allocation15 [shape = 's32[1]{0}', space=sflag, size = 0x4, scoped, tag = 'scoped memory for transformer_decoder_layer.1']
    #allocation16 [shape = 'u8[512]{0}', space=vmem, size = 0x400, scoped, tag = 'input window, operand 15, single buffered']
    #allocation17 [shape = 'u8[16384]{0}', space=vmem, size = 0x4000, scoped, tag = 'input window, operand 16, single buffered']
    #allocation18 [shape = 's32[1]{0}', space=sflag, size = 0x4, scoped, tag = 'scoped memory for transformer_decoder_layer.1']
    #allocation19 [shape = 'u8[512]{0}', space=vmem, size = 0x400, scoped, tag = 'input window, operand 17, single buffered']
    #allocation20 [shape = 'u8[512]{0}', space=vmem, size = 0x400, scoped, tag = 'input window, operand 18, single buffered']
    #allocation21 [shape = 's32[1]{0}', space=sflag, size = 0x4, scoped, tag = 'scoped memory for transformer_decoder_layer.1']
    #allocation22 [shape = 'u8[512]{0}', space=vmem, size = 0x400, scoped, tag = 'input window, operand 19, single buffered']
    #allocation23 [shape = 'u8[512]{0}', space=vmem, size = 0x400, scoped, tag = 'input window, operand 20, single buffered']
    #allocation24 [shape = 's32[1]{0}', space=sflag, size = 0x4, scoped, tag = 'scoped memory for transformer_decoder_layer.1']
    #allocation25 [shape = 'u8[512]{0}', space=vmem, size = 0x400, scoped, tag = 'input window, operand 21, single buffered']
    #allocation26 [shape = 'u8[512]{0}', space=vmem, size = 0x400, scoped, tag = 'input window, operand 22, single buffered']
    #allocation27 [shape = 's32[1]{0}', space=sflag, size = 0x4, scoped, tag = 'scoped memory for transformer_decoder_layer.1']
    #allocation28 [shape = 'u8[512]{0}', space=vmem, size = 0x400, scoped, tag = 'input window, operand 23, single buffered']
    #allocation29 [shape = 'u8[16384]{0}', space=vmem, size = 0x4000, scoped, tag = 'input window, operand 24, single buffered']
    #allocation30 [shape = 's32[1]{0}', space=sflag, size = 0x4, scoped, tag = 'scoped memory for transformer_decoder_layer.1']
    #allocation31 [shape = 'u8[512]{0}', space=vmem, size = 0x400, scoped, tag = 'input window, operand 25, single buffered']
    #allocation32 [shape = 'u8[512]{0}', space=vmem, size = 0x400, scoped, tag = 'input window, operand 27, single buffered']
    #allocation33 [shape = 's32[1]{0}', space=sflag, size = 0x4, scoped, tag = 'scoped memory for transformer_decoder_layer.1']
    #allocation34 [shape = 'u8[8192]{0}', space=vmem, size = 0x2000, scoped, tag = 'output window, operand 0, single buffered']
    %33 = vsyncpa [#allocation3], 0
    %34 = vsyncpa [#allocation6], 0
    %35 = vsyncpa [#allocation9], 0
    %36 = vsyncpa [#allocation12], 0
    %37 = vsyncpa [#allocation15], 0
    %38 = vsyncpa [#allocation18], 0
    %39 = vsyncpa [#allocation21], 0
    %40 = vsyncpa [#allocation24], 0
    %41 = vsyncpa [#allocation27], 0
    %42 = vsyncpa [#allocation30], 0
    %43 = vsyncpa [#allocation33], 0
    %44 = vsyncpa [#allocation4], 0
    // Predicated region
    $region2: #{transformer_decoder_layer.1} parent=1 // pred_check
      _
    $region3: #{transformer_decoder_layer.1} parent=1 // pred_check_branch
      %46 = sbr.rel (0) target = $region5
    $region4: #{transformer_decoder_layer.1} parent=1 // pred_region
      %s48 = ssub.s32 256, 256
      %49 = vsyncadd [#allocation3], %s48
      %s50 = sshll.u32 [#allocation2], 4
      %s51 = int_to_ptr.vmem [resolvable:$true] %s50
      %56 = dma.hbm_to_vmem [thread:$0]  %s0, 256, %s51, [#allocation3], 128, 128, 8
    $region5: #{transformer_decoder_layer.1} parent=1 // pred_fallthru
      _
    // Predicated region
    $region6: #{transformer_decoder_layer.1} parent=1 // pred_check
      _
    $region7: #{transformer_decoder_layer.1} parent=1 // pred_check_branch
      %58 = sbr.rel (0) target = $region9
    $region8: #{transformer_decoder_layer.1} parent=1 // pred_region
      _
    $region9: #{transformer_decoder_layer.1} parent=1 // pred_fallthru
      _
    // Predicated region
    $region10: #{transformer_decoder_layer.1} parent=1 // pred_check
      _
    $region11: #{transformer_decoder_layer.1} parent=1 // pred_check_branch
      %60 = sbr.rel (0) target = $region13
    $region12: #{transformer_decoder_layer.1} parent=1 // pred_region
      %s62 = ssub.s32 256, 256
      %63 = vsyncadd [#allocation6], %s62
      %s64 = sshll.u32 [#allocation5], 4
      %s65 = int_to_ptr.vmem [resolvable:$true] %s64
      %70 = dma.hbm_to_vmem [thread:$0]  %s2, 256, %s65, [#allocation6], 128, 128, 8
    $region13: #{transformer_decoder_layer.1} parent=1 // pred_fallthru
      _
    // Predicated region
    $region14: #{transformer_decoder_layer.1} parent=1 // pred_check
      _
    $region15: #{transformer_decoder_layer.1} parent=1 // pred_check_branch
      %72 = sbr.rel (0) target = $region17
    $region16: #{transformer_decoder_layer.1} parent=1 // pred_region
      _
    $region17: #{transformer_decoder_layer.1} parent=1 // pred_fallthru
      _
    // Predicated region
    $region18: #{transformer_decoder_layer.1} parent=1 // pred_check
      _
    $region19: #{transformer_decoder_layer.1} parent=1 // pred_check_branch
      %74 = sbr.rel (0) target = $region21
    $region20: #{transformer_decoder_layer.1} parent=1 // pred_region
      _
    $region21: #{transformer_decoder_layer.1} parent=1 // pred_fallthru
      _
    // Predicated region
    $region22: #{transformer_decoder_layer.1} parent=1 // pred_check
      _
    $region23: #{transformer_decoder_layer.1} parent=1 // pred_check_branch
      %76 = sbr.rel (0) target = $region25
    $region24: #{transformer_decoder_layer.1} parent=1 // pred_region
      _
    $region25: #{transformer_decoder_layer.1} parent=1 // pred_fallthru
      _
    // Predicated region
    $region26: #{transformer_decoder_layer.1} parent=1 // pred_check
      _
    $region27: #{transformer_decoder_layer.1} parent=1 // pred_check_branch
      %78 = sbr.rel (0) target = $region29
    $region28: #{transformer_decoder_layer.1} parent=1 // pred_region
      _
    $region29: #{transformer_decoder_layer.1} parent=1 // pred_fallthru
      _
    // Predicated region
    $region30: #{transformer_decoder_layer.1} parent=1 // pred_check
      _
    $region31: #{transformer_decoder_layer.1} parent=1 // pred_check_branch
      %80 = sbr.rel (0) target = $region33
    $region32: #{transformer_decoder_layer.1} parent=1 // pred_region
      _
    $region33: #{transformer_decoder_layer.1} parent=1 // pred_fallthru
      _
    // Predicated region
    $region34: #{transformer_decoder_layer.1} parent=1 // pred_check
      _
    $region35: #{transformer_decoder_layer.1} parent=1 // pred_check_branch
      %82 = sbr.rel (0) target = $region37
    $region36: #{transformer_decoder_layer.1} parent=1 // pred_region
      _
    $region37: #{transformer_decoder_layer.1} parent=1 // pred_fallthru
      _
    // Predicated region
    $region38: #{transformer_decoder_layer.1} parent=1 // pred_check
      _
    $region39: #{transformer_decoder_layer.1} parent=1 // pred_check_branch
      %84 = sbr.rel (0) target = $region41
    $region40: #{transformer_decoder_layer.1} parent=1 // pred_region
      %s86 = ssub.s32 16, 16
      %87 = vsyncadd [#allocation6], %s86
      %s89 = sshll.u32 [#allocation7], 4
      %s90 = int_to_ptr.vmem [resolvable:$true] %s89
      %92 = dma.hbm_to_vmem [thread:$0]  %s9, 16, %s90, [#allocation6]
    $region41: #{transformer_decoder_layer.1} parent=1 // pred_fallthru
      _
    // Predicated region
    $region42: #{transformer_decoder_layer.1} parent=1 // pred_check
      _
    $region43: #{transformer_decoder_layer.1} parent=1 // pred_check_branch
      %94 = sbr.rel (0) target = $region45
    $region44: #{transformer_decoder_layer.1} parent=1 // pred_region
      %s96 = ssub.s32 512, 512
      %97 = vsyncadd [#allocation9], %s96
      %s98 = sshll.u32 [#allocation8], 4
      %s99 = int_to_ptr.vmem [resolvable:$true] %s98
      %104 = dma.hbm_to_vmem [thread:$0]  %s10, 512, %s99, [#allocation9], 128, 128, 8
    $region45: #{transformer_decoder_layer.1} parent=1 // pred_fallthru
      _
    // Predicated region
    $region46: #{transformer_decoder_layer.1} parent=1 // pred_check
      _
    $region47: #{transformer_decoder_layer.1} parent=1 // pred_check_branch
      %106 = sbr.rel (0) target = $region49
    $region48: #{transformer_decoder_layer.1} parent=1 // pred_region
      %s108 = ssub.s32 16, 16
      %109 = vsyncadd [#allocation9], %s108
      %s111 = sshll.u32 [#allocation10], 4
      %s112 = int_to_ptr.vmem [resolvable:$true] %s111
      %114 = dma.hbm_to_vmem [thread:$0]  %s11, 16, %s112, [#allocation9]
    $region49: #{transformer_decoder_layer.1} parent=1 // pred_fallthru
      _
    // Predicated region
    $region50: #{transformer_decoder_layer.1} parent=1 // pred_check
      _
    $region51: #{transformer_decoder_layer.1} parent=1 // pred_check_branch
      %116 = sbr.rel (0) target = $region53
    $region52: #{transformer_decoder_layer.1} parent=1 // pred_region
      %s118 = ssub.s32 512, 512
      %119 = vsyncadd [#allocation12], %s118
      %s120 = sshll.u32 [#allocation11], 4
      %s121 = int_to_ptr.vmem [resolvable:$true] %s120
      %126 = dma.hbm_to_vmem [thread:$0]  %s12, 512, %s121, [#allocation12], 128, 128, 8
    $region53: #{transformer_decoder_layer.1} parent=1 // pred_fallthru
      _
    // Predicated region
    $region54: #{transformer_decoder_layer.1} parent=1 // pred_check
      _
    $region55: #{transformer_decoder_layer.1} parent=1 // pred_check_branch
      %128 = sbr.rel (0) target = $region57
    $region56: #{transformer_decoder_layer.1} parent=1 // pred_region
      %s130 = ssub.s32 16, 16
      %131 = vsyncadd [#allocation12], %s130
      %s133 = sshll.u32 [#allocation13], 4
      %s134 = int_to_ptr.vmem [resolvable:$true] %s133
      %136 = dma.hbm_to_vmem [thread:$0]  %s13, 16, %s134, [#allocation12]
    $region57: #{transformer_decoder_layer.1} parent=1 // pred_fallthru
      _
    // Predicated region
    $region58: #{transformer_decoder_layer.1} parent=1 // pred_check
      _
    $region59: #{transformer_decoder_layer.1} parent=1 // pred_check_branch
      %138 = sbr.rel (0) target = $region61
    $region60: #{transformer_decoder_layer.1} parent=1 // pred_region
      %s140 = ssub.s32 512, 512
      %141 = vsyncadd [#allocation15], %s140
      %s142 = sshll.u32 [#allocation14], 4
      %s143 = int_to_ptr.vmem [resolvable:$true] %s142
      %148 = dma.hbm_to_vmem [thread:$0]  %s14, 512, %s143, [#allocation15], 128, 128, 8
    $region61: #{transformer_decoder_layer.1} parent=1 // pred_fallthru
      _
    // Predicated region
    $region62: #{transformer_decoder_layer.1} parent=1 // pred_check
      _
    $region63: #{transformer_decoder_layer.1} parent=1 // pred_check_branch
      %150 = sbr.rel (0) target = $region65
    $region64: #{transformer_decoder_layer.1} parent=1 // pred_region
      %s152 = ssub.s32 16, 16
      %153 = vsyncadd [#allocation15], %s152
      %s155 = sshll.u32 [#allocation16], 4
      %s156 = int_to_ptr.vmem [resolvable:$true] %s155
      %158 = dma.hbm_to_vmem [thread:$0]  %s15, 16, %s156, [#allocation15]
    $region65: #{transformer_decoder_layer.1} parent=1 // pred_fallthru
      _
    // Predicated region
    $region66: #{transformer_decoder_layer.1} parent=1 // pred_check
      _
    $region67: #{transformer_decoder_layer.1} parent=1 // pred_check_branch
      %160 = sbr.rel (0) target = $region69
    $region68: #{transformer_decoder_layer.1} parent=1 // pred_region
      %s162 = ssub.s32 512, 512
      %163 = vsyncadd [#allocation18], %s162
      %s164 = sshll.u32 [#allocation17], 4
      %s165 = int_to_ptr.vmem [resolvable:$true] %s164
      %170 = dma.hbm_to_vmem [thread:$0]  %s16, 512, %s165, [#allocation18], 128, 128, 8
    $region69: #{transformer_decoder_layer.1} parent=1 // pred_fallthru
      _
    // Predicated region
    $region70: #{transformer_decoder_layer.1} parent=1 // pred_check
      _
    $region71: #{transformer_decoder_layer.1} parent=1 // pred_check_branch
      %172 = sbr.rel (0) target = $region73
    $region72: #{transformer_decoder_layer.1} parent=1 // pred_region
      %s174 = ssub.s32 16, 16
      %175 = vsyncadd [#allocation18], %s174
      %s177 = sshll.u32 [#allocation19], 4
      %s178 = int_to_ptr.vmem [resolvable:$true] %s177
      %180 = dma.hbm_to_vmem [thread:$0]  %s17, 16, %s178, [#allocation18]
    $region73: #{transformer_decoder_layer.1} parent=1 // pred_fallthru
      _
    // Predicated region
    $region74: #{transformer_decoder_layer.1} parent=1 // pred_check
      _
    $region75: #{transformer_decoder_layer.1} parent=1 // pred_check_branch
      %182 = sbr.rel (0) target = $region77
    $region76: #{transformer_decoder_layer.1} parent=1 // pred_region
      %s184 = ssub.s32 16, 16
      %185 = vsyncadd [#allocation21], %s184
      %s187 = sshll.u32 [#allocation20], 4
      %s188 = int_to_ptr.vmem [resolvable:$true] %s187
      %190 = dma.hbm_to_vmem [thread:$0]  %s18, 16, %s188, [#allocation21]
    $region77: #{transformer_decoder_layer.1} parent=1 // pred_fallthru
      _
    // Predicated region
    $region78: #{transformer_decoder_layer.1} parent=1 // pred_check
      _
    $region79: #{transformer_decoder_layer.1} parent=1 // pred_check_branch
      %192 = sbr.rel (0) target = $region81
    $region80: #{transformer_decoder_layer.1} parent=1 // pred_region
      %s194 = ssub.s32 16, 16
      %195 = vsyncadd [#allocation21], %s194
      %s197 = sshll.u32 [#allocation22], 4
      %s198 = int_to_ptr.vmem [resolvable:$true] %s197
      %200 = dma.hbm_to_vmem [thread:$0]  %s19, 16, %s198, [#allocation21]
    $region81: #{transformer_decoder_layer.1} parent=1 // pred_fallthru
      _
    // Predicated region
    $region82: #{transformer_decoder_layer.1} parent=1 // pred_check
      _
    $region83: #{transformer_decoder_layer.1} parent=1 // pred_check_branch
      %202 = sbr.rel (0) target = $region85
    $region84: #{transformer_decoder_layer.1} parent=1 // pred_region
      %s204 = ssub.s32 16, 16
      %205 = vsyncadd [#allocation24], %s204
      %s207 = sshll.u32 [#allocation23], 4
      %s208 = int_to_ptr.vmem [resolvable:$true] %s207
      %210 = dma.hbm_to_vmem [thread:$0]  %s20, 16, %s208, [#allocation24]
    $region85: #{transformer_decoder_layer.1} parent=1 // pred_fallthru
      _
    // Predicated region
    $region86: #{transformer_decoder_layer.1} parent=1 // pred_check
      _
    $region87: #{transformer_decoder_layer.1} parent=1 // pred_check_branch
      %212 = sbr.rel (0) target = $region89
    $region88: #{transformer_decoder_layer.1} parent=1 // pred_region
      %s214 = ssub.s32 16, 16
      %215 = vsyncadd [#allocation24], %s214
      %s217 = sshll.u32 [#allocation25], 4
      %s218 = int_to_ptr.vmem [resolvable:$true] %s217
      %220 = dma.hbm_to_vmem [thread:$0]  %s21, 16, %s218, [#allocation24]
    $region89: #{transformer_decoder_layer.1} parent=1 // pred_fallthru
      _
    // Predicated region
    $region90: #{transformer_decoder_layer.1} parent=1 // pred_check
      _
    $region91: #{transformer_decoder_layer.1} parent=1 // pred_check_branch
      %222 = sbr.rel (0) target = $region93
    $region92: #{transformer_decoder_layer.1} parent=1 // pred_region
      %s224 = ssub.s32 16, 16
      %225 = vsyncadd [#allocation27], %s224
      %s227 = sshll.u32 [#allocation26], 4
      %s228 = int_to_ptr.vmem [resolvable:$true] %s227
      %230 = dma.hbm_to_vmem [thread:$0]  %s22, 16, %s228, [#allocation27]
    $region93: #{transformer_decoder_layer.1} parent=1 // pred_fallthru
      _
    // Predicated region
    $region94: #{transformer_decoder_layer.1} parent=1 // pred_check
      _
    $region95: #{transformer_decoder_layer.1} parent=1 // pred_check_branch
      %232 = sbr.rel (0) target = $region97
    $region96: #{transformer_decoder_layer.1} parent=1 // pred_region
      %s234 = ssub.s32 16, 16
      %235 = vsyncadd [#allocation27], %s234
      %s237 = sshll.u32 [#allocation28], 4
      %s238 = int_to_ptr.vmem [resolvable:$true] %s237
      %240 = dma.hbm_to_vmem [thread:$0]  %s23, 16, %s238, [#allocation27]
    $region97: #{transformer_decoder_layer.1} parent=1 // pred_fallthru
      _
    // Predicated region
    $region98: #{transformer_decoder_layer.1} parent=1 // pred_check
      _
    $region99: #{transformer_decoder_layer.1} parent=1 // pred_check_branch
      %242 = sbr.rel (0) target = $region101
    $region100: #{transformer_decoder_layer.1} parent=1 // pred_region
      %s244 = ssub.s32 512, 512
      %245 = vsyncadd [#allocation30], %s244
      %s246 = sshll.u32 [#allocation29], 4
      %s247 = int_to_ptr.vmem [resolvable:$true] %s246
      %252 = dma.hbm_to_vmem [thread:$0]  %s24, 512, %s247, [#allocation30], 128, 128, 8
    $region101: #{transformer_decoder_layer.1} parent=1 // pred_fallthru
      _
    // Predicated region
    $region102: #{transformer_decoder_layer.1} parent=1 // pred_check
      _
    $region103: #{transformer_decoder_layer.1} parent=1 // pred_check_branch
      %254 = sbr.rel (0) target = $region105
    $region104: #{transformer_decoder_layer.1} parent=1 // pred_region
      %s256 = ssub.s32 16, 16
      %257 = vsyncadd [#allocation30], %s256
      %s259 = sshll.u32 [#allocation31], 4
      %s260 = int_to_ptr.vmem [resolvable:$true] %s259
      %262 = dma.hbm_to_vmem [thread:$0]  %s25, 16, %s260, [#allocation30]
    $region105: #{transformer_decoder_layer.1} parent=1 // pred_fallthru
      _
    // Predicated region
    $region106: #{transformer_decoder_layer.1} parent=1 // pred_check
      _
    $region107: #{transformer_decoder_layer.1} parent=1 // pred_check_branch
      %264 = sbr.rel (0) target = $region109
    $region108: #{transformer_decoder_layer.1} parent=1 // pred_region
      _
    $region109: #{transformer_decoder_layer.1} parent=1 // pred_fallthru
      _
    // Predicated region
    $region110: #{transformer_decoder_layer.1} parent=1 // pred_check
      _
    $region111: #{transformer_decoder_layer.1} parent=1 // pred_check_branch
      %266 = sbr.rel (0) target = $region113
    $region112: #{transformer_decoder_layer.1} parent=1 // pred_region
      %s268 = ssub.s32 16, 16
      %269 = vsyncadd [#allocation33], %s268
      %s271 = sshll.u32 [#allocation32], 4
      %s272 = int_to_ptr.vmem [resolvable:$true] %s271
      %274 = dma.hbm_to_vmem [thread:$0]  %s27, 16, %s272, [#allocation33]
    $region113: #{transformer_decoder_layer.1} parent=1 // pred_fallthru
      _
    // Predicated region
    $region114: #{transformer_decoder_layer.1} parent=1 // pred_check
      _
    $region115: #{transformer_decoder_layer.1} parent=1 // pred_check_branch
      %276 = sbr.rel (0) target = $region117
    $region116: #{transformer_decoder_layer.1} parent=1 // pred_region
      %277 = dma.done [#allocation3], 256
    $region117: #{transformer_decoder_layer.1} parent=1 // pred_fallthru
      _
    // Predicated region
    $region118: #{transformer_decoder_layer.1} parent=1 // pred_check
      _
    $region119: #{transformer_decoder_layer.1} parent=1 // pred_check_branch
      %279 = sbr.rel (0) target = $region121
    $region120: #{transformer_decoder_layer.1} parent=1 // pred_region
      %280 = dma.done [#allocation6], 256
    $region121: #{transformer_decoder_layer.1} parent=1 // pred_fallthru
      _
    // Predicated region
    $region122: #{transformer_decoder_layer.1} parent=1 // pred_check
      _
    $region123: #{transformer_decoder_layer.1} parent=1 // pred_check_branch
      %282 = sbr.rel (0) target = $region125
    $region124: #{transformer_decoder_layer.1} parent=1 // pred_region
      %283 = dma.done [#allocation6], 16
    $region125: #{transformer_decoder_layer.1} parent=1 // pred_fallthru
      _
    // Predicated region
    $region126: #{transformer_decoder_layer.1} parent=1 // pred_check
      _
    $region127: #{transformer_decoder_layer.1} parent=1 // pred_check_branch
      %285 = sbr.rel (0) target = $region129
    $region128: #{transformer_decoder_layer.1} parent=1 // pred_region
      %286 = dma.done [#allocation9], 512
    $region129: #{transformer_decoder_layer.1} parent=1 // pred_fallthru
      _
    // Predicated region
    $region130: #{transformer_decoder_layer.1} parent=1 // pred_check
      _
    $region131: #{transformer_decoder_layer.1} parent=1 // pred_check_branch
      %288 = sbr.rel (0) target = $region133
    $region132: #{transformer_decoder_layer.1} parent=1 // pred_region
      %289 = dma.done [#allocation9], 16
    $region133: #{transformer_decoder_layer.1} parent=1 // pred_fallthru
      _
    // Predicated region
    $region134: #{transformer_decoder_layer.1} parent=1 // pred_check
      _
    $region135: #{transformer_decoder_layer.1} parent=1 // pred_check_branch
      %291 = sbr.rel (0) target = $region137
    $region136: #{transformer_decoder_layer.1} parent=1 // pred_region
      %292 = dma.done [#allocation12], 512
    $region137: #{transformer_decoder_layer.1} parent=1 // pred_fallthru
      _
    // Predicated region
    $region138: #{transformer_decoder_layer.1} parent=1 // pred_check
      _
    $region139: #{transformer_decoder_layer.1} parent=1 // pred_check_branch
      %294 = sbr.rel (0) target = $region141
    $region140: #{transformer_decoder_layer.1} parent=1 // pred_region
      %295 = dma.done [#allocation12], 16
    $region141: #{transformer_decoder_layer.1} parent=1 // pred_fallthru
      _
    // Predicated region
    $region142: #{transformer_decoder_layer.1} parent=1 // pred_check
      _
    $region143: #{transformer_decoder_layer.1} parent=1 // pred_check_branch
      %297 = sbr.rel (0) target = $region145
    $region144: #{transformer_decoder_layer.1} parent=1 // pred_region
      %298 = dma.done [#allocation15], 512
    $region145: #{transformer_decoder_layer.1} parent=1 // pred_fallthru
      _
    // Predicated region
    $region146: #{transformer_decoder_layer.1} parent=1 // pred_check
      _
    $region147: #{transformer_decoder_layer.1} parent=1 // pred_check_branch
      %300 = sbr.rel (0) target = $region149
    $region148: #{transformer_decoder_layer.1} parent=1 // pred_region
      %301 = dma.done [#allocation15], 16
    $region149: #{transformer_decoder_layer.1} parent=1 // pred_fallthru
      _
    // Predicated region
    $region150: #{transformer_decoder_layer.1} parent=1 // pred_check
      _
    $region151: #{transformer_decoder_layer.1} parent=1 // pred_check_branch
      %303 = sbr.rel (0) target = $region153
    $region152: #{transformer_decoder_layer.1} parent=1 // pred_region
      %304 = dma.done [#allocation18], 512
    $region153: #{transformer_decoder_layer.1} parent=1 // pred_fallthru
      _
    // Predicated region
    $region154: #{transformer_decoder_layer.1} parent=1 // pred_check
      _
    $region155: #{transformer_decoder_layer.1} parent=1 // pred_check_branch
      %306 = sbr.rel (0) target = $region157
    $region156: #{transformer_decoder_layer.1} parent=1 // pred_region
      %307 = dma.done [#allocation18], 16
    $region157: #{transformer_decoder_layer.1} parent=1 // pred_fallthru
      _
    // Predicated region
    $region158: #{transformer_decoder_layer.1} parent=1 // pred_check
      _
    $region159: #{transformer_decoder_layer.1} parent=1 // pred_check_branch
      %309 = sbr.rel (0) target = $region161
    $region160: #{transformer_decoder_layer.1} parent=1 // pred_region
      %310 = dma.done [#allocation21], 16
    $region161: #{transformer_decoder_layer.1} parent=1 // pred_fallthru
      _
    // Predicated region
    $region162: #{transformer_decoder_layer.1} parent=1 // pred_check
      _
    $region163: #{transformer_decoder_layer.1} parent=1 // pred_check_branch
      %312 = sbr.rel (0) target = $region165
    $region164: #{transformer_decoder_layer.1} parent=1 // pred_region
      %313 = dma.done [#allocation21], 16
    $region165: #{transformer_decoder_layer.1} parent=1 // pred_fallthru
      _
    // Predicated region
    $region166: #{transformer_decoder_layer.1} parent=1 // pred_check
      _
    $region167: #{transformer_decoder_layer.1} parent=1 // pred_check_branch
      %315 = sbr.rel (0) target = $region169
    $region168: #{transformer_decoder_layer.1} parent=1 // pred_region
      %316 = dma.done [#allocation24], 16
    $region169: #{transformer_decoder_layer.1} parent=1 // pred_fallthru
      _
    // Predicated region
    $region170: #{transformer_decoder_layer.1} parent=1 // pred_check
      _
    $region171: #{transformer_decoder_layer.1} parent=1 // pred_check_branch
      %318 = sbr.rel (0) target = $region173
    $region172: #{transformer_decoder_layer.1} parent=1 // pred_region
      %319 = dma.done [#allocation24], 16
    $region173: #{transformer_decoder_layer.1} parent=1 // pred_fallthru
      _
    // Predicated region
    $region174: #{transformer_decoder_layer.1} parent=1 // pred_check
      _
    $region175: #{transformer_decoder_layer.1} parent=1 // pred_check_branch
      %321 = sbr.rel (0) target = $region177
    $region176: #{transformer_decoder_layer.1} parent=1 // pred_region
      %322 = dma.done [#allocation27], 16
    $region177: #{transformer_decoder_layer.1} parent=1 // pred_fallthru
      _
    // Predicated region
    $region178: #{transformer_decoder_layer.1} parent=1 // pred_check
      _
    $region179: #{transformer_decoder_layer.1} parent=1 // pred_check_branch
      %324 = sbr.rel (0) target = $region181
    $region180: #{transformer_decoder_layer.1} parent=1 // pred_region
      %325 = dma.done [#allocation27], 16
    $region181: #{transformer_decoder_layer.1} parent=1 // pred_fallthru
      _
    // Predicated region
    $region182: #{transformer_decoder_layer.1} parent=1 // pred_check
      _
    $region183: #{transformer_decoder_layer.1} parent=1 // pred_check_branch
      %327 = sbr.rel (0) target = $region185
    $region184: #{transformer_decoder_layer.1} parent=1 // pred_region
      %328 = dma.done [#allocation30], 512
    $region185: #{transformer_decoder_layer.1} parent=1 // pred_fallthru
      _
    // Predicated region
    $region186: #{transformer_decoder_layer.1} parent=1 // pred_check
      _
    $region187: #{transformer_decoder_layer.1} parent=1 // pred_check_branch
      %330 = sbr.rel (0) target = $region189
    $region188: #{transformer_decoder_layer.1} parent=1 // pred_region
      %331 = dma.done [#allocation30], 16
    $region189: #{transformer_decoder_layer.1} parent=1 // pred_fallthru
      _
    // Predicated region
    $region190: #{transformer_decoder_layer.1} parent=1 // pred_check
      _
    $region191: #{transformer_decoder_layer.1} parent=1 // pred_check_branch
      %333 = sbr.rel (0) target = $region193
    $region192: #{transformer_decoder_layer.1} parent=1 // pred_region
      %334 = dma.done [#allocation33], 16
    $region193: #{transformer_decoder_layer.1} parent=1 // pred_fallthru
      _
    %v335 = vld [vmem:[#allocation2] sm:$0xff]
    %v336 = vld [vmem:[#allocation2 + $0x8] sm:$0xff]
    %v337 = vld [vmem:[%s1] sm:$0xff]
    %v338 = vld [vmem:[%s1 + $0x8] sm:$0xff]
    %v339 = vld [vmem:[%s1 + $0x10] sm:$0xff]
    %v340 = vld [vmem:[%s1 + $0x18] sm:$0xff]
    %v341 = vld [vmem:[#allocation5] sm:$0xff]
    %v342 = vld [vmem:[#allocation5 + $0x8] sm:$0xff]
    %v343 = vld [vmem:[%s3] sm:$0xff]
    %v344 = vld [vmem:[%s3 + $0x8] sm:$0xff]
    %v345 = vld [vmem:[%s3 + $0x10] sm:$0xff]
    %v346 = vld [vmem:[%s3 + $0x18] sm:$0xff]
    %v347 = vlaneseq
    %v348 = vshrl.u32 %v347, 7
    %v349 = vadd.s32 %v348, 8
    %v350 = vlaneseq
    %v351 = vand.u32 %v350, 127
    %v352 = vsub.s32 %v348, %v351
    %v353 = vsub.s32 %v349, %v351
    %v354 = vand.u32 %v352, 1
    %v355 = vand.u32 %v353, 1
    %vm356 = vcmp.eq.s32.totalorder %v354, 0
    %vm357 = vcmp.eq.s32.totalorder %v355, 0
    %v358 = vsel %vm356, 0.0, -1e+30
    %v359 = vsel %vm357, 0.0, -1e+30
    %v360 = vld [vmem:[#allocation20] sm:$0x1]
    %v361 = vld [vmem:[#allocation22] sm:$0x1]
    %vm362 = vcmask 261120
    %v363 = vsel %vm362, %v335, 0.0
    %364 = vadd.xlane.f32.xlu0 %v363
    %v365 = vpop.xlane.xlu0 %364
    %v366 = vsel %vm362, %v336, 0.0
    %367 = vadd.xlane.f32.xlu0 %v366
    %v368 = vpop.xlane.xlu0 %367
    %v369 = vrcp.pop 32.0
    %v370 = vmul.f32 %v365, %v369
    %v371 = vmul.f32 %v368, %v369
    %v372 = vsub.f32 %v335, %v370
    %v373 = vsub.f32 %v336, %v371
    %v374 = vmul.f32 %v372, %v372
    %v375 = vmul.f32 %v373, %v373
    %v376 = vsel %vm362, %v374, 0.0
    %377 = vadd.xlane.f32.xlu0 %v376
    %v378 = vpop.xlane.xlu0 %377
    %v379 = vsel %vm362, %v375, 0.0
    %380 = vadd.xlane.f32.xlu0 %v379
    %v381 = vpop.xlane.xlu0 %380
    %v382 = vmul.f32 %v378, %v369
    %v383 = vmul.f32 %v381, %v369
    %v384 = vadd.f32 %v382, 1e-05
    %v385 = vadd.f32 %v383, 1e-05
    %v386 = vrsqrt.pop %v384
    %v387 = vrsqrt.pop %v385
    %v388 = vmul.f32 %v372, %v386
    %v389 = vmul.f32 %v373, %v387
    %v391 = vlaneseq
    %v392 = vshrl.u32 %v391, 7
    %v393 = vsub.s32 0, %v392
    %v394 = vrot.slane %v360, %v393
    %v396 = vmul.f32 %v388, %v394
    %v397 = vmul.f32 %v389, %v394
    %v399 = vlaneseq
    %v400 = vshrl.u32 %v399, 7
    %v401 = vsub.s32 0, %v400
    %v402 = vrot.slane %v361, %v401
    %v404 = vadd.f32 %v396, %v402
    %v405 = vadd.f32 %v397, %v402
    %v406 = vadd.f32 %v404, %v341
    %v407 = vadd.f32 %v405, %v342
    %v408 = vld [vmem:[%s4] sm:$0xff]
    %v409 = vld [vmem:[%s4 + $0x8] sm:$0xff]
    %v410 = vld [vmem:[%s4 + $0x10] sm:$0xff]
    %v411 = vld [vmem:[%s4 + $0x18] sm:$0xff]
    %v412 = vld [vmem:[%s5] sm:$0x1]
    %v414 = vlaneseq
    %v415 = vshrl.u32 %v414, 7
    %v416 = vsub.s32 0, %v415
    %v417 = vrot.slane %v412, %v416
    %v420 = vsel %vm362, %v406, 0
    %v423 = vsel %vm362, %v407, 0
    %425 = vmatprep.subr.mxu0 0.0
    %426 = vmatpush1.msra.mxu0 %v408
    %427 = vmatprep.subr.mxu0 0.0
    %428 = vmatpush1.msra.mxu0 %v409
    %429 = vmatprep.subr.mxu0 0.0
    %430 = vmatpush1.msra.mxu0 %v410
    %431 = vmatprep.subr.mxu0 0.0
    %432 = vmatpush1.msra.mxu0 %v411
    %433 = vmatprep.subr.mxu0 0.0
    %434 = vmatpush1.msra.mxu0 0.0
    %435 = vmatprep.subr.mxu0 0.0
    %436 = vmatpush1.msra.mxu0 0.0
    %437 = vmatprep.subr.mxu0 0.0
    %438 = vmatpush1.msra.mxu0 0.0
    %439 = vmatprep.subr.mxu0 0.0
    %440 = vmatpush1.msra.mxu0 0.0
    %441 = vmatprep.subr.mxu0 0.0
    %442 = vmatpush1.msra.mxu0 0.0
    %443 = vmatprep.subr.mxu0 0.0
    %444 = vmatpush1.msra.mxu0 0.0
    %445 = vmatprep.subr.mxu0 0.0
    %446 = vmatpush1.msra.mxu0 0.0
    %447 = vmatprep.subr.mxu0 0.0
    %448 = vmatpush1.msra.mxu0 0.0
    %449 = vmatprep.subr.mxu0 0.0
    %450 = vmatpush1.msra.mxu0 0.0
    %451 = vmatprep.subr.mxu0 0.0
    %452 = vmatpush1.msra.mxu0 0.0
    %453 = vmatprep.subr.mxu0 0.0
    %454 = vmatpush1.msra.mxu0 0.0
    %455 = vmatprep.subr.mxu0 0.0
    %456 = vmatpush1.msra.mxu0 0.0
    %457 = vmatprep.subr.mxu0 0.0
    %458 = vmatpush1.msra.mxu0 0.0
    %459 = vmatprep.subr.mxu0 0.0
    %460 = vmatpush1.msra.mxu0 0.0
    %461 = vmatprep.subr.mxu0 0.0
    %462 = vmatpush1.msra.mxu0 0.0
    %463 = vmatprep.subr.mxu0 0.0
    %464 = vmatpush1.msra.mxu0 0.0
    %465 = vmatprep.subr.mxu0 0.0
    %466 = vmatpush1.msra.mxu0 0.0
    %467 = vmatprep.subr.mxu0 0.0
    %468 = vmatpush1.msra.mxu0 0.0
    %469 = vmatprep.subr.mxu0 0.0
    %470 = vmatpush1.msra.mxu0 0.0
    %471 = vmatprep.subr.mxu0 0.0
    %472 = vmatpush1.msra.mxu0 0.0
    %473 = vmatprep.subr.mxu0 0.0
    %474 = vmatpush1.msra.mxu0 0.0
    %475 = vmatprep.subr.mxu0 0.0
    %476 = vmatpush1.msra.mxu0 0.0
    %477 = vmatprep.subr.mxu0 0.0
    %478 = vmatpush1.msra.mxu0 0.0
    %479 = vmatprep.subr.mxu0 0.0
    %480 = vmatpush1.msra.mxu0 0.0
    %481 = vmatprep.subr.mxu0 0.0
    %482 = vmatpush1.msra.mxu0 0.0
    %483 = vmatprep.subr.mxu0 0.0
    %484 = vmatpush1.msra.mxu0 0.0
    %485 = vmatprep.subr.mxu0 0.0
    %486 = vmatpush1.msra.mxu0 0.0
    %487 = vmatprep.subr.mxu0 0.0
    %488 = vmatpush1.msra.mxu0 0.0
    %489 = vmatprep.mubr.f32.mxu0 0.0
    %490 = vmatmul.mubr.f32.gmra.mrb[0].mxu0 %v420
    %v491 = vpop.f32.mrb[0].mxu0
    %v492 = vadd.f32 %v417, %v491
    %v493 = vpop.f32.mrb[0].mxu0
    %494 = vmatprep.mubr.f32.mxu0 0.0
    %495 = vmatmul.mubr.f32.gmra.mrb[0].mxu0 %v423
    %v496 = vpop.f32.mrb[0].mxu0
    %v497 = vadd.f32 %v417, %v496
    %v498 = vpop.f32.mrb[0].mxu0
    %499 = vdwg.mxu0
    %v500 = vld [vmem:[%s6] sm:$0xff]
    %v501 = vld [vmem:[%s6 + $0x8] sm:$0xff]
    %v502 = vld [vmem:[%s6 + $0x10] sm:$0xff]
    %v503 = vld [vmem:[%s6 + $0x18] sm:$0xff]
    %v504 = vld [vmem:[%s7] sm:$0x1]
    %v506 = vlaneseq
    %v507 = vshrl.u32 %v506, 7
    %v508 = vsub.s32 0, %v507
    %v509 = vrot.slane %v504, %v508
    %v512 = vsel %vm362, %v404, 0
    %v515 = vsel %vm362, %v405, 0
    %517 = vmatprep.subr.mxu0 0.0
    %518 = vmatpush1.msra.mxu0 %v500
    %519 = vmatprep.subr.mxu0 0.0
    %520 = vmatpush1.msra.mxu0 %v501
    %521 = vmatprep.subr.mxu0 0.0
    %522 = vmatpush1.msra.mxu0 %v502
    %523 = vmatprep.subr.mxu0 0.0
    %524 = vmatpush1.msra.mxu0 %v503
    %525 = vmatprep.subr.mxu0 0.0
    %526 = vmatpush1.msra.mxu0 0.0
    %527 = vmatprep.subr.mxu0 0.0
    %528 = vmatpush1.msra.mxu0 0.0
    %529 = vmatprep.subr.mxu0 0.0
    %530 = vmatpush1.msra.mxu0 0.0
    %531 = vmatprep.subr.mxu0 0.0
    %532 = vmatpush1.msra.mxu0 0.0
    %533 = vmatprep.subr.mxu0 0.0
    %534 = vmatpush1.msra.mxu0 0.0
    %535 = vmatprep.subr.mxu0 0.0
    %536 = vmatpush1.msra.mxu0 0.0
    %537 = vmatprep.subr.mxu0 0.0
    %538 = vmatpush1.msra.mxu0 0.0
    %539 = vmatprep.subr.mxu0 0.0
    %540 = vmatpush1.msra.mxu0 0.0
    %541 = vmatprep.subr.mxu0 0.0
    %542 = vmatpush1.msra.mxu0 0.0
    %543 = vmatprep.subr.mxu0 0.0
    %544 = vmatpush1.msra.mxu0 0.0
    %545 = vmatprep.subr.mxu0 0.0
    %546 = vmatpush1.msra.mxu0 0.0
    %547 = vmatprep.subr.mxu0 0.0
    %548 = vmatpush1.msra.mxu0 0.0
    %549 = vmatprep.subr.mxu0 0.0
    %550 = vmatpush1.msra.mxu0 0.0
    %551 = vmatprep.subr.mxu0 0.0
    %552 = vmatpush1.msra.mxu0 0.0
    %553 = vmatprep.subr.mxu0 0.0
    %554 = vmatpush1.msra.mxu0 0.0
    %555 = vmatprep.subr.mxu0 0.0
    %556 = vmatpush1.msra.mxu0 0.0
    %557 = vmatprep.subr.mxu0 0.0
    %558 = vmatpush1.msra.mxu0 0.0
    %559 = vmatprep.subr.mxu0 0.0
    %560 = vmatpush1.msra.mxu0 0.0
    %561 = vmatprep.subr.mxu0 0.0
    %562 = vmatpush1.msra.mxu0 0.0
    %563 = vmatprep.subr.mxu0 0.0
    %564 = vmatpush1.msra.mxu0 0.0
    %565 = vmatprep.subr.mxu0 0.0
    %566 = vmatpush1.msra.mxu0 0.0
    %567 = vmatprep.subr.mxu0 0.0
    %568 = vmatpush1.msra.mxu0 0.0
    %569 = vmatprep.subr.mxu0 0.0
    %570 = vmatpush1.msra.mxu0 0.0
    %571 = vmatprep.subr.mxu0 0.0
    %572 = vmatpush1.msra.mxu0 0.0
    %573 = vmatprep.subr.mxu0 0.0
    %574 = vmatpush1.msra.mxu0 0.0
    %575 = vmatprep.subr.mxu0 0.0
    %576 = vmatpush1.msra.mxu0 0.0
    %577 = vmatprep.subr.mxu0 0.0
    %578 = vmatpush1.msra.mxu0 0.0
    %579 = vmatprep.subr.mxu0 0.0
    %580 = vmatpush1.msra.mxu0 0.0
    %581 = vmatprep.mubr.f32.mxu0 0.0
    %582 = vmatmul.mubr.f32.gmra.mrb[0].mxu0 %v512
    %v583 = vpop.f32.mrb[0].mxu0
    %v584 = vadd.f32 %v509, %v583
    %v585 = vpop.f32.mrb[0].mxu0
    %586 = vmatprep.mubr.f32.mxu0 0.0
    %587 = vmatmul.mubr.f32.gmra.mrb[0].mxu0 %v515
    %v588 = vpop.f32.mrb[0].mxu0
    %v589 = vadd.f32 %v509, %v588
    %v590 = vpop.f32.mrb[0].mxu0
    %591 = vdwg.mxu0
    %v592 = vld [vmem:[%s8] sm:$0xff]
    %v593 = vld [vmem:[%s8 + $0x8] sm:$0xff]
    %v594 = vld [vmem:[%s8 + $0x10] sm:$0xff]
    %v595 = vld [vmem:[%s8 + $0x18] sm:$0xff]
    %v596 = vld [vmem:[#allocation7] sm:$0x1]
    %599 = vrot.lane.b32.xlu0 %v492, 96
    %v600 = vpop.permute.xlu0 %599
    %601 = vrot.lane.b32.xlu0 %v497, 96
    %v602 = vpop.permute.xlu0 %601
    %vm603 = vcmask 64512
    %v604 = vsel %vm603, %v492, 0
    %v606 = vsel %vm603, %v497, 0
    %v608 = vsel %vm603, %v600, 0
    %v610 = vsel %vm603, %v602, 0
    %612 = vmatprep.subr.mxu0 0.0
    %613 = vmatpush1.xpose.msra.mxu0 %v608
    %614 = vmatprep.subr.mxu0 0.0
    %615 = vmatpush1.xpose.msra.mxu0 %v610
    %616 = vmatprep.subr.mxu0 0.0
    %617 = vmatpush1.xpose.msra.mxu0 0.0
    %618 = vmatprep.subr.mxu0 0.0
    %619 = vmatpush1.xpose.msra.mxu0 0.0
    %620 = vmatprep.subr.mxu0 0.0
    %621 = vmatpush1.xpose.msra.mxu0 0.0
    %622 = vmatprep.subr.mxu0 0.0
    %623 = vmatpush1.xpose.msra.mxu0 0.0
    %624 = vmatprep.subr.mxu0 0.0
    %625 = vmatpush1.xpose.msra.mxu0 0.0
    %626 = vmatprep.subr.mxu0 0.0
    %627 = vmatpush1.xpose.msra.mxu0 0.0
    %628 = vmatprep.subr.mxu0 0.0
    %629 = vmatpush1.xpose.msra.mxu0 0.0
    %630 = vmatprep.subr.mxu0 0.0
    %631 = vmatpush1.xpose.msra.mxu0 0.0
    %632 = vmatprep.subr.mxu0 0.0
    %633 = vmatpush1.xpose.msra.mxu0 0.0
    %634 = vmatprep.subr.mxu0 0.0
    %635 = vmatpush1.xpose.msra.mxu0 0.0
    %636 = vmatprep.subr.mxu0 0.0
    %637 = vmatpush1.xpose.msra.mxu0 0.0
    %638 = vmatprep.subr.mxu0 0.0
    %639 = vmatpush1.xpose.msra.mxu0 0.0
    %640 = vmatprep.subr.mxu0 0.0
    %641 = vmatpush1.xpose.msra.mxu0 0.0
    %642 = vmatprep.subr.mxu0 0.0
    %643 = vmatpush1.xpose.msra.mxu0 0.0
    %644 = vmatprep.subr.mxu0 0.0
    %645 = vmatpush1.xpose.msra.mxu0 0.0
    %646 = vmatprep.subr.mxu0 0.0
    %647 = vmatpush1.xpose.msra.mxu0 0.0
    %648 = vmatprep.subr.mxu0 0.0
    %649 = vmatpush1.xpose.msra.mxu0 0.0
    %650 = vmatprep.subr.mxu0 0.0
    %651 = vmatpush1.xpose.msra.mxu0 0.0
    %652 = vmatprep.subr.mxu0 0.0
    %653 = vmatpush1.xpose.msra.mxu0 0.0
    %654 = vmatprep.subr.mxu0 0.0
    %655 = vmatpush1.xpose.msra.mxu0 0.0
    %656 = vmatprep.subr.mxu0 0.0
    %657 = vmatpush1.xpose.msra.mxu0 0.0
    %658 = vmatprep.subr.mxu0 0.0
    %659 = vmatpush1.xpose.msra.mxu0 0.0
    %660 = vmatprep.subr.mxu0 0.0
    %661 = vmatpush1.xpose.msra.mxu0 0.0
    %662 = vmatprep.subr.mxu0 0.0
    %663 = vmatpush1.xpose.msra.mxu0 0.0
    %664 = vmatprep.subr.mxu0 0.0
    %665 = vmatpush1.xpose.msra.mxu0 0.0
    %666 = vmatprep.subr.mxu0 0.0
    %667 = vmatpush1.xpose.msra.mxu0 0.0
    %668 = vmatprep.subr.mxu0 0.0
    %669 = vmatpush1.xpose.msra.mxu0 0.0
    %670 = vmatprep.subr.mxu0 0.0
    %671 = vmatpush1.xpose.msra.mxu0 0.0
    %672 = vmatprep.subr.mxu0 0.0
    %673 = vmatpush1.xpose.msra.mxu0 0.0
    %674 = vmatprep.subr.mxu0 0.0
    %675 = vmatpush1.xpose.msra.mxu0 0.0
    %676 = vmatprep.mubr.f32.mxu0 0.0
    %677 = vmatmul.mubr.f32.gmra.mrb[0].mxu0 %v604
    %v678 = vpop.f32.mrb[0].mxu0
    %v679 = vadd.f32 %v358, %v678
    %v680 = vpop.f32.mrb[0].mxu0
    %681 = vmatprep.mubr.f32.mxu0 0.0
    %682 = vmatmul.mubr.f32.gmra.mrb[0].mxu0 %v606
    %v683 = vpop.f32.mrb[0].mxu0
    %v684 = vadd.f32 %v359, %v683
    %v685 = vpop.f32.mrb[0].mxu0
    %686 = vdwg.mxu0
    %vm687 = vcmask 130048
    %v688 = vsel %vm687, %v679, -inf
    %689 = vmax.xlane.f32.xlu0 %v688
    %v690 = vpop.xlane.xlu0 %689
    %v691 = vsel %vm687, %v684, -inf
    %692 = vmax.xlane.f32.xlu0 %v691
    %v693 = vpop.xlane.xlu0 %692
    %v694 = vsub.f32 %v679, %v690
    %v695 = vsub.f32 %v684, %v693
    %v696 = vmul.f32 %v694, 1.442695
    %v697 = vpow.pop %v696
    %v698 = vmul.f32 %v695, 1.442695
    %v699 = vpow.pop %v698
    %v700 = vsel %vm687, %v697, 0.0
    %701 = vadd.xlane.f32.xlu0 %v700
    %v702 = vpop.xlane.xlu0 %701
    %v703 = vsel %vm687, %v699, 0.0
    %704 = vadd.xlane.f32.xlu0 %v703
    %v705 = vpop.xlane.xlu0 %704
    %v706 = vrcp.pop %v702
    %v707 = vmul.f32 %v697, %v706
    %v708 = vrcp.pop %v705
    %v709 = vmul.f32 %v699, %v708
    %v711 = vsel %vm687, %v707, 0
    %v714 = vsel %vm687, %v709, 0
    %716 = vmatprep.subr.mxu0 0.0
    %717 = vmatpush1.msra.mxu0 %v584
    %718 = vmatprep.subr.mxu0 0.0
    %719 = vmatpush1.msra.mxu0 %v589
    %720 = vmatprep.subr.mxu0 0.0
    %721 = vmatpush1.msra.mxu0 0.0
    %722 = vmatprep.subr.mxu0 0.0
    %723 = vmatpush1.msra.mxu0 0.0
    %724 = vmatprep.subr.mxu0 0.0
    %725 = vmatpush1.msra.mxu0 0.0
    %726 = vmatprep.subr.mxu0 0.0
    %727 = vmatpush1.msra.mxu0 0.0
    %728 = vmatprep.subr.mxu0 0.0
    %729 = vmatpush1.msra.mxu0 0.0
    %730 = vmatprep.subr.mxu0 0.0
    %731 = vmatpush1.msra.mxu0 0.0
    %732 = vmatprep.subr.mxu0 0.0
    %733 = vmatpush1.msra.mxu0 0.0
    %734 = vmatprep.subr.mxu0 0.0
    %735 = vmatpush1.msra.mxu0 0.0
    %736 = vmatprep.subr.mxu0 0.0
    %737 = vmatpush1.msra.mxu0 0.0
    %738 = vmatprep.subr.mxu0 0.0
    %739 = vmatpush1.msra.mxu0 0.0
    %740 = vmatprep.subr.mxu0 0.0
    %741 = vmatpush1.msra.mxu0 0.0
    %742 = vmatprep.subr.mxu0 0.0
    %743 = vmatpush1.msra.mxu0 0.0
    %744 = vmatprep.subr.mxu0 0.0
    %745 = vmatpush1.msra.mxu0 0.0
    %746 = vmatprep.subr.mxu0 0.0
    %747 = vmatpush1.msra.mxu0 0.0
    %748 = vmatprep.subr.mxu0 0.0
    %749 = vmatpush1.msra.mxu0 0.0
    %750 = vmatprep.subr.mxu0 0.0
    %751 = vmatpush1.msra.mxu0 0.0
    %752 = vmatprep.subr.mxu0 0.0
    %753 = vmatpush1.msra.mxu0 0.0
    %754 = vmatprep.subr.mxu0 0.0
    %755 = vmatpush1.msra.mxu0 0.0
    %756 = vmatprep.subr.mxu0 0.0
    %757 = vmatpush1.msra.mxu0 0.0
    %758 = vmatprep.subr.mxu0 0.0
    %759 = vmatpush1.msra.mxu0 0.0
    %760 = vmatprep.subr.mxu0 0.0
    %761 = vmatpush1.msra.mxu0 0.0
    %762 = vmatprep.subr.mxu0 0.0
    %763 = vmatpush1.msra.mxu0 0.0
    %764 = vmatprep.subr.mxu0 0.0
    %765 = vmatpush1.msra.mxu0 0.0
    %766 = vmatprep.subr.mxu0 0.0
    %767 = vmatpush1.msra.mxu0 0.0
    %768 = vmatprep.subr.mxu0 0.0
    %769 = vmatpush1.msra.mxu0 0.0
    %770 = vmatprep.subr.mxu0 0.0
    %771 = vmatpush1.msra.mxu0 0.0
    %772 = vmatprep.subr.mxu0 0.0
    %773 = vmatpush1.msra.mxu0 0.0
    %774 = vmatprep.subr.mxu0 0.0
    %775 = vmatpush1.msra.mxu0 0.0
    %776 = vmatprep.subr.mxu0 0.0
    %777 = vmatpush1.msra.mxu0 0.0
    %778 = vmatprep.subr.mxu0 0.0
    %779 = vmatpush1.msra.mxu0 0.0
    %780 = vmatprep.mubr.f32.mxu0 0.0
    %781 = vmatmul.mubr.f32.gmra.mrb[0].mxu0 %v711
    %v782 = vpop.f32.mrb[0].mxu0
    %v783 = vadd.f32 0.0, %v782
    %v784 = vpop.f32.mrb[0].mxu0
    %785 = vmatprep.mubr.f32.mxu0 0.0
    %786 = vmatmul.mubr.f32.gmra.mrb[0].mxu0 %v714
    %v787 = vpop.f32.mrb[0].mxu0
    %v788 = vadd.f32 0.0, %v787
    %v789 = vpop.f32.mrb[0].mxu0
    %790 = vdwg.mxu0
    %791 = vrot.lane.b32.xlu0 %v492, 120
    %v792 = vpop.permute.xlu0 %791
    %793 = vrot.lane.b32.xlu0 %v497, 120
    %v794 = vpop.permute.xlu0 %793
    %795 = vrot.lane.b32.xlu0 %v492, 88
    %v796 = vpop.permute.xlu0 %795
    %797 = vrot.lane.b32.xlu0 %v497, 88
    %v798 = vpop.permute.xlu0 %797
    %v799 = vsel %vm603, %v792, 0
    %v801 = vsel %vm603, %v794, 0
    %v803 = vsel %vm603, %v796, 0
    %v805 = vsel %vm603, %v798, 0
    %807 = vmatprep.subr.mxu0 0.0
    %808 = vmatpush1.xpose.msra.mxu0 %v803
    %809 = vmatprep.subr.mxu0 0.0
    %810 = vmatpush1.xpose.msra.mxu0 %v805
    %811 = vmatprep.subr.mxu0 0.0
    %812 = vmatpush1.xpose.msra.mxu0 0.0
    %813 = vmatprep.subr.mxu0 0.0
    %814 = vmatpush1.xpose.msra.mxu0 0.0
    %815 = vmatprep.subr.mxu0 0.0
    %816 = vmatpush1.xpose.msra.mxu0 0.0
    %817 = vmatprep.subr.mxu0 0.0
    %818 = vmatpush1.xpose.msra.mxu0 0.0
    %819 = vmatprep.subr.mxu0 0.0
    %820 = vmatpush1.xpose.msra.mxu0 0.0
    %821 = vmatprep.subr.mxu0 0.0
    %822 = vmatpush1.xpose.msra.mxu0 0.0
    %823 = vmatprep.subr.mxu0 0.0
    %824 = vmatpush1.xpose.msra.mxu0 0.0
    %825 = vmatprep.subr.mxu0 0.0
    %826 = vmatpush1.xpose.msra.mxu0 0.0
    %827 = vmatprep.subr.mxu0 0.0
    %828 = vmatpush1.xpose.msra.mxu0 0.0
    %829 = vmatprep.subr.mxu0 0.0
    %830 = vmatpush1.xpose.msra.mxu0 0.0
    %831 = vmatprep.subr.mxu0 0.0
    %832 = vmatpush1.xpose.msra.mxu0 0.0
    %833 = vmatprep.subr.mxu0 0.0
    %834 = vmatpush1.xpose.msra.mxu0 0.0
    %835 = vmatprep.subr.mxu0 0.0
    %836 = vmatpush1.xpose.msra.mxu0 0.0
    %837 = vmatprep.subr.mxu0 0.0
    %838 = vmatpush1.xpose.msra.mxu0 0.0
    %839 = vmatprep.subr.mxu0 0.0
    %840 = vmatpush1.xpose.msra.mxu0 0.0
    %841 = vmatprep.subr.mxu0 0.0
    %842 = vmatpush1.xpose.msra.mxu0 0.0
    %843 = vmatprep.subr.mxu0 0.0
    %844 = vmatpush1.xpose.msra.mxu0 0.0
    %845 = vmatprep.subr.mxu0 0.0
    %846 = vmatpush1.xpose.msra.mxu0 0.0
    %847 = vmatprep.subr.mxu0 0.0
    %848 = vmatpush1.xpose.msra.mxu0 0.0
    %849 = vmatprep.subr.mxu0 0.0
    %850 = vmatpush1.xpose.msra.mxu0 0.0
    %851 = vmatprep.subr.mxu0 0.0
    %852 = vmatpush1.xpose.msra.mxu0 0.0
    %853 = vmatprep.subr.mxu0 0.0
    %854 = vmatpush1.xpose.msra.mxu0 0.0
    %855 = vmatprep.subr.mxu0 0.0
    %856 = vmatpush1.xpose.msra.mxu0 0.0
    %857 = vmatprep.subr.mxu0 0.0
    %858 = vmatpush1.xpose.msra.mxu0 0.0
    %859 = vmatprep.subr.mxu0 0.0
    %860 = vmatpush1.xpose.msra.mxu0 0.0
    %861 = vmatprep.subr.mxu0 0.0
    %862 = vmatpush1.xpose.msra.mxu0 0.0
    %863 = vmatprep.subr.mxu0 0.0
    %864 = vmatpush1.xpose.msra.mxu0 0.0
    %865 = vmatprep.subr.mxu0 0.0
    %866 = vmatpush1.xpose.msra.mxu0 0.0
    %867 = vmatprep.subr.mxu0 0.0
    %868 = vmatpush1.xpose.msra.mxu0 0.0
    %869 = vmatprep.subr.mxu0 0.0
    %870 = vmatpush1.xpose.msra.mxu0 0.0
    %871 = vmatprep.mubr.f32.mxu0 0.0
    %872 = vmatmul.mubr.f32.gmra.mrb[0].mxu0 %v799
    %v873 = vpop.f32.mrb[0].mxu0
    %v874 = vadd.f32 %v358, %v873
    %v875 = vpop.f32.mrb[0].mxu0
    %876 = vmatprep.mubr.f32.mxu0 0.0
    %877 = vmatmul.mubr.f32.gmra.mrb[0].mxu0 %v801
    %v878 = vpop.f32.mrb[0].mxu0
    %v879 = vadd.f32 %v359, %v878
    %v880 = vpop.f32.mrb[0].mxu0
    %881 = vdwg.mxu0
    %v882 = vsel %vm687, %v874, -inf
    %883 = vmax.xlane.f32.xlu0 %v882
    %v884 = vpop.xlane.xlu0 %883
    %v885 = vsel %vm687, %v879, -inf
    %886 = vmax.xlane.f32.xlu0 %v885
    %v887 = vpop.xlane.xlu0 %886
    %v888 = vsub.f32 %v874, %v884
    %v889 = vsub.f32 %v879, %v887
    %v890 = vmul.f32 %v888, 1.442695
    %v891 = vpow.pop %v890
    %v892 = vmul.f32 %v889, 1.442695
    %v893 = vpow.pop %v892
    %v894 = vsel %vm687, %v891, 0.0
    %895 = vadd.xlane.f32.xlu0 %v894
    %v896 = vpop.xlane.xlu0 %895
    %v897 = vsel %vm687, %v893, 0.0
    %898 = vadd.xlane.f32.xlu0 %v897
    %v899 = vpop.xlane.xlu0 %898
    %v900 = vrcp.pop %v896
    %v901 = vmul.f32 %v891, %v900
    %v902 = vrcp.pop %v899
    %v903 = vmul.f32 %v893, %v902
    %906 = vrot.lane.b32.xlu0 %v584, 120
    %v907 = vpop.permute.xlu0 %906
    %908 = vrot.lane.b32.xlu0 %v589, 120
    %v909 = vpop.permute.xlu0 %908
    %v913 = vsel %vm687, %v901, 0
    %v916 = vsel %vm687, %v903, 0
    %918 = vmatprep.subr.mxu0 0.0
    %919 = vmatpush1.msra.mxu0 %v907
    %920 = vmatprep.subr.mxu0 0.0
    %921 = vmatpush1.msra.mxu0 %v909
    %922 = vmatprep.subr.mxu0 0.0
    %923 = vmatpush1.msra.mxu0 0.0
    %924 = vmatprep.subr.mxu0 0.0
    %925 = vmatpush1.msra.mxu0 0.0
    %926 = vmatprep.subr.mxu0 0.0
    %927 = vmatpush1.msra.mxu0 0.0
    %928 = vmatprep.subr.mxu0 0.0
    %929 = vmatpush1.msra.mxu0 0.0
    %930 = vmatprep.subr.mxu0 0.0
    %931 = vmatpush1.msra.mxu0 0.0
    %932 = vmatprep.subr.mxu0 0.0
    %933 = vmatpush1.msra.mxu0 0.0
    %934 = vmatprep.subr.mxu0 0.0
    %935 = vmatpush1.msra.mxu0 0.0
    %936 = vmatprep.subr.mxu0 0.0
    %937 = vmatpush1.msra.mxu0 0.0
    %938 = vmatprep.subr.mxu0 0.0
    %939 = vmatpush1.msra.mxu0 0.0
    %940 = vmatprep.subr.mxu0 0.0
    %941 = vmatpush1.msra.mxu0 0.0
    %942 = vmatprep.subr.mxu0 0.0
    %943 = vmatpush1.msra.mxu0 0.0
    %944 = vmatprep.subr.mxu0 0.0
    %945 = vmatpush1.msra.mxu0 0.0
    %946 = vmatprep.subr.mxu0 0.0
    %947 = vmatpush1.msra.mxu0 0.0
    %948 = vmatprep.subr.mxu0 0.0
    %949 = vmatpush1.msra.mxu0 0.0
    %950 = vmatprep.subr.mxu0 0.0
    %951 = vmatpush1.msra.mxu0 0.0
    %952 = vmatprep.subr.mxu0 0.0
    %953 = vmatpush1.msra.mxu0 0.0
    %954 = vmatprep.subr.mxu0 0.0
    %955 = vmatpush1.msra.mxu0 0.0
    %956 = vmatprep.subr.mxu0 0.0
    %957 = vmatpush1.msra.mxu0 0.0
    %958 = vmatprep.subr.mxu0 0.0
    %959 = vmatpush1.msra.mxu0 0.0
    %960 = vmatprep.subr.mxu0 0.0
    %961 = vmatpush1.msra.mxu0 0.0
    %962 = vmatprep.subr.mxu0 0.0
    %963 = vmatpush1.msra.mxu0 0.0
    %964 = vmatprep.subr.mxu0 0.0
    %965 = vmatpush1.msra.mxu0 0.0
    %966 = vmatprep.subr.mxu0 0.0
    %967 = vmatpush1.msra.mxu0 0.0
    %968 = vmatprep.subr.mxu0 0.0
    %969 = vmatpush1.msra.mxu0 0.0
    %970 = vmatprep.subr.mxu0 0.0
    %971 = vmatpush1.msra.mxu0 0.0
    %972 = vmatprep.subr.mxu0 0.0
    %973 = vmatpush1.msra.mxu0 0.0
    %974 = vmatprep.subr.mxu0 0.0
    %975 = vmatpush1.msra.mxu0 0.0
    %976 = vmatprep.subr.mxu0 0.0
    %977 = vmatpush1.msra.mxu0 0.0
    %978 = vmatprep.subr.mxu0 0.0
    %979 = vmatpush1.msra.mxu0 0.0
    %980 = vmatprep.subr.mxu0 0.0
    %981 = vmatpush1.msra.mxu0 0.0
    %982 = vmatprep.mubr.f32.mxu0 0.0
    %983 = vmatmul.mubr.f32.gmra.mrb[0].mxu0 %v913
    %v984 = vpop.f32.mrb[0].mxu0
    %v985 = vadd.f32 0.0, %v984
    %v986 = vpop.f32.mrb[0].mxu0
    %987 = vmatprep.mubr.f32.mxu0 0.0
    %988 = vmatmul.mubr.f32.gmra.mrb[0].mxu0 %v916
    %v989 = vpop.f32.mrb[0].mxu0
    %v990 = vadd.f32 0.0, %v989
    %v991 = vpop.f32.mrb[0].mxu0
    %992 = vdwg.mxu0
    %993 = vrot.lane.b32.xlu0 %v492, 112
    %v994 = vpop.permute.xlu0 %993
    %995 = vrot.lane.b32.xlu0 %v497, 112
    %v996 = vpop.permute.xlu0 %995
    %997 = vrot.lane.b32.xlu0 %v492, 80
    %v998 = vpop.permute.xlu0 %997
    %999 = vrot.lane.b32.xlu0 %v497, 80
    %v1000 = vpop.permute.xlu0 %999
    %v1001 = vsel %vm603, %v994, 0
    %v1003 = vsel %vm603, %v996, 0
    %v1005 = vsel %vm603, %v998, 0
    %v1007 = vsel %vm603, %v1000, 0
    %1009 = vmatprep.subr.mxu0 0.0
    %1010 = vmatpush1.xpose.msra.mxu0 %v1005
    %1011 = vmatprep.subr.mxu0 0.0
    %1012 = vmatpush1.xpose.msra.mxu0 %v1007
    %1013 = vmatprep.subr.mxu0 0.0
    %1014 = vmatpush1.xpose.msra.mxu0 0.0
    %1015 = vmatprep.subr.mxu0 0.0
    %1016 = vmatpush1.xpose.msra.mxu0 0.0
    %1017 = vmatprep.subr.mxu0 0.0
    %1018 = vmatpush1.xpose.msra.mxu0 0.0
    %1019 = vmatprep.subr.mxu0 0.0
    %1020 = vmatpush1.xpose.msra.mxu0 0.0
    %1021 = vmatprep.subr.mxu0 0.0
    %1022 = vmatpush1.xpose.msra.mxu0 0.0
    %1023 = vmatprep.subr.mxu0 0.0
    %1024 = vmatpush1.xpose.msra.mxu0 0.0
    %1025 = vmatprep.subr.mxu0 0.0
    %1026 = vmatpush1.xpose.msra.mxu0 0.0
    %1027 = vmatprep.subr.mxu0 0.0
    %1028 = vmatpush1.xpose.msra.mxu0 0.0
    %1029 = vmatprep.subr.mxu0 0.0
    %1030 = vmatpush1.xpose.msra.mxu0 0.0
    %1031 = vmatprep.subr.mxu0 0.0
    %1032 = vmatpush1.xpose.msra.mxu0 0.0
    %1033 = vmatprep.subr.mxu0 0.0
    %1034 = vmatpush1.xpose.msra.mxu0 0.0
    %1035 = vmatprep.subr.mxu0 0.0
    %1036 = vmatpush1.xpose.msra.mxu0 0.0
    %1037 = vmatprep.subr.mxu0 0.0
    %1038 = vmatpush1.xpose.msra.mxu0 0.0
    %1039 = vmatprep.subr.mxu0 0.0
    %1040 = vmatpush1.xpose.msra.mxu0 0.0
    %1041 = vmatprep.subr.mxu0 0.0
    %1042 = vmatpush1.xpose.msra.mxu0 0.0
    %1043 = vmatprep.subr.mxu0 0.0
    %1044 = vmatpush1.xpose.msra.mxu0 0.0
    %1045 = vmatprep.subr.mxu0 0.0
    %1046 = vmatpush1.xpose.msra.mxu0 0.0
    %1047 = vmatprep.subr.mxu0 0.0
    %1048 = vmatpush1.xpose.msra.mxu0 0.0
    %1049 = vmatprep.subr.mxu0 0.0
    %1050 = vmatpush1.xpose.msra.mxu0 0.0
    %1051 = vmatprep.subr.mxu0 0.0
    %1052 = vmatpush1.xpose.msra.mxu0 0.0
    %1053 = vmatprep.subr.mxu0 0.0
    %1054 = vmatpush1.xpose.msra.mxu0 0.0
    %1055 = vmatprep.subr.mxu0 0.0
    %1056 = vmatpush1.xpose.msra.mxu0 0.0
    %1057 = vmatprep.subr.mxu0 0.0
    %1058 = vmatpush1.xpose.msra.mxu0 0.0
    %1059 = vmatprep.subr.mxu0 0.0
    %1060 = vmatpush1.xpose.msra.mxu0 0.0
    %1061 = vmatprep.subr.mxu0 0.0
    %1062 = vmatpush1.xpose.msra.mxu0 0.0
    %1063 = vmatprep.subr.mxu0 0.0
    %1064 = vmatpush1.xpose.msra.mxu0 0.0
    %1065 = vmatprep.subr.mxu0 0.0
    %1066 = vmatpush1.xpose.msra.mxu0 0.0
    %1067 = vmatprep.subr.mxu0 0.0
    %1068 = vmatpush1.xpose.msra.mxu0 0.0
    %1069 = vmatprep.subr.mxu0 0.0
    %1070 = vmatpush1.xpose.msra.mxu0 0.0
    %1071 = vmatprep.subr.mxu0 0.0
    %1072 = vmatpush1.xpose.msra.mxu0 0.0
    %1073 = vmatprep.mubr.f32.mxu0 0.0
    %1074 = vmatmul.mubr.f32.gmra.mrb[0].mxu0 %v1001
    %v1075 = vpop.f32.mrb[0].mxu0
    %v1076 = vadd.f32 %v358, %v1075
    %v1077 = vpop.f32.mrb[0].mxu0
    %1078 = vmatprep.mubr.f32.mxu0 0.0
    %1079 = vmatmul.mubr.f32.gmra.mrb[0].mxu0 %v1003
    %v1080 = vpop.f32.mrb[0].mxu0
    %v1081 = vadd.f32 %v359, %v1080
    %v1082 = vpop.f32.mrb[0].mxu0
    %1083 = vdwg.mxu0
    %v1084 = vsel %vm687, %v1076, -inf
    %1085 = vmax.xlane.f32.xlu0 %v1084
    %v1086 = vpop.xlane.xlu0 %1085
    %v1087 = vsel %vm687, %v1081, -inf
    %1088 = vmax.xlane.f32.xlu0 %v1087
    %v1089 = vpop.xlane.xlu0 %1088
    %v1090 = vsub.f32 %v1076, %v1086
    %v1091 = vsub.f32 %v1081, %v1089
    %v1092 = vmul.f32 %v1090, 1.442695
    %v1093 = vpow.pop %v1092
    %v1094 = vmul.f32 %v1091, 1.442695
    %v1095 = vpow.pop %v1094
    %v1096 = vsel %vm687, %v1093, 0.0
    %1097 = vadd.xlane.f32.xlu0 %v1096
    %v1098 = vpop.xlane.xlu0 %1097
    %v1099 = vsel %vm687, %v1095, 0.0
    %1100 = vadd.xlane.f32.xlu0 %v1099
    %v1101 = vpop.xlane.xlu0 %1100
    %v1102 = vrcp.pop %v1098
    %v1103 = vmul.f32 %v1093, %v1102
    %v1104 = vrcp.pop %v1101
    %v1105 = vmul.f32 %v1095, %v1104
    %1106 = vrot.lane.b32.xlu0 %v584, 112
    %v1107 = vpop.permute.xlu0 %1106
    %1108 = vrot.lane.b32.xlu0 %v589, 112
    %v1109 = vpop.permute.xlu0 %1108
    %v1113 = vsel %vm687, %v1103, 0
    %v1116 = vsel %vm687, %v1105, 0
    %1118 = vmatprep.subr.mxu0 0.0
    %1119 = vmatpush1.msra.mxu0 %v1107
    %1120 = vmatprep.subr.mxu0 0.0
    %1121 = vmatpush1.msra.mxu0 %v1109
    %1122 = vmatprep.subr.mxu0 0.0
    %1123 = vmatpush1.msra.mxu0 0.0
    %1124 = vmatprep.subr.mxu0 0.0
    %1125 = vmatpush1.msra.mxu0 0.0
    %1126 = vmatprep.subr.mxu0 0.0
    %1127 = vmatpush1.msra.mxu0 0.0
    %1128 = vmatprep.subr.mxu0 0.0
    %1129 = vmatpush1.msra.mxu0 0.0
    %1130 = vmatprep.subr.mxu0 0.0
    %1131 = vmatpush1.msra.mxu0 0.0
    %1132 = vmatprep.subr.mxu0 0.0
    %1133 = vmatpush1.msra.mxu0 0.0
    %1134 = vmatprep.subr.mxu0 0.0
    %1135 = vmatpush1.msra.mxu0 0.0
    %1136 = vmatprep.subr.mxu0 0.0
    %1137 = vmatpush1.msra.mxu0 0.0
    %1138 = vmatprep.subr.mxu0 0.0
    %1139 = vmatpush1.msra.mxu0 0.0
    %1140 = vmatprep.subr.mxu0 0.0
    %1141 = vmatpush1.msra.mxu0 0.0
    %1142 = vmatprep.subr.mxu0 0.0
    %1143 = vmatpush1.msra.mxu0 0.0
    %1144 = vmatprep.subr.mxu0 0.0
    %1145 = vmatpush1.msra.mxu0 0.0
    %1146 = vmatprep.subr.mxu0 0.0
    %1147 = vmatpush1.msra.mxu0 0.0
    %1148 = vmatprep.subr.mxu0 0.0
    %1149 = vmatpush1.msra.mxu0 0.0
    %1150 = vmatprep.subr.mxu0 0.0
    %1151 = vmatpush1.msra.mxu0 0.0
    %1152 = vmatprep.subr.mxu0 0.0
    %1153 = vmatpush1.msra.mxu0 0.0
    %1154 = vmatprep.subr.mxu0 0.0
    %1155 = vmatpush1.msra.mxu0 0.0
    %1156 = vmatprep.subr.mxu0 0.0
    %1157 = vmatpush1.msra.mxu0 0.0
    %1158 = vmatprep.subr.mxu0 0.0
    %1159 = vmatpush1.msra.mxu0 0.0
    %1160 = vmatprep.subr.mxu0 0.0
    %1161 = vmatpush1.msra.mxu0 0.0
    %1162 = vmatprep.subr.mxu0 0.0
    %1163 = vmatpush1.msra.mxu0 0.0
    %1164 = vmatprep.subr.mxu0 0.0
    %1165 = vmatpush1.msra.mxu0 0.0
    %1166 = vmatprep.subr.mxu0 0.0
    %1167 = vmatpush1.msra.mxu0 0.0
    %1168 = vmatprep.subr.mxu0 0.0
    %1169 = vmatpush1.msra.mxu0 0.0
    %1170 = vmatprep.subr.mxu0 0.0
    %1171 = vmatpush1.msra.mxu0 0.0
    %1172 = vmatprep.subr.mxu0 0.0
    %1173 = vmatpush1.msra.mxu0 0.0
    %1174 = vmatprep.subr.mxu0 0.0
    %1175 = vmatpush1.msra.mxu0 0.0
    %1176 = vmatprep.subr.mxu0 0.0
    %1177 = vmatpush1.msra.mxu0 0.0
    %1178 = vmatprep.subr.mxu0 0.0
    %1179 = vmatpush1.msra.mxu0 0.0
    %1180 = vmatprep.subr.mxu0 0.0
    %1181 = vmatpush1.msra.mxu0 0.0
    %1182 = vmatprep.mubr.f32.mxu0 0.0
    %1183 = vmatmul.mubr.f32.gmra.mrb[0].mxu0 %v1113
    %v1184 = vpop.f32.mrb[0].mxu0
    %v1185 = vadd.f32 0.0, %v1184
    %v1186 = vpop.f32.mrb[0].mxu0
    %1187 = vmatprep.mubr.f32.mxu0 0.0
    %1188 = vmatmul.mubr.f32.gmra.mrb[0].mxu0 %v1116
    %v1189 = vpop.f32.mrb[0].mxu0
    %v1190 = vadd.f32 0.0, %v1189
    %v1191 = vpop.f32.mrb[0].mxu0
    %1192 = vdwg.mxu0
    %1193 = vrot.lane.b32.xlu0 %v492, 104
    %v1194 = vpop.permute.xlu0 %1193
    %1195 = vrot.lane.b32.xlu0 %v497, 104
    %v1196 = vpop.permute.xlu0 %1195
    %1197 = vrot.lane.b32.xlu0 %v492, 72
    %v1198 = vpop.permute.xlu0 %1197
    %1199 = vrot.lane.b32.xlu0 %v497, 72
    %v1200 = vpop.permute.xlu0 %1199
    %v1201 = vsel %vm603, %v1194, 0
    %v1203 = vsel %vm603, %v1196, 0
    %v1205 = vsel %vm603, %v1198, 0
    %v1207 = vsel %vm603, %v1200, 0
    %1209 = vmatprep.subr.mxu0 0.0
    %1210 = vmatpush1.xpose.msra.mxu0 %v1205
    %1211 = vmatprep.subr.mxu0 0.0
    %1212 = vmatpush1.xpose.msra.mxu0 %v1207
    %1213 = vmatprep.subr.mxu0 0.0
    %1214 = vmatpush1.xpose.msra.mxu0 0.0
    %1215 = vmatprep.subr.mxu0 0.0
    %1216 = vmatpush1.xpose.msra.mxu0 0.0
    %1217 = vmatprep.subr.mxu0 0.0
    %1218 = vmatpush1.xpose.msra.mxu0 0.0
    %1219 = vmatprep.subr.mxu0 0.0
    %1220 = vmatpush1.xpose.msra.mxu0 0.0
    %1221 = vmatprep.subr.mxu0 0.0
    %1222 = vmatpush1.xpose.msra.mxu0 0.0
    %1223 = vmatprep.subr.mxu0 0.0
    %1224 = vmatpush1.xpose.msra.mxu0 0.0
    %1225 = vmatprep.subr.mxu0 0.0
    %1226 = vmatpush1.xpose.msra.mxu0 0.0
    %1227 = vmatprep.subr.mxu0 0.0
    %1228 = vmatpush1.xpose.msra.mxu0 0.0
    %1229 = vmatprep.subr.mxu0 0.0
    %1230 = vmatpush1.xpose.msra.mxu0 0.0
    %1231 = vmatprep.subr.mxu0 0.0
    %1232 = vmatpush1.xpose.msra.mxu0 0.0
    %1233 = vmatprep.subr.mxu0 0.0
    %1234 = vmatpush1.xpose.msra.mxu0 0.0
    %1235 = vmatprep.subr.mxu0 0.0
    %1236 = vmatpush1.xpose.msra.mxu0 0.0
    %1237 = vmatprep.subr.mxu0 0.0
    %1238 = vmatpush1.xpose.msra.mxu0 0.0
    %1239 = vmatprep.subr.mxu0 0.0
    %1240 = vmatpush1.xpose.msra.mxu0 0.0
    %1241 = vmatprep.subr.mxu0 0.0
    %1242 = vmatpush1.xpose.msra.mxu0 0.0
    %1243 = vmatprep.subr.mxu0 0.0
    %1244 = vmatpush1.xpose.msra.mxu0 0.0
    %1245 = vmatprep.subr.mxu0 0.0
    %1246 = vmatpush1.xpose.msra.mxu0 0.0
    %1247 = vmatprep.subr.mxu0 0.0
    %1248 = vmatpush1.xpose.msra.mxu0 0.0
    %1249 = vmatprep.subr.mxu0 0.0
    %1250 = vmatpush1.xpose.msra.mxu0 0.0
    %1251 = vmatprep.subr.mxu0 0.0
    %1252 = vmatpush1.xpose.msra.mxu0 0.0
    %1253 = vmatprep.subr.mxu0 0.0
    %1254 = vmatpush1.xpose.msra.mxu0 0.0
    %1255 = vmatprep.subr.mxu0 0.0
    %1256 = vmatpush1.xpose.msra.mxu0 0.0
    %1257 = vmatprep.subr.mxu0 0.0
    %1258 = vmatpush1.xpose.msra.mxu0 0.0
    %1259 = vmatprep.subr.mxu0 0.0
    %1260 = vmatpush1.xpose.msra.mxu0 0.0
    %1261 = vmatprep.subr.mxu0 0.0
    %1262 = vmatpush1.xpose.msra.mxu0 0.0
    %1263 = vmatprep.subr.mxu0 0.0
    %1264 = vmatpush1.xpose.msra.mxu0 0.0
    %1265 = vmatprep.subr.mxu0 0.0
    %1266 = vmatpush1.xpose.msra.mxu0 0.0
    %1267 = vmatprep.subr.mxu0 0.0
    %1268 = vmatpush1.xpose.msra.mxu0 0.0
    %1269 = vmatprep.subr.mxu0 0.0
    %1270 = vmatpush1.xpose.msra.mxu0 0.0
    %1271 = vmatprep.subr.mxu0 0.0
    %1272 = vmatpush1.xpose.msra.mxu0 0.0
    %1273 = vmatprep.mubr.f32.mxu0 0.0
    %1274 = vmatmul.mubr.f32.gmra.mrb[0].mxu0 %v1201
    %v1275 = vpop.f32.mrb[0].mxu0
    %v1276 = vadd.f32 %v358, %v1275
    %v1277 = vpop.f32.mrb[0].mxu0
    %1278 = vmatprep.mubr.f32.mxu0 0.0
    %1279 = vmatmul.mubr.f32.gmra.mrb[0].mxu0 %v1203
    %v1280 = vpop.f32.mrb[0].mxu0
    %v1281 = vadd.f32 %v359, %v1280
    %v1282 = vpop.f32.mrb[0].mxu0
    %1283 = vdwg.mxu0
    %v1284 = vsel %vm687, %v1276, -inf
    %1285 = vmax.xlane.f32.xlu0 %v1284
    %v1286 = vpop.xlane.xlu0 %1285
    %v1287 = vsel %vm687, %v1281, -inf
    %1288 = vmax.xlane.f32.xlu0 %v1287
    %v1289 = vpop.xlane.xlu0 %1288
    %v1290 = vsub.f32 %v1276, %v1286
    %v1291 = vsub.f32 %v1281, %v1289
    %v1292 = vmul.f32 %v1290, 1.442695
    %v1293 = vpow.pop %v1292
    %v1294 = vmul.f32 %v1291, 1.442695
    %v1295 = vpow.pop %v1294
    %v1296 = vsel %vm687, %v1293, 0.0
    %1297 = vadd.xlane.f32.xlu0 %v1296
    %v1298 = vpop.xlane.xlu0 %1297
    %v1299 = vsel %vm687, %v1295, 0.0
    %1300 = vadd.xlane.f32.xlu0 %v1299
    %v1301 = vpop.xlane.xlu0 %1300
    %v1302 = vrcp.pop %v1298
    %v1303 = vmul.f32 %v1293, %v1302
    %v1304 = vrcp.pop %v1301
    %v1305 = vmul.f32 %v1295, %v1304
    %1306 = vrot.lane.b32.xlu0 %v584, 104
    %v1307 = vpop.permute.xlu0 %1306
    %1308 = vrot.lane.b32.xlu0 %v589, 104
    %v1309 = vpop.permute.xlu0 %1308
    %v1313 = vsel %vm687, %v1303, 0
    %v1316 = vsel %vm687, %v1305, 0
    %1318 = vmatprep.subr.mxu0 0.0
    %1319 = vmatpush1.msra.mxu0 %v1307
    %1320 = vmatprep.subr.mxu0 0.0
    %1321 = vmatpush1.msra.mxu0 %v1309
    %1322 = vmatprep.subr.mxu0 0.0
    %1323 = vmatpush1.msra.mxu0 0.0
    %1324 = vmatprep.subr.mxu0 0.0
    %1325 = vmatpush1.msra.mxu0 0.0
    %1326 = vmatprep.subr.mxu0 0.0
    %1327 = vmatpush1.msra.mxu0 0.0
    %1328 = vmatprep.subr.mxu0 0.0
    %1329 = vmatpush1.msra.mxu0 0.0
    %1330 = vmatprep.subr.mxu0 0.0
    %1331 = vmatpush1.msra.mxu0 0.0
    %1332 = vmatprep.subr.mxu0 0.0
    %1333 = vmatpush1.msra.mxu0 0.0
    %1334 = vmatprep.subr.mxu0 0.0
    %1335 = vmatpush1.msra.mxu0 0.0
    %1336 = vmatprep.subr.mxu0 0.0
    %1337 = vmatpush1.msra.mxu0 0.0
    %1338 = vmatprep.subr.mxu0 0.0
    %1339 = vmatpush1.msra.mxu0 0.0
    %1340 = vmatprep.subr.mxu0 0.0
    %1341 = vmatpush1.msra.mxu0 0.0
    %1342 = vmatprep.subr.mxu0 0.0
    %1343 = vmatpush1.msra.mxu0 0.0
    %1344 = vmatprep.subr.mxu0 0.0
    %1345 = vmatpush1.msra.mxu0 0.0
    %1346 = vmatprep.subr.mxu0 0.0
    %1347 = vmatpush1.msra.mxu0 0.0
    %1348 = vmatprep.subr.mxu0 0.0
    %1349 = vmatpush1.msra.mxu0 0.0
    %1350 = vmatprep.subr.mxu0 0.0
    %1351 = vmatpush1.msra.mxu0 0.0
    %1352 = vmatprep.subr.mxu0 0.0
    %1353 = vmatpush1.msra.mxu0 0.0
    %1354 = vmatprep.subr.mxu0 0.0
    %1355 = vmatpush1.msra.mxu0 0.0
    %1356 = vmatprep.subr.mxu0 0.0
    %1357 = vmatpush1.msra.mxu0 0.0
    %1358 = vmatprep.subr.mxu0 0.0
    %1359 = vmatpush1.msra.mxu0 0.0
    %1360 = vmatprep.subr.mxu0 0.0
    %1361 = vmatpush1.msra.mxu0 0.0
    %1362 = vmatprep.subr.mxu0 0.0
    %1363 = vmatpush1.msra.mxu0 0.0
    %1364 = vmatprep.subr.mxu0 0.0
    %1365 = vmatpush1.msra.mxu0 0.0
    %1366 = vmatprep.subr.mxu0 0.0
    %1367 = vmatpush1.msra.mxu0 0.0
    %1368 = vmatprep.subr.mxu0 0.0
    %1369 = vmatpush1.msra.mxu0 0.0
    %1370 = vmatprep.subr.mxu0 0.0
    %1371 = vmatpush1.msra.mxu0 0.0
    %1372 = vmatprep.subr.mxu0 0.0
    %1373 = vmatpush1.msra.mxu0 0.0
    %1374 = vmatprep.subr.mxu0 0.0
    %1375 = vmatpush1.msra.mxu0 0.0
    %1376 = vmatprep.subr.mxu0 0.0
    %1377 = vmatpush1.msra.mxu0 0.0
    %1378 = vmatprep.subr.mxu0 0.0
    %1379 = vmatpush1.msra.mxu0 0.0
    %1380 = vmatprep.subr.mxu0 0.0
    %1381 = vmatpush1.msra.mxu0 0.0
    %1382 = vmatprep.mubr.f32.mxu0 0.0
    %1383 = vmatmul.mubr.f32.gmra.mrb[0].mxu0 %v1313
    %v1384 = vpop.f32.mrb[0].mxu0
    %v1385 = vadd.f32 0.0, %v1384
    %v1386 = vpop.f32.mrb[0].mxu0
    %1387 = vmatprep.mubr.f32.mxu0 0.0
    %1388 = vmatmul.mubr.f32.gmra.mrb[0].mxu0 %v1316
    %v1389 = vpop.f32.mrb[0].mxu0
    %v1390 = vadd.f32 0.0, %v1389
    %v1391 = vpop.f32.mrb[0].mxu0
    %1392 = vdwg.mxu0
    %1395 = vrot.lane.b32.xlu0 %v985, 8
    %v1396 = vpop.permute.xlu0 %1395
    %1397 = vrot.lane.b32.xlu0 %v990, 8
    %v1398 = vpop.permute.xlu0 %1397
    %1403 = vrot.lane.b32.xlu0 %v1185, 16
    %v1404 = vpop.permute.xlu0 %1403
    %1405 = vrot.lane.b32.xlu0 %v1190, 16
    %v1406 = vpop.permute.xlu0 %1405
    %1411 = vrot.lane.b32.xlu0 %v1385, 24
    %v1412 = vpop.permute.xlu0 %1411
    %1413 = vrot.lane.b32.xlu0 %v1390, 24
    %v1414 = vpop.permute.xlu0 %1413
    %v1417 = vsel %vm603, %v783, %v1396
    %v1418 = vsel %vm603, %v788, %v1398
    %v1419 = vsel %vm687, %v1417, %v1404
    %v1420 = vsel %vm687, %v1418, %v1406
    %vm1421 = vcmask 195584
    %v1422 = vsel %vm1421, %v1419, %v1412
    %v1423 = vsel %vm1421, %v1420, %v1414
    %v1425 = vlaneseq
    %v1426 = vshrl.u32 %v1425, 7
    %v1427 = vsub.s32 0, %v1426
    %v1428 = vrot.slane %v596, %v1427
    %v1431 = vsel %vm362, %v1422, 0
    %v1434 = vsel %vm362, %v1423, 0
    %1436 = vmatprep.subr.mxu0 0.0
    %1437 = vmatpush1.msra.mxu0 %v592
    %1438 = vmatprep.subr.mxu0 0.0
    %1439 = vmatpush1.msra.mxu0 %v593
    %1440 = vmatprep.subr.mxu0 0.0
    %1441 = vmatpush1.msra.mxu0 %v594
    %1442 = vmatprep.subr.mxu0 0.0
    %1443 = vmatpush1.msra.mxu0 %v595
    %1444 = vmatprep.subr.mxu0 0.0
    %1445 = vmatpush1.msra.mxu0 0.0
    %1446 = vmatprep.subr.mxu0 0.0
    %1447 = vmatpush1.msra.mxu0 0.0
    %1448 = vmatprep.subr.mxu0 0.0
    %1449 = vmatpush1.msra.mxu0 0.0
    %1450 = vmatprep.subr.mxu0 0.0
    %1451 = vmatpush1.msra.mxu0 0.0
    %1452 = vmatprep.subr.mxu0 0.0
    %1453 = vmatpush1.msra.mxu0 0.0
    %1454 = vmatprep.subr.mxu0 0.0
    %1455 = vmatpush1.msra.mxu0 0.0
    %1456 = vmatprep.subr.mxu0 0.0
    %1457 = vmatpush1.msra.mxu0 0.0
    %1458 = vmatprep.subr.mxu0 0.0
    %1459 = vmatpush1.msra.mxu0 0.0
    %1460 = vmatprep.subr.mxu0 0.0
    %1461 = vmatpush1.msra.mxu0 0.0
    %1462 = vmatprep.subr.mxu0 0.0
    %1463 = vmatpush1.msra.mxu0 0.0
    %1464 = vmatprep.subr.mxu0 0.0
    %1465 = vmatpush1.msra.mxu0 0.0
    %1466 = vmatprep.subr.mxu0 0.0
    %1467 = vmatpush1.msra.mxu0 0.0
    %1468 = vmatprep.subr.mxu0 0.0
    %1469 = vmatpush1.msra.mxu0 0.0
    %1470 = vmatprep.subr.mxu0 0.0
    %1471 = vmatpush1.msra.mxu0 0.0
    %1472 = vmatprep.subr.mxu0 0.0
    %1473 = vmatpush1.msra.mxu0 0.0
    %1474 = vmatprep.subr.mxu0 0.0
    %1475 = vmatpush1.msra.mxu0 0.0
    %1476 = vmatprep.subr.mxu0 0.0
    %1477 = vmatpush1.msra.mxu0 0.0
    %1478 = vmatprep.subr.mxu0 0.0
    %1479 = vmatpush1.msra.mxu0 0.0
    %1480 = vmatprep.subr.mxu0 0.0
    %1481 = vmatpush1.msra.mxu0 0.0
    %1482 = vmatprep.subr.mxu0 0.0
    %1483 = vmatpush1.msra.mxu0 0.0
    %1484 = vmatprep.subr.mxu0 0.0
    %1485 = vmatpush1.msra.mxu0 0.0
    %1486 = vmatprep.subr.mxu0 0.0
    %1487 = vmatpush1.msra.mxu0 0.0
    %1488 = vmatprep.subr.mxu0 0.0
    %1489 = vmatpush1.msra.mxu0 0.0
    %1490 = vmatprep.subr.mxu0 0.0
    %1491 = vmatpush1.msra.mxu0 0.0
    %1492 = vmatprep.subr.mxu0 0.0
    %1493 = vmatpush1.msra.mxu0 0.0
    %1494 = vmatprep.subr.mxu0 0.0
    %1495 = vmatpush1.msra.mxu0 0.0
    %1496 = vmatprep.subr.mxu0 0.0
    %1497 = vmatpush1.msra.mxu0 0.0
    %1498 = vmatprep.subr.mxu0 0.0
    %1499 = vmatpush1.msra.mxu0 0.0
    %1500 = vmatprep.mubr.f32.mxu0 0.0
    %1501 = vmatmul.mubr.f32.gmra.mrb[0].mxu0 %v1431
    %v1502 = vpop.f32.mrb[0].mxu0
    %v1503 = vadd.f32 %v1428, %v1502
    %v1504 = vpop.f32.mrb[0].mxu0
    %1505 = vmatprep.mubr.f32.mxu0 0.0
    %1506 = vmatmul.mubr.f32.gmra.mrb[0].mxu0 %v1434
    %v1507 = vpop.f32.mrb[0].mxu0
    %v1508 = vadd.f32 %v1428, %v1507
    %v1509 = vpop.f32.mrb[0].mxu0
    %1510 = vdwg.mxu0
    %v1511 = vadd.f32 %v335, %v1503
    %v1512 = vadd.f32 %v336, %v1508
    %v1513 = vld [vmem:[#allocation23] sm:$0x1]
    %v1514 = vld [vmem:[#allocation25] sm:$0x1]
    %v1515 = vsel %vm362, %v1511, 0.0
    %1516 = vadd.xlane.f32.xlu0 %v1515
    %v1517 = vpop.xlane.xlu0 %1516
    %v1518 = vsel %vm362, %v1512, 0.0
    %1519 = vadd.xlane.f32.xlu0 %v1518
    %v1520 = vpop.xlane.xlu0 %1519
    %v1521 = vmul.f32 %v1517, %v369
    %v1522 = vmul.f32 %v1520, %v369
    %v1523 = vsub.f32 %v1511, %v1521
    %v1524 = vsub.f32 %v1512, %v1522
    %v1525 = vmul.f32 %v1523, %v1523
    %v1526 = vmul.f32 %v1524, %v1524
    %v1527 = vsel %vm362, %v1525, 0.0
    %1528 = vadd.xlane.f32.xlu0 %v1527
    %v1529 = vpop.xlane.xlu0 %1528
    %v1530 = vsel %vm362, %v1526, 0.0
    %1531 = vadd.xlane.f32.xlu0 %v1530
    %v1532 = vpop.xlane.xlu0 %1531
    %v1533 = vmul.f32 %v1529, %v369
    %v1534 = vmul.f32 %v1532, %v369
    %v1535 = vadd.f32 %v1533, 1e-05
    %v1536 = vadd.f32 %v1534, 1e-05
    %v1537 = vrsqrt.pop %v1535
    %v1538 = vrsqrt.pop %v1536
    %v1539 = vmul.f32 %v1523, %v1537
    %v1540 = vmul.f32 %v1524, %v1538
    %v1542 = vlaneseq
    %v1543 = vshrl.u32 %v1542, 7
    %v1544 = vsub.s32 0, %v1543
    %v1545 = vrot.slane %v1513, %v1544
    %v1547 = vmul.f32 %v1539, %v1545
    %v1548 = vmul.f32 %v1540, %v1545
    %v1550 = vlaneseq
    %v1551 = vshrl.u32 %v1550, 7
    %v1552 = vsub.s32 0, %v1551
    %v1553 = vrot.slane %v1514, %v1552
    %v1555 = vadd.f32 %v1547, %v1553
    %v1556 = vadd.f32 %v1548, %v1553
    %v1557 = vadd.f32 %v1555, %v341
    %v1558 = vadd.f32 %v1556, %v342
    %v1559 = vld [vmem:[#allocation8] sm:$0xff]
    %v1560 = vld [vmem:[#allocation8 + $0x8] sm:$0xff]
    %v1561 = vld [vmem:[#allocation8 + $0x10] sm:$0xff]
    %v1562 = vld [vmem:[#allocation8 + $0x18] sm:$0xff]
    %v1563 = vld [vmem:[#allocation10] sm:$0x1]
    %v1565 = vlaneseq
    %v1566 = vshrl.u32 %v1565, 7
    %v1567 = vsub.s32 0, %v1566
    %v1568 = vrot.slane %v1563, %v1567
    %v1571 = vsel %vm362, %v1557, 0
    %v1574 = vsel %vm362, %v1558, 0
    %1576 = vmatprep.subr.mxu0 0.0
    %1577 = vmatpush1.msra.mxu0 %v1559
    %1578 = vmatprep.subr.mxu0 0.0
    %1579 = vmatpush1.msra.mxu0 %v1560
    %1580 = vmatprep.subr.mxu0 0.0
    %1581 = vmatpush1.msra.mxu0 %v1561
    %1582 = vmatprep.subr.mxu0 0.0
    %1583 = vmatpush1.msra.mxu0 %v1562
    %1584 = vmatprep.subr.mxu0 0.0
    %1585 = vmatpush1.msra.mxu0 0.0
    %1586 = vmatprep.subr.mxu0 0.0
    %1587 = vmatpush1.msra.mxu0 0.0
    %1588 = vmatprep.subr.mxu0 0.0
    %1589 = vmatpush1.msra.mxu0 0.0
    %1590 = vmatprep.subr.mxu0 0.0
    %1591 = vmatpush1.msra.mxu0 0.0
    %1592 = vmatprep.subr.mxu0 0.0
    %1593 = vmatpush1.msra.mxu0 0.0
    %1594 = vmatprep.subr.mxu0 0.0
    %1595 = vmatpush1.msra.mxu0 0.0
    %1596 = vmatprep.subr.mxu0 0.0
    %1597 = vmatpush1.msra.mxu0 0.0
    %1598 = vmatprep.subr.mxu0 0.0
    %1599 = vmatpush1.msra.mxu0 0.0
    %1600 = vmatprep.subr.mxu0 0.0
    %1601 = vmatpush1.msra.mxu0 0.0
    %1602 = vmatprep.subr.mxu0 0.0
    %1603 = vmatpush1.msra.mxu0 0.0
    %1604 = vmatprep.subr.mxu0 0.0
    %1605 = vmatpush1.msra.mxu0 0.0
    %1606 = vmatprep.subr.mxu0 0.0
    %1607 = vmatpush1.msra.mxu0 0.0
    %1608 = vmatprep.subr.mxu0 0.0
    %1609 = vmatpush1.msra.mxu0 0.0
    %1610 = vmatprep.subr.mxu0 0.0
    %1611 = vmatpush1.msra.mxu0 0.0
    %1612 = vmatprep.subr.mxu0 0.0
    %1613 = vmatpush1.msra.mxu0 0.0
    %1614 = vmatprep.subr.mxu0 0.0
    %1615 = vmatpush1.msra.mxu0 0.0
    %1616 = vmatprep.subr.mxu0 0.0
    %1617 = vmatpush1.msra.mxu0 0.0
    %1618 = vmatprep.subr.mxu0 0.0
    %1619 = vmatpush1.msra.mxu0 0.0
    %1620 = vmatprep.subr.mxu0 0.0
    %1621 = vmatpush1.msra.mxu0 0.0
    %1622 = vmatprep.subr.mxu0 0.0
    %1623 = vmatpush1.msra.mxu0 0.0
    %1624 = vmatprep.subr.mxu0 0.0
    %1625 = vmatpush1.msra.mxu0 0.0
    %1626 = vmatprep.subr.mxu0 0.0
    %1627 = vmatpush1.msra.mxu0 0.0
    %1628 = vmatprep.subr.mxu0 0.0
    %1629 = vmatpush1.msra.mxu0 0.0
    %1630 = vmatprep.subr.mxu0 0.0
    %1631 = vmatpush1.msra.mxu0 0.0
    %1632 = vmatprep.subr.mxu0 0.0
    %1633 = vmatpush1.msra.mxu0 0.0
    %1634 = vmatprep.subr.mxu0 0.0
    %1635 = vmatpush1.msra.mxu0 0.0
    %1636 = vmatprep.subr.mxu0 0.0
    %1637 = vmatpush1.msra.mxu0 0.0
    %1638 = vmatprep.subr.mxu0 0.0
    %1639 = vmatpush1.msra.mxu0 0.0
    %1640 = vmatprep.mubr.f32.mxu0 0.0
    %1641 = vmatmul.mubr.f32.gmra.mrb[0].mxu0 %v1571
    %v1642 = vpop.f32.mrb[0].mxu0
    %v1643 = vadd.f32 %v1568, %v1642
    %v1644 = vpop.f32.mrb[0].mxu0
    %1645 = vmatprep.mubr.f32.mxu0 0.0
    %1646 = vmatmul.mubr.f32.gmra.mrb[0].mxu0 %v1574
    %v1647 = vpop.f32.mrb[0].mxu0
    %v1648 = vadd.f32 %v1568, %v1647
    %v1649 = vpop.f32.mrb[0].mxu0
    %1650 = vdwg.mxu0
    %v1651 = vadd.f32 %v337, %v343
    %v1652 = vadd.f32 %v338, %v344
    %v1653 = vadd.f32 %v339, %v345
    %v1654 = vadd.f32 %v340, %v346
    %v1655 = vld [vmem:[#allocation11] sm:$0xff]
    %v1656 = vld [vmem:[#allocation11 + $0x8] sm:$0xff]
    %v1657 = vld [vmem:[#allocation11 + $0x10] sm:$0xff]
    %v1658 = vld [vmem:[#allocation11 + $0x18] sm:$0xff]
    %v1659 = vld [vmem:[#allocation13] sm:$0x1]
    %v1661 = vlaneseq
    %v1662 = vshrl.u32 %v1661, 7
    %v1663 = vsub.s32 0, %v1662
    %v1664 = vrot.slane %v1659, %v1663
    %v1667 = vsel %vm362, %v1651, 0
    %v1670 = vsel %vm362, %v1652, 0
    %v1673 = vsel %vm362, %v1653, 0
    %v1676 = vsel %vm362, %v1654, 0
    %1678 = vmatprep.subr.mxu0 0.0
    %1679 = vmatpush1.msra.mxu0 %v1655
    %1680 = vmatprep.subr.mxu0 0.0
    %1681 = vmatpush1.msra.mxu0 %v1656
    %1682 = vmatprep.subr.mxu0 0.0
    %1683 = vmatpush1.msra.mxu0 %v1657
    %1684 = vmatprep.subr.mxu0 0.0
    %1685 = vmatpush1.msra.mxu0 %v1658
    %1686 = vmatprep.subr.mxu0 0.0
    %1687 = vmatpush1.msra.mxu0 0.0
    %1688 = vmatprep.subr.mxu0 0.0
    %1689 = vmatpush1.msra.mxu0 0.0
    %1690 = vmatprep.subr.mxu0 0.0
    %1691 = vmatpush1.msra.mxu0 0.0
    %1692 = vmatprep.subr.mxu0 0.0
    %1693 = vmatpush1.msra.mxu0 0.0
    %1694 = vmatprep.subr.mxu0 0.0
    %1695 = vmatpush1.msra.mxu0 0.0
    %1696 = vmatprep.subr.mxu0 0.0
    %1697 = vmatpush1.msra.mxu0 0.0
    %1698 = vmatprep.subr.mxu0 0.0
    %1699 = vmatpush1.msra.mxu0 0.0
    %1700 = vmatprep.subr.mxu0 0.0
    %1701 = vmatpush1.msra.mxu0 0.0
    %1702 = vmatprep.subr.mxu0 0.0
    %1703 = vmatpush1.msra.mxu0 0.0
    %1704 = vmatprep.subr.mxu0 0.0
    %1705 = vmatpush1.msra.mxu0 0.0
    %1706 = vmatprep.subr.mxu0 0.0
    %1707 = vmatpush1.msra.mxu0 0.0
    %1708 = vmatprep.subr.mxu0 0.0
    %1709 = vmatpush1.msra.mxu0 0.0
    %1710 = vmatprep.subr.mxu0 0.0
    %1711 = vmatpush1.msra.mxu0 0.0
    %1712 = vmatprep.subr.mxu0 0.0
    %1713 = vmatpush1.msra.mxu0 0.0
    %1714 = vmatprep.subr.mxu0 0.0
    %1715 = vmatpush1.msra.mxu0 0.0
    %1716 = vmatprep.subr.mxu0 0.0
    %1717 = vmatpush1.msra.mxu0 0.0
    %1718 = vmatprep.subr.mxu0 0.0
    %1719 = vmatpush1.msra.mxu0 0.0
    %1720 = vmatprep.subr.mxu0 0.0
    %1721 = vmatpush1.msra.mxu0 0.0
    %1722 = vmatprep.subr.mxu0 0.0
    %1723 = vmatpush1.msra.mxu0 0.0
    %1724 = vmatprep.subr.mxu0 0.0
    %1725 = vmatpush1.msra.mxu0 0.0
    %1726 = vmatprep.subr.mxu0 0.0
    %1727 = vmatpush1.msra.mxu0 0.0
    %1728 = vmatprep.subr.mxu0 0.0
    %1729 = vmatpush1.msra.mxu0 0.0
    %1730 = vmatprep.subr.mxu0 0.0
    %1731 = vmatpush1.msra.mxu0 0.0
    %1732 = vmatprep.subr.mxu0 0.0
    %1733 = vmatpush1.msra.mxu0 0.0
    %1734 = vmatprep.subr.mxu0 0.0
    %1735 = vmatpush1.msra.mxu0 0.0
    %1736 = vmatprep.subr.mxu0 0.0
    %1737 = vmatpush1.msra.mxu0 0.0
    %1738 = vmatprep.subr.mxu0 0.0
    %1739 = vmatpush1.msra.mxu0 0.0
    %1740 = vmatprep.subr.mxu0 0.0
    %1741 = vmatpush1.msra.mxu0 0.0
    %1742 = vmatprep.mubr.f32.mxu0 0.0
    %1743 = vmatmul.mubr.f32.gmra.mrb[0].mxu0 %v1667
    %v1744 = vpop.f32.mrb[0].mxu0
    %v1745 = vadd.f32 %v1664, %v1744
    %v1746 = vpop.f32.mrb[0].mxu0
    %1747 = vmatprep.mubr.f32.mxu0 0.0
    %1748 = vmatmul.mubr.f32.gmra.mrb[0].mxu0 %v1670
    %v1749 = vpop.f32.mrb[0].mxu0
    %v1750 = vadd.f32 %v1664, %v1749
    %v1751 = vpop.f32.mrb[0].mxu0
    %1752 = vmatprep.mubr.f32.mxu0 0.0
    %1753 = vmatmul.mubr.f32.gmra.mrb[0].mxu0 %v1673
    %v1754 = vpop.f32.mrb[0].mxu0
    %v1755 = vadd.f32 %v1664, %v1754
    %v1756 = vpop.f32.mrb[0].mxu0
    %1757 = vmatprep.mubr.f32.mxu0 0.0
    %1758 = vmatmul.mubr.f32.gmra.mrb[0].mxu0 %v1676
    %v1759 = vpop.f32.mrb[0].mxu0
    %v1760 = vadd.f32 %v1664, %v1759
    %v1761 = vpop.f32.mrb[0].mxu0
    %1762 = vdwg.mxu0
    %v1763 = vld [vmem:[#allocation14] sm:$0xff]
    %v1764 = vld [vmem:[#allocation14 + $0x8] sm:$0xff]
    %v1765 = vld [vmem:[#allocation14 + $0x10] sm:$0xff]
    %v1766 = vld [vmem:[#allocation14 + $0x18] sm:$0xff]
    %v1767 = vld [vmem:[#allocation16] sm:$0x1]
    %v1769 = vlaneseq
    %v1770 = vshrl.u32 %v1769, 7
    %v1771 = vsub.s32 0, %v1770
    %v1772 = vrot.slane %v1767, %v1771
    %v1775 = vsel %vm362, %v337, 0
    %v1778 = vsel %vm362, %v338, 0
    %v1781 = vsel %vm362, %v339, 0
    %v1784 = vsel %vm362, %v340, 0
    %1786 = vmatprep.subr.mxu0 0.0
    %1787 = vmatpush1.msra.mxu0 %v1763
    %1788 = vmatprep.subr.mxu0 0.0
    %1789 = vmatpush1.msra.mxu0 %v1764
    %1790 = vmatprep.subr.mxu0 0.0
    %1791 = vmatpush1.msra.mxu0 %v1765
    %1792 = vmatprep.subr.mxu0 0.0
    %1793 = vmatpush1.msra.mxu0 %v1766
    %1794 = vmatprep.subr.mxu0 0.0
    %1795 = vmatpush1.msra.mxu0 0.0
    %1796 = vmatprep.subr.mxu0 0.0
    %1797 = vmatpush1.msra.mxu0 0.0
    %1798 = vmatprep.subr.mxu0 0.0
    %1799 = vmatpush1.msra.mxu0 0.0
    %1800 = vmatprep.subr.mxu0 0.0
    %1801 = vmatpush1.msra.mxu0 0.0
    %1802 = vmatprep.subr.mxu0 0.0
    %1803 = vmatpush1.msra.mxu0 0.0
    %1804 = vmatprep.subr.mxu0 0.0
    %1805 = vmatpush1.msra.mxu0 0.0
    %1806 = vmatprep.subr.mxu0 0.0
    %1807 = vmatpush1.msra.mxu0 0.0
    %1808 = vmatprep.subr.mxu0 0.0
    %1809 = vmatpush1.msra.mxu0 0.0
    %1810 = vmatprep.subr.mxu0 0.0
    %1811 = vmatpush1.msra.mxu0 0.0
    %1812 = vmatprep.subr.mxu0 0.0
    %1813 = vmatpush1.msra.mxu0 0.0
    %1814 = vmatprep.subr.mxu0 0.0
    %1815 = vmatpush1.msra.mxu0 0.0
    %1816 = vmatprep.subr.mxu0 0.0
    %1817 = vmatpush1.msra.mxu0 0.0
    %1818 = vmatprep.subr.mxu0 0.0
    %1819 = vmatpush1.msra.mxu0 0.0
    %1820 = vmatprep.subr.mxu0 0.0
    %1821 = vmatpush1.msra.mxu0 0.0
    %1822 = vmatprep.subr.mxu0 0.0
    %1823 = vmatpush1.msra.mxu0 0.0
    %1824 = vmatprep.subr.mxu0 0.0
    %1825 = vmatpush1.msra.mxu0 0.0
    %1826 = vmatprep.subr.mxu0 0.0
    %1827 = vmatpush1.msra.mxu0 0.0
    %1828 = vmatprep.subr.mxu0 0.0
    %1829 = vmatpush1.msra.mxu0 0.0
    %1830 = vmatprep.subr.mxu0 0.0
    %1831 = vmatpush1.msra.mxu0 0.0
    %1832 = vmatprep.subr.mxu0 0.0
    %1833 = vmatpush1.msra.mxu0 0.0
    %1834 = vmatprep.subr.mxu0 0.0
    %1835 = vmatpush1.msra.mxu0 0.0
    %1836 = vmatprep.subr.mxu0 0.0
    %1837 = vmatpush1.msra.mxu0 0.0
    %1838 = vmatprep.subr.mxu0 0.0
    %1839 = vmatpush1.msra.mxu0 0.0
    %1840 = vmatprep.subr.mxu0 0.0
    %1841 = vmatpush1.msra.mxu0 0.0
    %1842 = vmatprep.subr.mxu0 0.0
    %1843 = vmatpush1.msra.mxu0 0.0
    %1844 = vmatprep.subr.mxu0 0.0
    %1845 = vmatpush1.msra.mxu0 0.0
    %1846 = vmatprep.subr.mxu0 0.0
    %1847 = vmatpush1.msra.mxu0 0.0
    %1848 = vmatprep.subr.mxu0 0.0
    %1849 = vmatpush1.msra.mxu0 0.0
    %1850 = vmatprep.mubr.f32.mxu0 0.0
    %1851 = vmatmul.mubr.f32.gmra.mrb[0].mxu0 %v1775
    %v1852 = vpop.f32.mrb[0].mxu0
    %v1853 = vadd.f32 %v1772, %v1852
    %v1854 = vpop.f32.mrb[0].mxu0
    %1855 = vmatprep.mubr.f32.mxu0 0.0
    %1856 = vmatmul.mubr.f32.gmra.mrb[0].mxu0 %v1778
    %v1857 = vpop.f32.mrb[0].mxu0
    %v1858 = vadd.f32 %v1772, %v1857
    %v1859 = vpop.f32.mrb[0].mxu0
    %1860 = vmatprep.mubr.f32.mxu0 0.0
    %1861 = vmatmul.mubr.f32.gmra.mrb[0].mxu0 %v1781
    %v1862 = vpop.f32.mrb[0].mxu0
    %v1863 = vadd.f32 %v1772, %v1862
    %v1864 = vpop.f32.mrb[0].mxu0
    %1865 = vmatprep.mubr.f32.mxu0 0.0
    %1866 = vmatmul.mubr.f32.gmra.mrb[0].mxu0 %v1784
    %v1867 = vpop.f32.mrb[0].mxu0
    %v1868 = vadd.f32 %v1772, %v1867
    %v1869 = vpop.f32.mrb[0].mxu0
    %1870 = vdwg.mxu0
    %v1871 = vld [vmem:[#allocation17] sm:$0xff]
    %v1872 = vld [vmem:[#allocation17 + $0x8] sm:$0xff]
    %v1873 = vld [vmem:[#allocation17 + $0x10] sm:$0xff]
    %v1874 = vld [vmem:[#allocation17 + $0x18] sm:$0xff]
    %v1875 = vld [vmem:[#allocation19] sm:$0x1]
    %v1877 = vsel %vm603, %v1643, 0
    %v1880 = vsel %vm603, %v1648, 0
    %v1883 = vsel %vm603, %v1745, 0
    %v1886 = vsel %vm603, %v1750, 0
    %v1889 = vsel %vm603, %v1755, 0
    %v1892 = vsel %vm603, %v1760, 0
    %1894 = vmatprep.subr.mxu0 0.0
    %1895 = vmatpush1.xpose.msra.mxu0 %v1883
    %1896 = vmatprep.subr.mxu0 0.0
    %1897 = vmatpush1.xpose.msra.mxu0 %v1886
    %1898 = vmatprep.subr.mxu0 0.0
    %1899 = vmatpush1.xpose.msra.mxu0 %v1889
    %1900 = vmatprep.subr.mxu0 0.0
    %1901 = vmatpush1.xpose.msra.mxu0 %v1892
    %1902 = vmatprep.subr.mxu0 0.0
    %1903 = vmatpush1.xpose.msra.mxu0 0.0
    %1904 = vmatprep.subr.mxu0 0.0
    %1905 = vmatpush1.xpose.msra.mxu0 0.0
    %1906 = vmatprep.subr.mxu0 0.0
    %1907 = vmatpush1.xpose.msra.mxu0 0.0
    %1908 = vmatprep.subr.mxu0 0.0
    %1909 = vmatpush1.xpose.msra.mxu0 0.0
    %1910 = vmatprep.subr.mxu0 0.0
    %1911 = vmatpush1.xpose.msra.mxu0 0.0
    %1912 = vmatprep.subr.mxu0 0.0
    %1913 = vmatpush1.xpose.msra.mxu0 0.0
    %1914 = vmatprep.subr.mxu0 0.0
    %1915 = vmatpush1.xpose.msra.mxu0 0.0
    %1916 = vmatprep.subr.mxu0 0.0
    %1917 = vmatpush1.xpose.msra.mxu0 0.0
    %1918 = vmatprep.subr.mxu0 0.0
    %1919 = vmatpush1.xpose.msra.mxu0 0.0
    %1920 = vmatprep.subr.mxu0 0.0
    %1921 = vmatpush1.xpose.msra.mxu0 0.0
    %1922 = vmatprep.subr.mxu0 0.0
    %1923 = vmatpush1.xpose.msra.mxu0 0.0
    %1924 = vmatprep.subr.mxu0 0.0
    %1925 = vmatpush1.xpose.msra.mxu0 0.0
    %1926 = vmatprep.subr.mxu0 0.0
    %1927 = vmatpush1.xpose.msra.mxu0 0.0
    %1928 = vmatprep.subr.mxu0 0.0
    %1929 = vmatpush1.xpose.msra.mxu0 0.0
    %1930 = vmatprep.subr.mxu0 0.0
    %1931 = vmatpush1.xpose.msra.mxu0 0.0
    %1932 = vmatprep.subr.mxu0 0.0
    %1933 = vmatpush1.xpose.msra.mxu0 0.0
    %1934 = vmatprep.subr.mxu0 0.0
    %1935 = vmatpush1.xpose.msra.mxu0 0.0
    %1936 = vmatprep.subr.mxu0 0.0
    %1937 = vmatpush1.xpose.msra.mxu0 0.0
    %1938 = vmatprep.subr.mxu0 0.0
    %1939 = vmatpush1.xpose.msra.mxu0 0.0
    %1940 = vmatprep.subr.mxu0 0.0
    %1941 = vmatpush1.xpose.msra.mxu0 0.0
    %1942 = vmatprep.subr.mxu0 0.0
    %1943 = vmatpush1.xpose.msra.mxu0 0.0
    %1944 = vmatprep.subr.mxu0 0.0
    %1945 = vmatpush1.xpose.msra.mxu0 0.0
    %1946 = vmatprep.subr.mxu0 0.0
    %1947 = vmatpush1.xpose.msra.mxu0 0.0
    %1948 = vmatprep.subr.mxu0 0.0
    %1949 = vmatpush1.xpose.msra.mxu0 0.0
    %1950 = vmatprep.subr.mxu0 0.0
    %1951 = vmatpush1.xpose.msra.mxu0 0.0
    %1952 = vmatprep.subr.mxu0 0.0
    %1953 = vmatpush1.xpose.msra.mxu0 0.0
    %1954 = vmatprep.subr.mxu0 0.0
    %1955 = vmatpush1.xpose.msra.mxu0 0.0
    %1956 = vmatprep.subr.mxu0 0.0
    %1957 = vmatpush1.xpose.msra.mxu0 0.0
    %1958 = vmatprep.mubr.f32.mxu0 0.0
    %1959 = vmatmul.mubr.f32.gmra.mrb[0].mxu0 %v1877
    %v1960 = vpop.f32.mrb[0].mxu0
    %v1961 = vadd.f32 %v358, %v1960
    %v1962 = vpop.f32.mrb[0].mxu0
    %1963 = vmatprep.mubr.f32.mxu0 0.0
    %1964 = vmatmul.mubr.f32.gmra.mrb[0].mxu0 %v1880
    %v1965 = vpop.f32.mrb[0].mxu0
    %v1966 = vadd.f32 %v359, %v1965
    %v1967 = vpop.f32.mrb[0].mxu0
    %1968 = vdwg.mxu0
    %v1969 = vsel %vm362, %v1961, -inf
    %1970 = vmax.xlane.f32.xlu0 %v1969
    %v1971 = vpop.xlane.xlu0 %1970
    %v1972 = vsel %vm362, %v1966, -inf
    %1973 = vmax.xlane.f32.xlu0 %v1972
    %v1974 = vpop.xlane.xlu0 %1973
    %v1975 = vsub.f32 %v1961, %v1971
    %v1976 = vsub.f32 %v1966, %v1974
    %v1977 = vmul.f32 %v1975, 1.442695
    %v1978 = vpow.pop %v1977
    %v1979 = vmul.f32 %v1976, 1.442695
    %v1980 = vpow.pop %v1979
    %v1981 = vsel %vm362, %v1978, 0.0
    %1982 = vadd.xlane.f32.xlu0 %v1981
    %v1983 = vpop.xlane.xlu0 %1982
    %v1984 = vsel %vm362, %v1980, 0.0
    %1985 = vadd.xlane.f32.xlu0 %v1984
    %v1986 = vpop.xlane.xlu0 %1985
    %v1987 = vrcp.pop %v1983
    %v1988 = vmul.f32 %v1978, %v1987
    %v1989 = vrcp.pop %v1986
    %v1990 = vmul.f32 %v1980, %v1989
    %v1992 = vsel %vm362, %v1988, 0
    %v1995 = vsel %vm362, %v1990, 0
    %1997 = vmatprep.subr.mxu0 0.0
    %1998 = vmatpush1.msra.mxu0 %v1853
    %1999 = vmatprep.subr.mxu0 0.0
    %2000 = vmatpush1.msra.mxu0 %v1858
    %2001 = vmatprep.subr.mxu0 0.0
    %2002 = vmatpush1.msra.mxu0 %v1863
    %2003 = vmatprep.subr.mxu0 0.0
    %2004 = vmatpush1.msra.mxu0 %v1868
    %2005 = vmatprep.subr.mxu0 0.0
    %2006 = vmatpush1.msra.mxu0 0.0
    %2007 = vmatprep.subr.mxu0 0.0
    %2008 = vmatpush1.msra.mxu0 0.0
    %2009 = vmatprep.subr.mxu0 0.0
    %2010 = vmatpush1.msra.mxu0 0.0
    %2011 = vmatprep.subr.mxu0 0.0
    %2012 = vmatpush1.msra.mxu0 0.0
    %2013 = vmatprep.subr.mxu0 0.0
    %2014 = vmatpush1.msra.mxu0 0.0
    %2015 = vmatprep.subr.mxu0 0.0
    %2016 = vmatpush1.msra.mxu0 0.0
    %2017 = vmatprep.subr.mxu0 0.0
    %2018 = vmatpush1.msra.mxu0 0.0
    %2019 = vmatprep.subr.mxu0 0.0
    %2020 = vmatpush1.msra.mxu0 0.0
    %2021 = vmatprep.subr.mxu0 0.0
    %2022 = vmatpush1.msra.mxu0 0.0
    %2023 = vmatprep.subr.mxu0 0.0
    %2024 = vmatpush1.msra.mxu0 0.0
    %2025 = vmatprep.subr.mxu0 0.0
    %2026 = vmatpush1.msra.mxu0 0.0
    %2027 = vmatprep.subr.mxu0 0.0
    %2028 = vmatpush1.msra.mxu0 0.0
    %2029 = vmatprep.subr.mxu0 0.0
    %2030 = vmatpush1.msra.mxu0 0.0
    %2031 = vmatprep.subr.mxu0 0.0
    %2032 = vmatpush1.msra.mxu0 0.0
    %2033 = vmatprep.subr.mxu0 0.0
    %2034 = vmatpush1.msra.mxu0 0.0
    %2035 = vmatprep.subr.mxu0 0.0
    %2036 = vmatpush1.msra.mxu0 0.0
    %2037 = vmatprep.subr.mxu0 0.0
    %2038 = vmatpush1.msra.mxu0 0.0
    %2039 = vmatprep.subr.mxu0 0.0
    %2040 = vmatpush1.msra.mxu0 0.0
    %2041 = vmatprep.subr.mxu0 0.0
    %2042 = vmatpush1.msra.mxu0 0.0
    %2043 = vmatprep.subr.mxu0 0.0
    %2044 = vmatpush1.msra.mxu0 0.0
    %2045 = vmatprep.subr.mxu0 0.0
    %2046 = vmatpush1.msra.mxu0 0.0
    %2047 = vmatprep.subr.mxu0 0.0
    %2048 = vmatpush1.msra.mxu0 0.0
    %2049 = vmatprep.subr.mxu0 0.0
    %2050 = vmatpush1.msra.mxu0 0.0
    %2051 = vmatprep.subr.mxu0 0.0
    %2052 = vmatpush1.msra.mxu0 0.0
    %2053 = vmatprep.subr.mxu0 0.0
    %2054 = vmatpush1.msra.mxu0 0.0
    %2055 = vmatprep.subr.mxu0 0.0
    %2056 = vmatpush1.msra.mxu0 0.0
    %2057 = vmatprep.subr.mxu0 0.0
    %2058 = vmatpush1.msra.mxu0 0.0
    %2059 = vmatprep.subr.mxu0 0.0
    %2060 = vmatpush1.msra.mxu0 0.0
    %2061 = vmatprep.mubr.f32.mxu0 0.0
    %2062 = vmatmul.mubr.f32.gmra.mrb[0].mxu0 %v1992
    %v2063 = vpop.f32.mrb[0].mxu0
    %v2064 = vadd.f32 0.0, %v2063
    %v2065 = vpop.f32.mrb[0].mxu0
    %2066 = vmatprep.mubr.f32.mxu0 0.0
    %2067 = vmatmul.mubr.f32.gmra.mrb[0].mxu0 %v1995
    %v2068 = vpop.f32.mrb[0].mxu0
    %v2069 = vadd.f32 0.0, %v2068
    %v2070 = vpop.f32.mrb[0].mxu0
    %2071 = vdwg.mxu0
    %2072 = vrot.lane.b32.xlu0 %v1643, 120
    %v2073 = vpop.permute.xlu0 %2072
    %2074 = vrot.lane.b32.xlu0 %v1648, 120
    %v2075 = vpop.permute.xlu0 %2074
    %2076 = vrot.lane.b32.xlu0 %v1745, 120
    %v2077 = vpop.permute.xlu0 %2076
    %2078 = vrot.lane.b32.xlu0 %v1750, 120
    %v2079 = vpop.permute.xlu0 %2078
    %2080 = vrot.lane.b32.xlu0 %v1755, 120
    %v2081 = vpop.permute.xlu0 %2080
    %2082 = vrot.lane.b32.xlu0 %v1760, 120
    %v2083 = vpop.permute.xlu0 %2082
    %v2084 = vsel %vm603, %v2073, 0
    %v2086 = vsel %vm603, %v2075, 0
    %v2088 = vsel %vm603, %v2077, 0
    %v2090 = vsel %vm603, %v2079, 0
    %v2092 = vsel %vm603, %v2081, 0
    %v2094 = vsel %vm603, %v2083, 0
    %2096 = vmatprep.subr.mxu0 0.0
    %2097 = vmatpush1.xpose.msra.mxu0 %v2088
    %2098 = vmatprep.subr.mxu0 0.0
    %2099 = vmatpush1.xpose.msra.mxu0 %v2090
    %2100 = vmatprep.subr.mxu0 0.0
    %2101 = vmatpush1.xpose.msra.mxu0 %v2092
    %2102 = vmatprep.subr.mxu0 0.0
    %2103 = vmatpush1.xpose.msra.mxu0 %v2094
    %2104 = vmatprep.subr.mxu0 0.0
    %2105 = vmatpush1.xpose.msra.mxu0 0.0
    %2106 = vmatprep.subr.mxu0 0.0
    %2107 = vmatpush1.xpose.msra.mxu0 0.0
    %2108 = vmatprep.subr.mxu0 0.0
    %2109 = vmatpush1.xpose.msra.mxu0 0.0
    %2110 = vmatprep.subr.mxu0 0.0
    %2111 = vmatpush1.xpose.msra.mxu0 0.0
    %2112 = vmatprep.subr.mxu0 0.0
    %2113 = vmatpush1.xpose.msra.mxu0 0.0
    %2114 = vmatprep.subr.mxu0 0.0
    %2115 = vmatpush1.xpose.msra.mxu0 0.0
    %2116 = vmatprep.subr.mxu0 0.0
    %2117 = vmatpush1.xpose.msra.mxu0 0.0
    %2118 = vmatprep.subr.mxu0 0.0
    %2119 = vmatpush1.xpose.msra.mxu0 0.0
    %2120 = vmatprep.subr.mxu0 0.0
    %2121 = vmatpush1.xpose.msra.mxu0 0.0
    %2122 = vmatprep.subr.mxu0 0.0
    %2123 = vmatpush1.xpose.msra.mxu0 0.0
    %2124 = vmatprep.subr.mxu0 0.0
    %2125 = vmatpush1.xpose.msra.mxu0 0.0
    %2126 = vmatprep.subr.mxu0 0.0
    %2127 = vmatpush1.xpose.msra.mxu0 0.0
    %2128 = vmatprep.subr.mxu0 0.0
    %2129 = vmatpush1.xpose.msra.mxu0 0.0
    %2130 = vmatprep.subr.mxu0 0.0
    %2131 = vmatpush1.xpose.msra.mxu0 0.0
    %2132 = vmatprep.subr.mxu0 0.0
    %2133 = vmatpush1.xpose.msra.mxu0 0.0
    %2134 = vmatprep.subr.mxu0 0.0
    %2135 = vmatpush1.xpose.msra.mxu0 0.0
    %2136 = vmatprep.subr.mxu0 0.0
    %2137 = vmatpush1.xpose.msra.mxu0 0.0
    %2138 = vmatprep.subr.mxu0 0.0
    %2139 = vmatpush1.xpose.msra.mxu0 0.0
    %2140 = vmatprep.subr.mxu0 0.0
    %2141 = vmatpush1.xpose.msra.mxu0 0.0
    %2142 = vmatprep.subr.mxu0 0.0
    %2143 = vmatpush1.xpose.msra.mxu0 0.0
    %2144 = vmatprep.subr.mxu0 0.0
    %2145 = vmatpush1.xpose.msra.mxu0 0.0
    %2146 = vmatprep.subr.mxu0 0.0
    %2147 = vmatpush1.xpose.msra.mxu0 0.0
    %2148 = vmatprep.subr.mxu0 0.0
    %2149 = vmatpush1.xpose.msra.mxu0 0.0
    %2150 = vmatprep.subr.mxu0 0.0
    %2151 = vmatpush1.xpose.msra.mxu0 0.0
    %2152 = vmatprep.subr.mxu0 0.0
    %2153 = vmatpush1.xpose.msra.mxu0 0.0
    %2154 = vmatprep.subr.mxu0 0.0
    %2155 = vmatpush1.xpose.msra.mxu0 0.0
    %2156 = vmatprep.subr.mxu0 0.0
    %2157 = vmatpush1.xpose.msra.mxu0 0.0
    %2158 = vmatprep.subr.mxu0 0.0
    %2159 = vmatpush1.xpose.msra.mxu0 0.0
    %2160 = vmatprep.mubr.f32.mxu0 0.0
    %2161 = vmatmul.mubr.f32.gmra.mrb[0].mxu0 %v2084
    %v2162 = vpop.f32.mrb[0].mxu0
    %v2163 = vadd.f32 %v358, %v2162
    %v2164 = vpop.f32.mrb[0].mxu0
    %2165 = vmatprep.mubr.f32.mxu0 0.0
    %2166 = vmatmul.mubr.f32.gmra.mrb[0].mxu0 %v2086
    %v2167 = vpop.f32.mrb[0].mxu0
    %v2168 = vadd.f32 %v359, %v2167
    %v2169 = vpop.f32.mrb[0].mxu0
    %2170 = vdwg.mxu0
    %v2171 = vsel %vm362, %v2163, -inf
    %2172 = vmax.xlane.f32.xlu0 %v2171
    %v2173 = vpop.xlane.xlu0 %2172
    %v2174 = vsel %vm362, %v2168, -inf
    %2175 = vmax.xlane.f32.xlu0 %v2174
    %v2176 = vpop.xlane.xlu0 %2175
    %v2177 = vsub.f32 %v2163, %v2173
    %v2178 = vsub.f32 %v2168, %v2176
    %v2179 = vmul.f32 %v2177, 1.442695
    %v2180 = vpow.pop %v2179
    %v2181 = vmul.f32 %v2178, 1.442695
    %v2182 = vpow.pop %v2181
    %v2183 = vsel %vm362, %v2180, 0.0
    %2184 = vadd.xlane.f32.xlu0 %v2183
    %v2185 = vpop.xlane.xlu0 %2184
    %v2186 = vsel %vm362, %v2182, 0.0
    %2187 = vadd.xlane.f32.xlu0 %v2186
    %v2188 = vpop.xlane.xlu0 %2187
    %v2189 = vrcp.pop %v2185
    %v2190 = vmul.f32 %v2180, %v2189
    %v2191 = vrcp.pop %v2188
    %v2192 = vmul.f32 %v2182, %v2191
    %2197 = vrot.lane.b32.xlu0 %v1853, 120
    %v2198 = vpop.permute.xlu0 %2197
    %2199 = vrot.lane.b32.xlu0 %v1858, 120
    %v2200 = vpop.permute.xlu0 %2199
    %2201 = vrot.lane.b32.xlu0 %v1863, 120
    %v2202 = vpop.permute.xlu0 %2201
    %2203 = vrot.lane.b32.xlu0 %v1868, 120
    %v2204 = vpop.permute.xlu0 %2203
    %v2210 = vsel %vm362, %v2190, 0
    %v2213 = vsel %vm362, %v2192, 0
    %2215 = vmatprep.subr.mxu0 0.0
    %2216 = vmatpush1.msra.mxu0 %v2198
    %2217 = vmatprep.subr.mxu0 0.0
    %2218 = vmatpush1.msra.mxu0 %v2200
    %2219 = vmatprep.subr.mxu0 0.0
    %2220 = vmatpush1.msra.mxu0 %v2202
    %2221 = vmatprep.subr.mxu0 0.0
    %2222 = vmatpush1.msra.mxu0 %v2204
    %2223 = vmatprep.subr.mxu0 0.0
    %2224 = vmatpush1.msra.mxu0 0.0
    %2225 = vmatprep.subr.mxu0 0.0
    %2226 = vmatpush1.msra.mxu0 0.0
    %2227 = vmatprep.subr.mxu0 0.0
    %2228 = vmatpush1.msra.mxu0 0.0
    %2229 = vmatprep.subr.mxu0 0.0
    %2230 = vmatpush1.msra.mxu0 0.0
    %2231 = vmatprep.subr.mxu0 0.0
    %2232 = vmatpush1.msra.mxu0 0.0
    %2233 = vmatprep.subr.mxu0 0.0
    %2234 = vmatpush1.msra.mxu0 0.0
    %2235 = vmatprep.subr.mxu0 0.0
    %2236 = vmatpush1.msra.mxu0 0.0
    %2237 = vmatprep.subr.mxu0 0.0
    %2238 = vmatpush1.msra.mxu0 0.0
    %2239 = vmatprep.subr.mxu0 0.0
    %2240 = vmatpush1.msra.mxu0 0.0
    %2241 = vmatprep.subr.mxu0 0.0
    %2242 = vmatpush1.msra.mxu0 0.0
    %2243 = vmatprep.subr.mxu0 0.0
    %2244 = vmatpush1.msra.mxu0 0.0
    %2245 = vmatprep.subr.mxu0 0.0
    %2246 = vmatpush1.msra.mxu0 0.0
    %2247 = vmatprep.subr.mxu0 0.0
    %2248 = vmatpush1.msra.mxu0 0.0
    %2249 = vmatprep.subr.mxu0 0.0
    %2250 = vmatpush1.msra.mxu0 0.0
    %2251 = vmatprep.subr.mxu0 0.0
    %2252 = vmatpush1.msra.mxu0 0.0
    %2253 = vmatprep.subr.mxu0 0.0
    %2254 = vmatpush1.msra.mxu0 0.0
    %2255 = vmatprep.subr.mxu0 0.0
    %2256 = vmatpush1.msra.mxu0 0.0
    %2257 = vmatprep.subr.mxu0 0.0
    %2258 = vmatpush1.msra.mxu0 0.0
    %2259 = vmatprep.subr.mxu0 0.0
    %2260 = vmatpush1.msra.mxu0 0.0
    %2261 = vmatprep.subr.mxu0 0.0
    %2262 = vmatpush1.msra.mxu0 0.0
    %2263 = vmatprep.subr.mxu0 0.0
    %2264 = vmatpush1.msra.mxu0 0.0
    %2265 = vmatprep.subr.mxu0 0.0
    %2266 = vmatpush1.msra.mxu0 0.0
    %2267 = vmatprep.subr.mxu0 0.0
    %2268 = vmatpush1.msra.mxu0 0.0
    %2269 = vmatprep.subr.mxu0 0.0
    %2270 = vmatpush1.msra.mxu0 0.0
    %2271 = vmatprep.subr.mxu0 0.0
    %2272 = vmatpush1.msra.mxu0 0.0
    %2273 = vmatprep.subr.mxu0 0.0
    %2274 = vmatpush1.msra.mxu0 0.0
    %2275 = vmatprep.subr.mxu0 0.0
    %2276 = vmatpush1.msra.mxu0 0.0
    %2277 = vmatprep.subr.mxu0 0.0
    %2278 = vmatpush1.msra.mxu0 0.0
    %2279 = vmatprep.mubr.f32.mxu0 0.0
    %2280 = vmatmul.mubr.f32.gmra.mrb[0].mxu0 %v2210
    %v2281 = vpop.f32.mrb[0].mxu0
    %v2282 = vadd.f32 0.0, %v2281
    %v2283 = vpop.f32.mrb[0].mxu0
    %2284 = vmatprep.mubr.f32.mxu0 0.0
    %2285 = vmatmul.mubr.f32.gmra.mrb[0].mxu0 %v2213
    %v2286 = vpop.f32.mrb[0].mxu0
    %v2287 = vadd.f32 0.0, %v2286
    %v2288 = vpop.f32.mrb[0].mxu0
    %2289 = vdwg.mxu0
    %2290 = vrot.lane.b32.xlu0 %v1643, 112
    %v2291 = vpop.permute.xlu0 %2290
    %2292 = vrot.lane.b32.xlu0 %v1648, 112
    %v2293 = vpop.permute.xlu0 %2292
    %2294 = vrot.lane.b32.xlu0 %v1745, 112
    %v2295 = vpop.permute.xlu0 %2294
    %2296 = vrot.lane.b32.xlu0 %v1750, 112
    %v2297 = vpop.permute.xlu0 %2296
    %2298 = vrot.lane.b32.xlu0 %v1755, 112
    %v2299 = vpop.permute.xlu0 %2298
    %2300 = vrot.lane.b32.xlu0 %v1760, 112
    %v2301 = vpop.permute.xlu0 %2300
    %v2302 = vsel %vm603, %v2291, 0
    %v2304 = vsel %vm603, %v2293, 0
    %v2306 = vsel %vm603, %v2295, 0
    %v2308 = vsel %vm603, %v2297, 0
    %v2310 = vsel %vm603, %v2299, 0
    %v2312 = vsel %vm603, %v2301, 0
    %2314 = vmatprep.subr.mxu0 0.0
    %2315 = vmatpush1.xpose.msra.mxu0 %v2306
    %2316 = vmatprep.subr.mxu0 0.0
    %2317 = vmatpush1.xpose.msra.mxu0 %v2308
    %2318 = vmatprep.subr.mxu0 0.0
    %2319 = vmatpush1.xpose.msra.mxu0 %v2310
    %2320 = vmatprep.subr.mxu0 0.0
    %2321 = vmatpush1.xpose.msra.mxu0 %v2312
    %2322 = vmatprep.subr.mxu0 0.0
    %2323 = vmatpush1.xpose.msra.mxu0 0.0
    %2324 = vmatprep.subr.mxu0 0.0
    %2325 = vmatpush1.xpose.msra.mxu0 0.0
    %2326 = vmatprep.subr.mxu0 0.0
    %2327 = vmatpush1.xpose.msra.mxu0 0.0
    %2328 = vmatprep.subr.mxu0 0.0
    %2329 = vmatpush1.xpose.msra.mxu0 0.0
    %2330 = vmatprep.subr.mxu0 0.0
    %2331 = vmatpush1.xpose.msra.mxu0 0.0
    %2332 = vmatprep.subr.mxu0 0.0
    %2333 = vmatpush1.xpose.msra.mxu0 0.0
    %2334 = vmatprep.subr.mxu0 0.0
    %2335 = vmatpush1.xpose.msra.mxu0 0.0
    %2336 = vmatprep.subr.mxu0 0.0
    %2337 = vmatpush1.xpose.msra.mxu0 0.0
    %2338 = vmatprep.subr.mxu0 0.0
    %2339 = vmatpush1.xpose.msra.mxu0 0.0
    %2340 = vmatprep.subr.mxu0 0.0
    %2341 = vmatpush1.xpose.msra.mxu0 0.0
    %2342 = vmatprep.subr.mxu0 0.0
    %2343 = vmatpush1.xpose.msra.mxu0 0.0
    %2344 = vmatprep.subr.mxu0 0.0
    %2345 = vmatpush1.xpose.msra.mxu0 0.0
    %2346 = vmatprep.subr.mxu0 0.0
    %2347 = vmatpush1.xpose.msra.mxu0 0.0
    %2348 = vmatprep.subr.mxu0 0.0
    %2349 = vmatpush1.xpose.msra.mxu0 0.0
    %2350 = vmatprep.subr.mxu0 0.0
    %2351 = vmatpush1.xpose.msra.mxu0 0.0
    %2352 = vmatprep.subr.mxu0 0.0
    %2353 = vmatpush1.xpose.msra.mxu0 0.0
    %2354 = vmatprep.subr.mxu0 0.0
    %2355 = vmatpush1.xpose.msra.mxu0 0.0
    %2356 = vmatprep.subr.mxu0 0.0
    %2357 = vmatpush1.xpose.msra.mxu0 0.0
    %2358 = vmatprep.subr.mxu0 0.0
    %2359 = vmatpush1.xpose.msra.mxu0 0.0
    %2360 = vmatprep.subr.mxu0 0.0
    %2361 = vmatpush1.xpose.msra.mxu0 0.0
    %2362 = vmatprep.subr.mxu0 0.0
    %2363 = vmatpush1.xpose.msra.mxu0 0.0
    %2364 = vmatprep.subr.mxu0 0.0
    %2365 = vmatpush1.xpose.msra.mxu0 0.0
    %2366 = vmatprep.subr.mxu0 0.0
    %2367 = vmatpush1.xpose.msra.mxu0 0.0
    %2368 = vmatprep.subr.mxu0 0.0
    %2369 = vmatpush1.xpose.msra.mxu0 0.0
    %2370 = vmatprep.subr.mxu0 0.0
    %2371 = vmatpush1.xpose.msra.mxu0 0.0
    %2372 = vmatprep.subr.mxu0 0.0
    %2373 = vmatpush1.xpose.msra.mxu0 0.0
    %2374 = vmatprep.subr.mxu0 0.0
    %2375 = vmatpush1.xpose.msra.mxu0 0.0
    %2376 = vmatprep.subr.mxu0 0.0
    %2377 = vmatpush1.xpose.msra.mxu0 0.0
    %2378 = vmatprep.mubr.f32.mxu0 0.0
    %2379 = vmatmul.mubr.f32.gmra.mrb[0].mxu0 %v2302
    %v2380 = vpop.f32.mrb[0].mxu0
    %v2381 = vadd.f32 %v358, %v2380
    %v2382 = vpop.f32.mrb[0].mxu0
    %2383 = vmatprep.mubr.f32.mxu0 0.0
    %2384 = vmatmul.mubr.f32.gmra.mrb[0].mxu0 %v2304
    %v2385 = vpop.f32.mrb[0].mxu0
    %v2386 = vadd.f32 %v359, %v2385
    %v2387 = vpop.f32.mrb[0].mxu0
    %2388 = vdwg.mxu0
    %v2389 = vsel %vm362, %v2381, -inf
    %2390 = vmax.xlane.f32.xlu0 %v2389
    %v2391 = vpop.xlane.xlu0 %2390
    %v2392 = vsel %vm362, %v2386, -inf
    %2393 = vmax.xlane.f32.xlu0 %v2392
    %v2394 = vpop.xlane.xlu0 %2393
    %v2395 = vsub.f32 %v2381, %v2391
    %v2396 = vsub.f32 %v2386, %v2394
    %v2397 = vmul.f32 %v2395, 1.442695
    %v2398 = vpow.pop %v2397
    %v2399 = vmul.f32 %v2396, 1.442695
    %v2400 = vpow.pop %v2399
    %v2401 = vsel %vm362, %v2398, 0.0
    %2402 = vadd.xlane.f32.xlu0 %v2401
    %v2403 = vpop.xlane.xlu0 %2402
    %v2404 = vsel %vm362, %v2400, 0.0
    %2405 = vadd.xlane.f32.xlu0 %v2404
    %v2406 = vpop.xlane.xlu0 %2405
    %v2407 = vrcp.pop %v2403
    %v2408 = vmul.f32 %v2398, %v2407
    %v2409 = vrcp.pop %v2406
    %v2410 = vmul.f32 %v2400, %v2409
    %2411 = vrot.lane.b32.xlu0 %v1853, 112
    %v2412 = vpop.permute.xlu0 %2411
    %2413 = vrot.lane.b32.xlu0 %v1858, 112
    %v2414 = vpop.permute.xlu0 %2413
    %2415 = vrot.lane.b32.xlu0 %v1863, 112
    %v2416 = vpop.permute.xlu0 %2415
    %2417 = vrot.lane.b32.xlu0 %v1868, 112
    %v2418 = vpop.permute.xlu0 %2417
    %v2424 = vsel %vm362, %v2408, 0
    %v2427 = vsel %vm362, %v2410, 0
    %2429 = vmatprep.subr.mxu0 0.0
    %2430 = vmatpush1.msra.mxu0 %v2412
    %2431 = vmatprep.subr.mxu0 0.0
    %2432 = vmatpush1.msra.mxu0 %v2414
    %2433 = vmatprep.subr.mxu0 0.0
    %2434 = vmatpush1.msra.mxu0 %v2416
    %2435 = vmatprep.subr.mxu0 0.0
    %2436 = vmatpush1.msra.mxu0 %v2418
    %2437 = vmatprep.subr.mxu0 0.0
    %2438 = vmatpush1.msra.mxu0 0.0
    %2439 = vmatprep.subr.mxu0 0.0
    %2440 = vmatpush1.msra.mxu0 0.0
    %2441 = vmatprep.subr.mxu0 0.0
    %2442 = vmatpush1.msra.mxu0 0.0
    %2443 = vmatprep.subr.mxu0 0.0
    %2444 = vmatpush1.msra.mxu0 0.0
    %2445 = vmatprep.subr.mxu0 0.0
    %2446 = vmatpush1.msra.mxu0 0.0
    %2447 = vmatprep.subr.mxu0 0.0
    %2448 = vmatpush1.msra.mxu0 0.0
    %2449 = vmatprep.subr.mxu0 0.0
    %2450 = vmatpush1.msra.mxu0 0.0
    %2451 = vmatprep.subr.mxu0 0.0
    %2452 = vmatpush1.msra.mxu0 0.0
    %2453 = vmatprep.subr.mxu0 0.0
    %2454 = vmatpush1.msra.mxu0 0.0
    %2455 = vmatprep.subr.mxu0 0.0
    %2456 = vmatpush1.msra.mxu0 0.0
    %2457 = vmatprep.subr.mxu0 0.0
    %2458 = vmatpush1.msra.mxu0 0.0
    %2459 = vmatprep.subr.mxu0 0.0
    %2460 = vmatpush1.msra.mxu0 0.0
    %2461 = vmatprep.subr.mxu0 0.0
    %2462 = vmatpush1.msra.mxu0 0.0
    %2463 = vmatprep.subr.mxu0 0.0
    %2464 = vmatpush1.msra.mxu0 0.0
    %2465 = vmatprep.subr.mxu0 0.0
    %2466 = vmatpush1.msra.mxu0 0.0
    %2467 = vmatprep.subr.mxu0 0.0
    %2468 = vmatpush1.msra.mxu0 0.0
    %2469 = vmatprep.subr.mxu0 0.0
    %2470 = vmatpush1.msra.mxu0 0.0
    %2471 = vmatprep.subr.mxu0 0.0
    %2472 = vmatpush1.msra.mxu0 0.0
    %2473 = vmatprep.subr.mxu0 0.0
    %2474 = vmatpush1.msra.mxu0 0.0
    %2475 = vmatprep.subr.mxu0 0.0
    %2476 = vmatpush1.msra.mxu0 0.0
    %2477 = vmatprep.subr.mxu0 0.0
    %2478 = vmatpush1.msra.mxu0 0.0
    %2479 = vmatprep.subr.mxu0 0.0
    %2480 = vmatpush1.msra.mxu0 0.0
    %2481 = vmatprep.subr.mxu0 0.0
    %2482 = vmatpush1.msra.mxu0 0.0
    %2483 = vmatprep.subr.mxu0 0.0
    %2484 = vmatpush1.msra.mxu0 0.0
    %2485 = vmatprep.subr.mxu0 0.0
    %2486 = vmatpush1.msra.mxu0 0.0
    %2487 = vmatprep.subr.mxu0 0.0
    %2488 = vmatpush1.msra.mxu0 0.0
    %2489 = vmatprep.subr.mxu0 0.0
    %2490 = vmatpush1.msra.mxu0 0.0
    %2491 = vmatprep.subr.mxu0 0.0
    %2492 = vmatpush1.msra.mxu0 0.0
    %2493 = vmatprep.mubr.f32.mxu0 0.0
    %2494 = vmatmul.mubr.f32.gmra.mrb[0].mxu0 %v2424
    %v2495 = vpop.f32.mrb[0].mxu0
    %v2496 = vadd.f32 0.0, %v2495
    %v2497 = vpop.f32.mrb[0].mxu0
    %2498 = vmatprep.mubr.f32.mxu0 0.0
    %2499 = vmatmul.mubr.f32.gmra.mrb[0].mxu0 %v2427
    %v2500 = vpop.f32.mrb[0].mxu0
    %v2501 = vadd.f32 0.0, %v2500
    %v2502 = vpop.f32.mrb[0].mxu0
    %2503 = vdwg.mxu0
    %2504 = vrot.lane.b32.xlu0 %v1643, 104
    %v2505 = vpop.permute.xlu0 %2504
    %2506 = vrot.lane.b32.xlu0 %v1648, 104
    %v2507 = vpop.permute.xlu0 %2506
    %2508 = vrot.lane.b32.xlu0 %v1745, 104
    %v2509 = vpop.permute.xlu0 %2508
    %2510 = vrot.lane.b32.xlu0 %v1750, 104
    %v2511 = vpop.permute.xlu0 %2510
    %2512 = vrot.lane.b32.xlu0 %v1755, 104
    %v2513 = vpop.permute.xlu0 %2512
    %2514 = vrot.lane.b32.xlu0 %v1760, 104
    %v2515 = vpop.permute.xlu0 %2514
    %v2516 = vsel %vm603, %v2505, 0
    %v2518 = vsel %vm603, %v2507, 0
    %v2520 = vsel %vm603, %v2509, 0
    %v2522 = vsel %vm603, %v2511, 0
    %v2524 = vsel %vm603, %v2513, 0
    %v2526 = vsel %vm603, %v2515, 0
    %2528 = vmatprep.subr.mxu0 0.0
    %2529 = vmatpush1.xpose.msra.mxu0 %v2520
    %2530 = vmatprep.subr.mxu0 0.0
    %2531 = vmatpush1.xpose.msra.mxu0 %v2522
    %2532 = vmatprep.subr.mxu0 0.0
    %2533 = vmatpush1.xpose.msra.mxu0 %v2524
    %2534 = vmatprep.subr.mxu0 0.0
    %2535 = vmatpush1.xpose.msra.mxu0 %v2526
    %2536 = vmatprep.subr.mxu0 0.0
    %2537 = vmatpush1.xpose.msra.mxu0 0.0
    %2538 = vmatprep.subr.mxu0 0.0
    %2539 = vmatpush1.xpose.msra.mxu0 0.0
    %2540 = vmatprep.subr.mxu0 0.0
    %2541 = vmatpush1.xpose.msra.mxu0 0.0
    %2542 = vmatprep.subr.mxu0 0.0
    %2543 = vmatpush1.xpose.msra.mxu0 0.0
    %2544 = vmatprep.subr.mxu0 0.0
    %2545 = vmatpush1.xpose.msra.mxu0 0.0
    %2546 = vmatprep.subr.mxu0 0.0
    %2547 = vmatpush1.xpose.msra.mxu0 0.0
    %2548 = vmatprep.subr.mxu0 0.0
    %2549 = vmatpush1.xpose.msra.mxu0 0.0
    %2550 = vmatprep.subr.mxu0 0.0
    %2551 = vmatpush1.xpose.msra.mxu0 0.0
    %2552 = vmatprep.subr.mxu0 0.0
    %2553 = vmatpush1.xpose.msra.mxu0 0.0
    %2554 = vmatprep.subr.mxu0 0.0
    %2555 = vmatpush1.xpose.msra.mxu0 0.0
    %2556 = vmatprep.subr.mxu0 0.0
    %2557 = vmatpush1.xpose.msra.mxu0 0.0
    %2558 = vmatprep.subr.mxu0 0.0
    %2559 = vmatpush1.xpose.msra.mxu0 0.0
    %2560 = vmatprep.subr.mxu0 0.0
    %2561 = vmatpush1.xpose.msra.mxu0 0.0
    %2562 = vmatprep.subr.mxu0 0.0
    %2563 = vmatpush1.xpose.msra.mxu0 0.0
    %2564 = vmatprep.subr.mxu0 0.0
    %2565 = vmatpush1.xpose.msra.mxu0 0.0
    %2566 = vmatprep.subr.mxu0 0.0
    %2567 = vmatpush1.xpose.msra.mxu0 0.0
    %2568 = vmatprep.subr.mxu0 0.0
    %2569 = vmatpush1.xpose.msra.mxu0 0.0
    %2570 = vmatprep.subr.mxu0 0.0
    %2571 = vmatpush1.xpose.msra.mxu0 0.0
    %2572 = vmatprep.subr.mxu0 0.0
    %2573 = vmatpush1.xpose.msra.mxu0 0.0
    %2574 = vmatprep.subr.mxu0 0.0
    %2575 = vmatpush1.xpose.msra.mxu0 0.0
    %2576 = vmatprep.subr.mxu0 0.0
    %2577 = vmatpush1.xpose.msra.mxu0 0.0
    %2578 = vmatprep.subr.mxu0 0.0
    %2579 = vmatpush1.xpose.msra.mxu0 0.0
    %2580 = vmatprep.subr.mxu0 0.0
    %2581 = vmatpush1.xpose.msra.mxu0 0.0
    %2582 = vmatprep.subr.mxu0 0.0
    %2583 = vmatpush1.xpose.msra.mxu0 0.0
    %2584 = vmatprep.subr.mxu0 0.0
    %2585 = vmatpush1.xpose.msra.mxu0 0.0
    %2586 = vmatprep.subr.mxu0 0.0
    %2587 = vmatpush1.xpose.msra.mxu0 0.0
    %2588 = vmatprep.subr.mxu0 0.0
    %2589 = vmatpush1.xpose.msra.mxu0 0.0
    %2590 = vmatprep.subr.mxu0 0.0
    %2591 = vmatpush1.xpose.msra.mxu0 0.0
    %2592 = vmatprep.mubr.f32.mxu0 0.0
    %2593 = vmatmul.mubr.f32.gmra.mrb[0].mxu0 %v2516
    %v2594 = vpop.f32.mrb[0].mxu0
    %v2595 = vadd.f32 %v358, %v2594
    %v2596 = vpop.f32.mrb[0].mxu0
    %2597 = vmatprep.mubr.f32.mxu0 0.0
    %2598 = vmatmul.mubr.f32.gmra.mrb[0].mxu0 %v2518
    %v2599 = vpop.f32.mrb[0].mxu0
    %v2600 = vadd.f32 %v359, %v2599
    %v2601 = vpop.f32.mrb[0].mxu0
    %2602 = vdwg.mxu0
    %v2603 = vsel %vm362, %v2595, -inf
    %2604 = vmax.xlane.f32.xlu0 %v2603
    %v2605 = vpop.xlane.xlu0 %2604
    %v2606 = vsel %vm362, %v2600, -inf
    %2607 = vmax.xlane.f32.xlu0 %v2606
    %v2608 = vpop.xlane.xlu0 %2607
    %v2609 = vsub.f32 %v2595, %v2605
    %v2610 = vsub.f32 %v2600, %v2608
    %v2611 = vmul.f32 %v2609, 1.442695
    %v2612 = vpow.pop %v2611
    %v2613 = vmul.f32 %v2610, 1.442695
    %v2614 = vpow.pop %v2613
    %v2615 = vsel %vm362, %v2612, 0.0
    %2616 = vadd.xlane.f32.xlu0 %v2615
    %v2617 = vpop.xlane.xlu0 %2616
    %v2618 = vsel %vm362, %v2614, 0.0
    %2619 = vadd.xlane.f32.xlu0 %v2618
    %v2620 = vpop.xlane.xlu0 %2619
    %v2621 = vrcp.pop %v2617
    %v2622 = vmul.f32 %v2612, %v2621
    %v2623 = vrcp.pop %v2620
    %v2624 = vmul.f32 %v2614, %v2623
    %2625 = vrot.lane.b32.xlu0 %v1853, 104
    %v2626 = vpop.permute.xlu0 %2625
    %2627 = vrot.lane.b32.xlu0 %v1858, 104
    %v2628 = vpop.permute.xlu0 %2627
    %2629 = vrot.lane.b32.xlu0 %v1863, 104
    %v2630 = vpop.permute.xlu0 %2629
    %2631 = vrot.lane.b32.xlu0 %v1868, 104
    %v2632 = vpop.permute.xlu0 %2631
    %v2638 = vsel %vm362, %v2622, 0
    %v2641 = vsel %vm362, %v2624, 0
    %2643 = vmatprep.subr.mxu0 0.0
    %2644 = vmatpush1.msra.mxu0 %v2626
    %2645 = vmatprep.subr.mxu0 0.0
    %2646 = vmatpush1.msra.mxu0 %v2628
    %2647 = vmatprep.subr.mxu0 0.0
    %2648 = vmatpush1.msra.mxu0 %v2630
    %2649 = vmatprep.subr.mxu0 0.0
    %2650 = vmatpush1.msra.mxu0 %v2632
    %2651 = vmatprep.subr.mxu0 0.0
    %2652 = vmatpush1.msra.mxu0 0.0
    %2653 = vmatprep.subr.mxu0 0.0
    %2654 = vmatpush1.msra.mxu0 0.0
    %2655 = vmatprep.subr.mxu0 0.0
    %2656 = vmatpush1.msra.mxu0 0.0
    %2657 = vmatprep.subr.mxu0 0.0
    %2658 = vmatpush1.msra.mxu0 0.0
    %2659 = vmatprep.subr.mxu0 0.0
    %2660 = vmatpush1.msra.mxu0 0.0
    %2661 = vmatprep.subr.mxu0 0.0
    %2662 = vmatpush1.msra.mxu0 0.0
    %2663 = vmatprep.subr.mxu0 0.0
    %2664 = vmatpush1.msra.mxu0 0.0
    %2665 = vmatprep.subr.mxu0 0.0
    %2666 = vmatpush1.msra.mxu0 0.0
    %2667 = vmatprep.subr.mxu0 0.0
    %2668 = vmatpush1.msra.mxu0 0.0
    %2669 = vmatprep.subr.mxu0 0.0
    %2670 = vmatpush1.msra.mxu0 0.0
    %2671 = vmatprep.subr.mxu0 0.0
    %2672 = vmatpush1.msra.mxu0 0.0
    %2673 = vmatprep.subr.mxu0 0.0
    %2674 = vmatpush1.msra.mxu0 0.0
    %2675 = vmatprep.subr.mxu0 0.0
    %2676 = vmatpush1.msra.mxu0 0.0
    %2677 = vmatprep.subr.mxu0 0.0
    %2678 = vmatpush1.msra.mxu0 0.0
    %2679 = vmatprep.subr.mxu0 0.0
    %2680 = vmatpush1.msra.mxu0 0.0
    %2681 = vmatprep.subr.mxu0 0.0
    %2682 = vmatpush1.msra.mxu0 0.0
    %2683 = vmatprep.subr.mxu0 0.0
    %2684 = vmatpush1.msra.mxu0 0.0
    %2685 = vmatprep.subr.mxu0 0.0
    %2686 = vmatpush1.msra.mxu0 0.0
    %2687 = vmatprep.subr.mxu0 0.0
    %2688 = vmatpush1.msra.mxu0 0.0
    %2689 = vmatprep.subr.mxu0 0.0
    %2690 = vmatpush1.msra.mxu0 0.0
    %2691 = vmatprep.subr.mxu0 0.0
    %2692 = vmatpush1.msra.mxu0 0.0
    %2693 = vmatprep.subr.mxu0 0.0
    %2694 = vmatpush1.msra.mxu0 0.0
    %2695 = vmatprep.subr.mxu0 0.0
    %2696 = vmatpush1.msra.mxu0 0.0
    %2697 = vmatprep.subr.mxu0 0.0
    %2698 = vmatpush1.msra.mxu0 0.0
    %2699 = vmatprep.subr.mxu0 0.0
    %2700 = vmatpush1.msra.mxu0 0.0
    %2701 = vmatprep.subr.mxu0 0.0
    %2702 = vmatpush1.msra.mxu0 0.0
    %2703 = vmatprep.subr.mxu0 0.0
    %2704 = vmatpush1.msra.mxu0 0.0
    %2705 = vmatprep.subr.mxu0 0.0
    %2706 = vmatpush1.msra.mxu0 0.0
    %2707 = vmatprep.mubr.f32.mxu0 0.0
    %2708 = vmatmul.mubr.f32.gmra.mrb[0].mxu0 %v2638
    %v2709 = vpop.f32.mrb[0].mxu0
    %v2710 = vadd.f32 0.0, %v2709
    %v2711 = vpop.f32.mrb[0].mxu0
    %2712 = vmatprep.mubr.f32.mxu0 0.0
    %2713 = vmatmul.mubr.f32.gmra.mrb[0].mxu0 %v2641
    %v2714 = vpop.f32.mrb[0].mxu0
    %v2715 = vadd.f32 0.0, %v2714
    %v2716 = vpop.f32.mrb[0].mxu0
    %2717 = vdwg.mxu0
    %2720 = vrot.lane.b32.xlu0 %v2282, 8
    %v2721 = vpop.permute.xlu0 %2720
    %2722 = vrot.lane.b32.xlu0 %v2287, 8
    %v2723 = vpop.permute.xlu0 %2722
    %2728 = vrot.lane.b32.xlu0 %v2496, 16
    %v2729 = vpop.permute.xlu0 %2728
    %2730 = vrot.lane.b32.xlu0 %v2501, 16
    %v2731 = vpop.permute.xlu0 %2730
    %2736 = vrot.lane.b32.xlu0 %v2710, 24
    %v2737 = vpop.permute.xlu0 %2736
    %2738 = vrot.lane.b32.xlu0 %v2715, 24
    %v2739 = vpop.permute.xlu0 %2738
    %v2742 = vsel %vm603, %v2064, %v2721
    %v2743 = vsel %vm603, %v2069, %v2723
    %v2744 = vsel %vm687, %v2742, %v2729
    %v2745 = vsel %vm687, %v2743, %v2731
    %v2746 = vsel %vm1421, %v2744, %v2737
    %v2747 = vsel %vm1421, %v2745, %v2739
    %v2749 = vlaneseq
    %v2750 = vshrl.u32 %v2749, 7
    %v2751 = vsub.s32 0, %v2750
    %v2752 = vrot.slane %v1875, %v2751
    %v2755 = vsel %vm362, %v2746, 0
    %v2758 = vsel %vm362, %v2747, 0
    %2760 = vmatprep.subr.mxu0 0.0
    %2761 = vmatpush1.msra.mxu0 %v1871
    %2762 = vmatprep.subr.mxu0 0.0
    %2763 = vmatpush1.msra.mxu0 %v1872
    %2764 = vmatprep.subr.mxu0 0.0
    %2765 = vmatpush1.msra.mxu0 %v1873
    %2766 = vmatprep.subr.mxu0 0.0
    %2767 = vmatpush1.msra.mxu0 %v1874
    %2768 = vmatprep.subr.mxu0 0.0
    %2769 = vmatpush1.msra.mxu0 0.0
    %2770 = vmatprep.subr.mxu0 0.0
    %2771 = vmatpush1.msra.mxu0 0.0
    %2772 = vmatprep.subr.mxu0 0.0
    %2773 = vmatpush1.msra.mxu0 0.0
    %2774 = vmatprep.subr.mxu0 0.0
    %2775 = vmatpush1.msra.mxu0 0.0
    %2776 = vmatprep.subr.mxu0 0.0
    %2777 = vmatpush1.msra.mxu0 0.0
    %2778 = vmatprep.subr.mxu0 0.0
    %2779 = vmatpush1.msra.mxu0 0.0
    %2780 = vmatprep.subr.mxu0 0.0
    %2781 = vmatpush1.msra.mxu0 0.0
    %2782 = vmatprep.subr.mxu0 0.0
    %2783 = vmatpush1.msra.mxu0 0.0
    %2784 = vmatprep.subr.mxu0 0.0
    %2785 = vmatpush1.msra.mxu0 0.0
    %2786 = vmatprep.subr.mxu0 0.0
    %2787 = vmatpush1.msra.mxu0 0.0
    %2788 = vmatprep.subr.mxu0 0.0
    %2789 = vmatpush1.msra.mxu0 0.0
    %2790 = vmatprep.subr.mxu0 0.0
    %2791 = vmatpush1.msra.mxu0 0.0
    %2792 = vmatprep.subr.mxu0 0.0
    %2793 = vmatpush1.msra.mxu0 0.0
    %2794 = vmatprep.subr.mxu0 0.0
    %2795 = vmatpush1.msra.mxu0 0.0
    %2796 = vmatprep.subr.mxu0 0.0
    %2797 = vmatpush1.msra.mxu0 0.0
    %2798 = vmatprep.subr.mxu0 0.0
    %2799 = vmatpush1.msra.mxu0 0.0
    %2800 = vmatprep.subr.mxu0 0.0
    %2801 = vmatpush1.msra.mxu0 0.0
    %2802 = vmatprep.subr.mxu0 0.0
    %2803 = vmatpush1.msra.mxu0 0.0
    %2804 = vmatprep.subr.mxu0 0.0
    %2805 = vmatpush1.msra.mxu0 0.0
    %2806 = vmatprep.subr.mxu0 0.0
    %2807 = vmatpush1.msra.mxu0 0.0
    %2808 = vmatprep.subr.mxu0 0.0
    %2809 = vmatpush1.msra.mxu0 0.0
    %2810 = vmatprep.subr.mxu0 0.0
    %2811 = vmatpush1.msra.mxu0 0.0
    %2812 = vmatprep.subr.mxu0 0.0
    %2813 = vmatpush1.msra.mxu0 0.0
    %2814 = vmatprep.subr.mxu0 0.0
    %2815 = vmatpush1.msra.mxu0 0.0
    %2816 = vmatprep.subr.mxu0 0.0
    %2817 = vmatpush1.msra.mxu0 0.0
    %2818 = vmatprep.subr.mxu0 0.0
    %2819 = vmatpush1.msra.mxu0 0.0
    %2820 = vmatprep.subr.mxu0 0.0
    %2821 = vmatpush1.msra.mxu0 0.0
    %2822 = vmatprep.subr.mxu0 0.0
    %2823 = vmatpush1.msra.mxu0 0.0
    %2824 = vmatprep.mubr.f32.mxu0 0.0
    %2825 = vmatmul.mubr.f32.gmra.mrb[0].mxu0 %v2755
    %v2826 = vpop.f32.mrb[0].mxu0
    %v2827 = vadd.f32 %v2752, %v2826
    %v2828 = vpop.f32.mrb[0].mxu0
    %2829 = vmatprep.mubr.f32.mxu0 0.0
    %2830 = vmatmul.mubr.f32.gmra.mrb[0].mxu0 %v2758
    %v2831 = vpop.f32.mrb[0].mxu0
    %v2832 = vadd.f32 %v2752, %v2831
    %v2833 = vpop.f32.mrb[0].mxu0
    %2834 = vdwg.mxu0
    %v2835 = vadd.f32 %v1511, %v2827
    %v2836 = vadd.f32 %v1512, %v2832
    %v2837 = vld [vmem:[#allocation26] sm:$0x1]
    %v2838 = vld [vmem:[#allocation28] sm:$0x1]
    %v2839 = vsel %vm362, %v2835, 0.0
    %2840 = vadd.xlane.f32.xlu0 %v2839
    %v2841 = vpop.xlane.xlu0 %2840
    %v2842 = vsel %vm362, %v2836, 0.0
    %2843 = vadd.xlane.f32.xlu0 %v2842
    %v2844 = vpop.xlane.xlu0 %2843
    %v2845 = vmul.f32 %v2841, %v369
    %v2846 = vmul.f32 %v2844, %v369
    %v2847 = vsub.f32 %v2835, %v2845
    %v2848 = vsub.f32 %v2836, %v2846
    %v2849 = vmul.f32 %v2847, %v2847
    %v2850 = vmul.f32 %v2848, %v2848
    %v2851 = vsel %vm362, %v2849, 0.0
    %2852 = vadd.xlane.f32.xlu0 %v2851
    %v2853 = vpop.xlane.xlu0 %2852
    %v2854 = vsel %vm362, %v2850, 0.0
    %2855 = vadd.xlane.f32.xlu0 %v2854
    %v2856 = vpop.xlane.xlu0 %2855
    %v2857 = vmul.f32 %v2853, %v369
    %v2858 = vmul.f32 %v2856, %v369
    %v2859 = vadd.f32 %v2857, 1e-05
    %v2860 = vadd.f32 %v2858, 1e-05
    %v2861 = vrsqrt.pop %v2859
    %v2862 = vrsqrt.pop %v2860
    %v2863 = vmul.f32 %v2847, %v2861
    %v2864 = vmul.f32 %v2848, %v2862
    %v2866 = vlaneseq
    %v2867 = vshrl.u32 %v2866, 7
    %v2868 = vsub.s32 0, %v2867
    %v2869 = vrot.slane %v2837, %v2868
    %v2871 = vmul.f32 %v2863, %v2869
    %v2872 = vmul.f32 %v2864, %v2869
    %v2874 = vlaneseq
    %v2875 = vshrl.u32 %v2874, 7
    %v2876 = vsub.s32 0, %v2875
    %v2877 = vrot.slane %v2838, %v2876
    %v2879 = vadd.f32 %v2871, %v2877
    %v2880 = vadd.f32 %v2872, %v2877
    %v2881 = vld [vmem:[#allocation29] sm:$0xff]
    %v2882 = vld [vmem:[#allocation29 + $0x8] sm:$0xff]
    %v2883 = vld [vmem:[#allocation29 + $0x10] sm:$0xff]
    %v2884 = vld [vmem:[#allocation29 + $0x18] sm:$0xff]
    %v2885 = vld [vmem:[#allocation31] sm:$0x1]
    %v2887 = vlaneseq
    %v2888 = vshrl.u32 %v2887, 7
    %v2889 = vsub.s32 0, %v2888
    %v2890 = vrot.slane %v2885, %v2889
    %v2893 = vsel %vm362, %v2879, 0
    %v2896 = vsel %vm362, %v2880, 0
    %2898 = vmatprep.subr.mxu0 0.0
    %2899 = vmatpush1.msra.mxu0 %v2881
    %2900 = vmatprep.subr.mxu0 0.0
    %2901 = vmatpush1.msra.mxu0 %v2882
    %2902 = vmatprep.subr.mxu0 0.0
    %2903 = vmatpush1.msra.mxu0 %v2883
    %2904 = vmatprep.subr.mxu0 0.0
    %2905 = vmatpush1.msra.mxu0 %v2884
    %2906 = vmatprep.subr.mxu0 0.0
    %2907 = vmatpush1.msra.mxu0 0.0
    %2908 = vmatprep.subr.mxu0 0.0
    %2909 = vmatpush1.msra.mxu0 0.0
    %2910 = vmatprep.subr.mxu0 0.0
    %2911 = vmatpush1.msra.mxu0 0.0
    %2912 = vmatprep.subr.mxu0 0.0
    %2913 = vmatpush1.msra.mxu0 0.0
    %2914 = vmatprep.subr.mxu0 0.0
    %2915 = vmatpush1.msra.mxu0 0.0
    %2916 = vmatprep.subr.mxu0 0.0
    %2917 = vmatpush1.msra.mxu0 0.0
    %2918 = vmatprep.subr.mxu0 0.0
    %2919 = vmatpush1.msra.mxu0 0.0
    %2920 = vmatprep.subr.mxu0 0.0
    %2921 = vmatpush1.msra.mxu0 0.0
    %2922 = vmatprep.subr.mxu0 0.0
    %2923 = vmatpush1.msra.mxu0 0.0
    %2924 = vmatprep.subr.mxu0 0.0
    %2925 = vmatpush1.msra.mxu0 0.0
    %2926 = vmatprep.subr.mxu0 0.0
    %2927 = vmatpush1.msra.mxu0 0.0
    %2928 = vmatprep.subr.mxu0 0.0
    %2929 = vmatpush1.msra.mxu0 0.0
    %2930 = vmatprep.subr.mxu0 0.0
    %2931 = vmatpush1.msra.mxu0 0.0
    %2932 = vmatprep.subr.mxu0 0.0
    %2933 = vmatpush1.msra.mxu0 0.0
    %2934 = vmatprep.subr.mxu0 0.0
    %2935 = vmatpush1.msra.mxu0 0.0
    %2936 = vmatprep.subr.mxu0 0.0
    %2937 = vmatpush1.msra.mxu0 0.0
    %2938 = vmatprep.subr.mxu0 0.0
    %2939 = vmatpush1.msra.mxu0 0.0
    %2940 = vmatprep.subr.mxu0 0.0
    %2941 = vmatpush1.msra.mxu0 0.0
    %2942 = vmatprep.subr.mxu0 0.0
    %2943 = vmatpush1.msra.mxu0 0.0
    %2944 = vmatprep.subr.mxu0 0.0
    %2945 = vmatpush1.msra.mxu0 0.0
    %2946 = vmatprep.subr.mxu0 0.0
    %2947 = vmatpush1.msra.mxu0 0.0
    %2948 = vmatprep.subr.mxu0 0.0
    %2949 = vmatpush1.msra.mxu0 0.0
    %2950 = vmatprep.subr.mxu0 0.0
    %2951 = vmatpush1.msra.mxu0 0.0
    %2952 = vmatprep.subr.mxu0 0.0
    %2953 = vmatpush1.msra.mxu0 0.0
    %2954 = vmatprep.subr.mxu0 0.0
    %2955 = vmatpush1.msra.mxu0 0.0
    %2956 = vmatprep.subr.mxu0 0.0
    %2957 = vmatpush1.msra.mxu0 0.0
    %2958 = vmatprep.subr.mxu0 0.0
    %2959 = vmatpush1.msra.mxu0 0.0
    %2960 = vmatprep.subr.mxu0 0.0
    %2961 = vmatpush1.msra.mxu0 0.0
    %2962 = vmatprep.mubr.f32.mxu0 0.0
    %2963 = vmatmul.mubr.f32.gmra.mrb[0].mxu0 %v2893
    %v2964 = vpop.f32.mrb[0].mxu0
    %v2965 = vadd.f32 %v2890, %v2964
    %v2966 = vpop.f32.mrb[0].mxu0
    %2967 = vmatprep.mubr.f32.mxu0 0.0
    %2968 = vmatmul.mubr.f32.gmra.mrb[0].mxu0 %v2896
    %v2969 = vpop.f32.mrb[0].mxu0
    %v2970 = vadd.f32 %v2890, %v2969
    %v2971 = vpop.f32.mrb[0].mxu0
    %2972 = vdwg.mxu0
    %v2973 = vmax.f32 %v2965, 0.0
    %v2974 = vmax.f32 %v2970, 0.0
    %v2975 = vld [vmem:[%s26] sm:$0xff]
    %v2976 = vld [vmem:[%s26 + $0x8] sm:$0xff]
    %v2977 = vld [vmem:[%s26 + $0x10] sm:$0xff]
    %v2978 = vld [vmem:[%s26 + $0x18] sm:$0xff]
    %v2979 = vld [vmem:[%s26 + $0x20] sm:$0xff]
    %v2980 = vld [vmem:[%s26 + $0x28] sm:$0xff]
    %v2981 = vld [vmem:[%s26 + $0x30] sm:$0xff]
    %v2982 = vld [vmem:[%s26 + $0x38] sm:$0xff]
    %v2983 = vld [vmem:[#allocation32] sm:$0x1]
    %v2985 = vlaneseq
    %v2986 = vshrl.u32 %v2985, 7
    %v2987 = vsub.s32 0, %v2986
    %v2988 = vrot.slane %v2983, %v2987
    %vm2990 = vcmask 523264
    %v2992 = vsel %vm2990, %v2973, 0
    %v2995 = vsel %vm2990, %v2974, 0
    %2997 = vmatprep.subr.mxu0 0.0
    %2998 = vmatpush1.msra.mxu0 %v2975
    %2999 = vmatprep.subr.mxu0 0.0
    %3000 = vmatpush1.msra.mxu0 %v2976
    %3001 = vmatprep.subr.mxu0 0.0
    %3002 = vmatpush1.msra.mxu0 %v2977
    %3003 = vmatprep.subr.mxu0 0.0
    %3004 = vmatpush1.msra.mxu0 %v2978
    %3005 = vmatprep.subr.mxu0 0.0
    %3006 = vmatpush1.msra.mxu0 %v2979
    %3007 = vmatprep.subr.mxu0 0.0
    %3008 = vmatpush1.msra.mxu0 %v2980
    %3009 = vmatprep.subr.mxu0 0.0
    %3010 = vmatpush1.msra.mxu0 %v2981
    %3011 = vmatprep.subr.mxu0 0.0
    %3012 = vmatpush1.msra.mxu0 %v2982
    %3013 = vmatprep.subr.mxu0 0.0
    %3014 = vmatpush1.msra.mxu0 0.0
    %3015 = vmatprep.subr.mxu0 0.0
    %3016 = vmatpush1.msra.mxu0 0.0
    %3017 = vmatprep.subr.mxu0 0.0
    %3018 = vmatpush1.msra.mxu0 0.0
    %3019 = vmatprep.subr.mxu0 0.0
    %3020 = vmatpush1.msra.mxu0 0.0
    %3021 = vmatprep.subr.mxu0 0.0
    %3022 = vmatpush1.msra.mxu0 0.0
    %3023 = vmatprep.subr.mxu0 0.0
    %3024 = vmatpush1.msra.mxu0 0.0
    %3025 = vmatprep.subr.mxu0 0.0
    %3026 = vmatpush1.msra.mxu0 0.0
    %3027 = vmatprep.subr.mxu0 0.0
    %3028 = vmatpush1.msra.mxu0 0.0
    %3029 = vmatprep.subr.mxu0 0.0
    %3030 = vmatpush1.msra.mxu0 0.0
    %3031 = vmatprep.subr.mxu0 0.0
    %3032 = vmatpush1.msra.mxu0 0.0
    %3033 = vmatprep.subr.mxu0 0.0
    %3034 = vmatpush1.msra.mxu0 0.0
    %3035 = vmatprep.subr.mxu0 0.0
    %3036 = vmatpush1.msra.mxu0 0.0
    %3037 = vmatprep.subr.mxu0 0.0
    %3038 = vmatpush1.msra.mxu0 0.0
    %3039 = vmatprep.subr.mxu0 0.0
    %3040 = vmatpush1.msra.mxu0 0.0
    %3041 = vmatprep.subr.mxu0 0.0
    %3042 = vmatpush1.msra.mxu0 0.0
    %3043 = vmatprep.subr.mxu0 0.0
    %3044 = vmatpush1.msra.mxu0 0.0
    %3045 = vmatprep.subr.mxu0 0.0
    %3046 = vmatpush1.msra.mxu0 0.0
    %3047 = vmatprep.subr.mxu0 0.0
    %3048 = vmatpush1.msra.mxu0 0.0
    %3049 = vmatprep.subr.mxu0 0.0
    %3050 = vmatpush1.msra.mxu0 0.0
    %3051 = vmatprep.subr.mxu0 0.0
    %3052 = vmatpush1.msra.mxu0 0.0
    %3053 = vmatprep.subr.mxu0 0.0
    %3054 = vmatpush1.msra.mxu0 0.0
    %3055 = vmatprep.subr.mxu0 0.0
    %3056 = vmatpush1.msra.mxu0 0.0
    %3057 = vmatprep.subr.mxu0 0.0
    %3058 = vmatpush1.msra.mxu0 0.0
    %3059 = vmatprep.subr.mxu0 0.0
    %3060 = vmatpush1.msra.mxu0 0.0
    %3061 = vmatprep.mubr.f32.mxu0 0.0
    %3062 = vmatmul.mubr.f32.gmra.mrb[0].mxu0 %v2992
    %v3063 = vpop.f32.mrb[0].mxu0
    %v3064 = vadd.f32 %v2988, %v3063
    %v3065 = vpop.f32.mrb[0].mxu0
    %3066 = vmatprep.mubr.f32.mxu0 0.0
    %3067 = vmatmul.mubr.f32.gmra.mrb[0].mxu0 %v2995
    %v3068 = vpop.f32.mrb[0].mxu0
    %v3069 = vadd.f32 %v2988, %v3068
    %v3070 = vpop.f32.mrb[0].mxu0
    %3071 = vdwg.mxu0
    %v3072 = vadd.f32 %v2835, %v3064
    %v3073 = vadd.f32 %v2836, %v3069
    %3074 = vst.msk [vmem:[#allocation34] sm:$0xff] %vm362, %v3072
    %3075 = vst.msk [vmem:[#allocation34 + $0x8] sm:$0xff] %vm362, %v3073
    // Predicated region
    $region194: #{transformer_decoder_layer.1} parent=1 // pred_check
      _
    $region195: #{transformer_decoder_layer.1} parent=1 // pred_check_branch
      %3077 = sbr.rel (0) target = $region197
    $region196: #{transformer_decoder_layer.1} parent=1 // pred_region
      %s3079 = ssub.s32 256, 256
      %3080 = vsyncadd [#allocation4], %s3079
      %s3081 = sshll.u32 [#allocation34], 4
      %s3082 = int_to_ptr.vmem [resolvable:$true] %s3081
      %3087 = dma.vmem_to_hbm [thread:$0]  %s3082, 256, %s28, [#allocation4], 128, 128, 8
    $region197: #{transformer_decoder_layer.1} parent=1 // pred_fallthru
      _
    // Predicated region
    $region198: #{transformer_decoder_layer.1} parent=1 // pred_check
      _
    $region199: #{transformer_decoder_layer.1} parent=1 // pred_check_branch
      %3089 = sbr.rel (0) target = $region201
    $region200: #{transformer_decoder_layer.1} parent=1 // pred_region
      %3090 = dma.done [#allocation4], 256
    $region201: #{transformer_decoder_layer.1} parent=1 // pred_fallthru
      _
    %3091 = vsyncpa [#allocation3], 1
    %3092 = vsyncpa [#allocation6], 1
    %3093 = vsyncpa [#allocation9], 1
    %3094 = vsyncpa [#allocation12], 1
    %3095 = vsyncpa [#allocation15], 1
    %3096 = vsyncpa [#allocation18], 1
    %3097 = vsyncpa [#allocation21], 1
    %3098 = vsyncpa [#allocation24], 1
    %3099 = vsyncpa [#allocation27], 1
    %3100 = vsyncpa [#allocation30], 1
    %3101 = vsyncpa [#allocation33], 1
    %3102 = vsyncpa [#allocation4], 1

</llo_original>
